<compile_context>
chip_gen: v7x
topology: tpu7x:2x2x1
jax: 0.10.0
libtpu: 0.0.40
codegen_flags: <defaults>
</compile_context>

<pallas_src>
import functools

import jax
import jax.numpy as jnp
from jax.experimental import pallas as pl
from jax.experimental.pallas import tpu as pltpu

EPS = 1e-5
LANE = 128
_VMEM_LIMIT = 48 * 1024 * 1024          # fits v7x (64 MiB phys) and v5e/v6e (128 MiB)
_HI = jax.lax.Precision.HIGHEST          # only used by the pure-JAX reference


def _round_up(v, m):
    return (v + m - 1) // m * m


# -----------------------------------------------------------------------------
# Pallas kernels
# -----------------------------------------------------------------------------
def _tap_patch(xblk, H, W):
    """(H+2, W+2, C) slab -> (H*W, 9*C) implicit-im2col patch matrix (bf16)."""
    C = xblk.shape[-1]
    cols = [xblk[kh:kh + H, kw:kw + W, :].reshape(H * W, C)
            for kh in range(3) for kw in range(3)]
    return jnp.concatenate(cols, axis=-1).astype(jnp.bfloat16)


def _conv1_kernel(x_ref, w_ref, b_ref, y_ref, st_ref, acc_ref, *, H, W, D):
    """Stage 1: y1 = conv1(x) + b1 (pre-BN), plus per-tile BN1 partial stats."""
    d = pl.program_id(1)
    kd = pl.program_id(2)

    @pl.when(kd == 0)
    def _():
        acc_ref[...] = jnp.zeros_like(acc_ref)

    dd = d + kd                                   # depth index into (D+2)-padded input

    @pl.when(jnp.logical_and(dd >= 1, dd <= D))   # skip the all-zero pad slices
    def _():
        xb = x_ref[0, 0]                          # (H+2, W+2, Cin_p) f32
        patch = _tap_patch(xb, H, W)              # (H*W, 9*Cin_p) bf16
        acc_ref[...] += jnp.dot(patch, w_ref[0],
                                preferred_element_type=jnp.float32)

    @pl.when(kd == pl.num_programs(2) - 1)
    def _():
        y = acc_ref[...] + b_ref[...]             # (H*W, Cout_p)
        y_ref[0, 0] = y
        s = jnp.sum(y, axis=0, keepdims=True)
        ss = jnp.sum(y * y, axis=0, keepdims=True)
        st_ref[0, 0] = jnp.concatenate([s, ss], axis=0)


def _conv2_kernel(y1_ref, w_ref, b_ref, sc1_ref, sh1_ref,
                  y2_ref, st_ref, acc_ref, *, H, W, D):
    """Stage 2: y2 = conv2(relu(bn1(y1))) + b2 (pre-BN2), plus BN2 partial stats.
    BN1+ReLU is applied on the fly to the halo'd y1 slab; halo positions that
    correspond to conv 'same' zero-padding of h1 are re-zeroed with a mask."""
    d = pl.program_id(1)
    kd = pl.program_id(2)

    @pl.when(kd == 0)
    def _():
        acc_ref[...] = jnp.zeros_like(acc_ref)

    dd = d + kd

    @pl.when(jnp.logical_and(dd >= 1, dd <= D))   # pad depth slices contribute 0
    def _():
        Cp = y1_ref.shape[-1]
        y1 = y1_ref[0, 0]                         # (H+2, W+2, Cout_p) f32, pre-BN
        h = y1 * sc1_ref[...].reshape(1, 1, Cp) + sh1_ref[...].reshape(1, 1, Cp)
        h = jnp.maximum(h, 0.0)                   # relu(bn1(y1))
        rr = jax.lax.broadcasted_iota(jnp.int32, (H + 2, W + 2, Cp), 0)
        cc = jax.lax.broadcasted_iota(jnp.int32, (H + 2, W + 2, Cp), 1)
        valid = (rr >= 1) & (rr <= H) & (cc >= 1) & (cc <= W)
        h = jnp.where(valid, h, 0.0)              # conv 'same' padding of h1 is 0
        patch = _tap_patch(h, H, W)               # (H*W, 9*Cout_p) bf16
        acc_ref[...] += jnp.dot(patch, w_ref[0],
                                preferred_element_type=jnp.float32)

    @pl.when(kd == pl.num_programs(2) - 1)
    def _():
        y = acc_ref[...] + b_ref[...]
        y2_ref[0, 0] = y
        s = jnp.sum(y, axis=0, keepdims=True)
        ss = jnp.sum(y * y, axis=0, keepdims=True)
        st_ref[0, 0] = jnp.concatenate([s, ss], axis=0)


def _bn_add_relu_proj_kernel(y2_ref, sc2_ref, sh2_ref, x_ref, wsc_ref, bsc_ref, o_ref):
    """out = relu(bn2(y2) + (x @ Wsc + bsc))  —  1x1x1 projection shortcut."""
    y = y2_ref[0, 0] * sc2_ref[...] + sh2_ref[...]
    res = jnp.dot(x_ref[0, 0].astype(jnp.bfloat16), wsc_ref[...],
                  preferred_element_type=jnp.float32) + bsc_ref[...]
    o_ref[0, 0] = jnp.maximum(y + res, 0.0)


def _bn_add_relu_id_kernel(y2_ref, sc2_ref, sh2_ref, x_ref, o_ref):
    """out = relu(bn2(y2) + x)  —  identity shortcut (no matmul, no eye())."""
    y = y2_ref[0, 0] * sc2_ref[...] + sh2_ref[...]
    o_ref[0, 0] = jnp.maximum(y + x_ref[0, 0], 0.0)


# -----------------------------------------------------------------------------
# Host-side helpers (parameter packing, per-channel stat folding)
# -----------------------------------------------------------------------------
def _conv_weight_slab(w, cin_p, cout_p):
    """PyTorch (Cout, Cin, 3, 3, 3) -> (3, 9*Cin_p, Cout_p) bf16, matching the
    in-kernel (kh, kw, cin) patch ordering."""
    cout, cin = w.shape[0], w.shape[1]
    w = jnp.transpose(w, (2, 3, 4, 1, 0))                 # (kd, kh, kw, Cin, Cout)
    w = jnp.pad(w, ((0, 0), (0, 0), (0, 0), (0, cin_p - cin), (0, cout_p - cout)))
    return w.reshape(3, 9 * cin_p, cout_p).astype(jnp.bfloat16)


def _pad_vec(v, cp):
    """(C,) -> (1, Cp) f32, zero padded (zeros keep padded channels inert)."""
    return jnp.pad(v.astype(jnp.float32), (0, cp - v.shape[0])).reshape(1, cp)


def _bn_scale_shift(stats, gamma_p, beta_p, count):
    """Fold batch statistics into per-channel scale/shift: bn(y) = y*scale + shift."""
    s = jnp.sum(stats[:, :, 0, :], axis=(0, 1))
    ss = jnp.sum(stats[:, :, 1, :], axis=(0, 1))
    mean = s / count
    # single-pass biased variance; values are O(1) here so f32 is sufficient
    var = jnp.maximum(ss / count - mean * mean, 0.0)
    scale = gamma_p * jax.lax.rsqrt(var + EPS)            # (1, Cp)
    shift = beta_p - mean * scale                          # (1, Cp)
    return scale, shift


def _conv_stage(kernel_fn, inputs, in_specs, N, D, HW, cout_p):
    out_shape = (jax.ShapeDtypeStruct((N, D, HW, cout_p), jnp.float32),   # conv out (pre-BN)
                 jax.ShapeDtypeStruct((N, D, 2, cout_p), jnp.float32))    # [sum; sumsq]
    out_specs = (pl.BlockSpec((1, 1, HW, cout_p), lambda n, d, k: (n, d, 0, 0)),
                 pl.BlockSpec((1, 1, 2, cout_p), lambda n, d, k: (n, d, 0, 0)))
    return pl.pallas_call(
        kernel_fn,
        grid=(N, D, 3),
        in_specs=in_specs,
        out_specs=out_specs,
        out_shape=out_shape,
        scratch_shapes=[pltpu.VMEM((HW, cout_p), jnp.float32)],
        compiler_params=pltpu.CompilerParams(
            dimension_semantics=("parallel", "parallel", "arbitrary"),
            vmem_limit_bytes=_VMEM_LIMIT),
    )(*inputs)


# -----------------------------------------------------------------------------
# ResidualBlock forward
# -----------------------------------------------------------------------------
@jax.jit
def residual_block_forward(x_ncdhw, params):
    N, Cin, D, H, W = x_ncdhw.shape
    Cout = params["w1"].shape[0]
    HW = H * W
    cin_p = _round_up(Cin, LANE)
    cout_p = _round_up(Cout, LANE)
    count = float(N * D * H * W)

    # NCDHW -> NDHWC, channel-pad to lane width, spatial 'same' halo for conv1.
    x_cl = jnp.transpose(x_ncdhw, (0, 2, 3, 4, 1)).astype(jnp.float32)
    x_cl = jnp.pad(x_cl, ((0, 0),) * 4 + ((0, cin_p - Cin),))
    x_pad = jnp.pad(x_cl, ((0, 0), (1, 1), (1, 1), (1, 1), (0, 0)))

    w1 = _conv_weight_slab(params["w1"], cin_p, cout_p)
    w2 = _conv_weight_slab(params["w2"], cout_p, cout_p)
    b1 = _pad_vec(params["b1"], cout_p)
    b2 = _pad_vec(params["b2"], cout_p)
    g1 = _pad_vec(params["g1"], cout_p)
    be1 = _pad_vec(params["beta1"], cout_p)
    g2 = _pad_vec(params["g2"], cout_p)
    be2 = _pad_vec(params["beta2"], cout_p)

    # ---- stage 1: conv1 (+ BN1 partial stats) --------------------------------
    in_specs1 = [
        pl.BlockSpec((1, 1, H + 2, W + 2, cin_p), lambda n, d, k: (n, d + k, 0, 0, 0)),
        pl.BlockSpec((1, 9 * cin_p, cout_p), lambda n, d, k: (k, 0, 0)),
        pl.BlockSpec((1, cout_p), lambda n, d, k: (0, 0)),
    ]
    y1, st1 = _conv_stage(functools.partial(_conv1_kernel, H=H, W=W, D=D),
                          (x_pad, w1, b1), in_specs1, N, D, HW, cout_p)
    sc1, sh1 = _bn_scale_shift(st1, g1, be1, count)

    # ---- stage 2: conv2 over relu(bn1(y1)), fused in-kernel (+ BN2 stats) ----
    y1_pad = jnp.pad(y1.reshape(N, D, H, W, cout_p),
                     ((0, 0), (1, 1), (1, 1), (1, 1), (0, 0)))
    in_specs2 = [
        pl.BlockSpec((1, 1, H + 2, W + 2, cout_p), lambda n, d, k: (n, d + k, 0, 0, 0)),
        pl.BlockSpec((1, 9 * cout_p, cout_p), lambda n, d, k: (k, 0, 0)),
        pl.BlockSpec((1, cout_p), lambda n, d, k: (0, 0)),
        pl.BlockSpec((1, cout_p), lambda n, d, k: (0, 0)),
        pl.BlockSpec((1, cout_p), lambda n, d, k: (0, 0)),
    ]
    y2, st2 = _conv_stage(functools.partial(_conv2_kernel, H=H, W=W, D=D),
                          (y1_pad, w2, b2, sc1, sh1), in_specs2, N, D, HW, cout_p)
    sc2, sh2 = _bn_scale_shift(st2, g2, be2, count)

    # ---- stage 3: bn2 + shortcut + relu --------------------------------------
    x_res = x_cl.reshape(N, D, HW, cin_p)
    common_specs = [
        pl.BlockSpec((1, 1, HW, cout_p), lambda n, d: (n, d, 0, 0)),   # y2
        pl.BlockSpec((1, cout_p), lambda n, d: (0, 0)),                # scale2
        pl.BlockSpec((1, cout_p), lambda n, d: (0, 0)),                # shift2
    ]
    if params.get("wsc") is not None:
        wsc = params["wsc"].reshape(Cout, Cin).T
        wsc = jnp.pad(wsc, ((0, cin_p - Cin), (0, cout_p - Cout))).astype(jnp.bfloat16)
        bsc = _pad_vec(params["bsc"], cout_p)
        kernel3 = _bn_add_relu_proj_kernel
        inputs3 = (y2, sc2, sh2, x_res, wsc, bsc)
        in_specs3 = common_specs + [
            pl.BlockSpec((1, 1, HW, cin_p), lambda n, d: (n, d, 0, 0)),
            pl.BlockSpec((cin_p, cout_p), lambda n, d: (0, 0)),
            pl.BlockSpec((1, cout_p), lambda n, d: (0, 0)),
        ]
    else:
        kernel3 = _bn_add_relu_id_kernel
        inputs3 = (y2, sc2, sh2, x_res)
        in_specs3 = common_specs + [
            pl.BlockSpec((1, 1, HW, cout_p), lambda n, d: (n, d, 0, 0)),
        ]

    out = pl.pallas_call(
        kernel3,
        grid=(N, D),
        in_specs=in_specs3,
        out_specs=pl.BlockSpec((1, 1, HW, cout_p), lambda n, d: (n, d, 0, 0)),
        out_shape=jax.ShapeDtypeStruct((N, D, HW, cout_p), jnp.float32),
        compiler_params=pltpu.CompilerParams(
            dimension_semantics=("parallel", "parallel"),
            vmem_limit_bytes=_VMEM_LIMIT),
    )(*inputs3)

    out = out.reshape(N, D, H, W, cout_p)[..., :Cout]
    return jnp.transpose(out, (0, 4, 1, 2, 3))            # back to NCDHW


# -----------------------------------------------------------------------------
# Pure-JAX reference (mirrors the PyTorch forward, training-mode BN, f32 HIGHEST)
# -----------------------------------------------------------------------------
def _reference(x, params):
    def conv3d(x, w, b, pad):
        y = jax.lax.conv_general_dilated(
            x, w, (1, 1, 1), [(pad, pad)] * 3,
            dimension_numbers=("NCDHW", "OIDHW", "NCDHW"), precision=_HI)
        return y + b[None, :, None, None, None]

    def bn(x, g, beta):
        mean = jnp.mean(x, axis=(0, 2, 3, 4), keepdims=True)
        var = jnp.mean((x - mean) ** 2, axis=(0, 2, 3, 4), keepdims=True)
        xn = (x - mean) * jax.lax.rsqrt(var + EPS)
        return xn * g[None, :, None, None, None] + beta[None, :, None, None, None]

    if params["wsc"] is not None:
        residual = conv3d(x, params["wsc"], params["bsc"], 0)
    else:
        residual = x
    out = jax.nn.relu(bn(conv3d(x, params["w1"], params["b1"], 1),
                         params["g1"], params["beta1"]))
    out = bn(conv3d(out, params["w2"], params["b2"], 1),
             params["g2"], params["beta2"])
    return jax.nn.relu(out + residual)


def make_params(in_channels, out_channels, key):
    ks = jax.random.split(key, 6)
    p = {
        "w1": 0.1 * jax.random.normal(ks[0], (out_channels, in_channels, 3, 3, 3), jnp.float32),
        "b1": 0.1 * jax.random.normal(ks[1], (out_channels,), jnp.float32),
        "w2": 0.1 * jax.random.normal(ks[2], (out_channels, out_channels, 3, 3, 3), jnp.float32),
        "b2": 0.1 * jax.random.normal(ks[3], (out_channels,), jnp.float32),
        "g1": jnp.ones((out_channels,), jnp.float32),      # BN default init
        "beta1": jnp.zeros((out_channels,), jnp.float32),
        "g2": jnp.ones((out_channels,), jnp.float32),
        "beta2": jnp.zeros((out_channels,), jnp.float32),
    }
    if in_channels != out_channels:
        p["wsc"] = 0.1 * jax.random.normal(ks[4], (out_channels, in_channels, 1, 1, 1), jnp.float32)
        p["bsc"] = 0.1 * jax.random.normal(ks[5], (out_channels,), jnp.float32)
    else:
        p["wsc"] = None
        p["bsc"] = None
    return p


if __name__ == "__main__":
    # Case 1: projection shortcut (Cin != Cout)
    N, Cin, Cout, D, H, W = 2, 4, 8, 8, 8, 8
    x = jax.random.normal(jax.random.PRNGKey(0), (N, Cin, D, H, W), jnp.float32)
    params = make_params(Cin, Cout, jax.random.PRNGKey(42))

    out = jax.block_until_ready(residual_block_forward(x, params))
    assert out.shape == (N, Cout, D, H, W), out.shape
    ref = jax.block_until_ready(_reference(x, params))
    err = float(jnp.max(jnp.abs(out - ref)))
    # bf16 MXU operands across two chained convs -> ~1e-2-level abs error on
    # BN-normalized O(1) outputs (reference is f32 HIGHEST).
    assert err < 5e-2, f"projection-shortcut max abs err {err}"

    # Case 2: identity shortcut (Cin == Cout) exercises the no-matmul path.
    x2 = jax.random.normal(jax.random.PRNGKey(1), (1, 8, 8, 8, 8), jnp.float32)
    params2 = make_params(8, 8, jax.random.PRNGKey(7))
    out2 = jax.block_until_ready(residual_block_forward(x2, params2))
    ref2 = jax.block_until_ready(_reference(x2, params2))
    err2 = float(jnp.max(jnp.abs(out2 - ref2)))
    assert err2 < 5e-2, f"identity-shortcut max abs err {err2}"

    print("KERNEL_OK")
</pallas_src>

<mosaic_0001>
module attributes {stable_mosaic.version = 11 : i64} {
  func.func @_conv1_kernel(%arg0: i32, %arg1: i32, %arg2: i32, %arg3: memref<1x1x10x10x128xf32, #tpu.memory_space<vmem>>, %arg4: memref<1x1152x128xbf16, #tpu.memory_space<vmem>>, %arg5: memref<1x128xf32, #tpu.memory_space<vmem>>, %arg6: memref<1x1x64x128xf32, #tpu.memory_space<vmem>>, %arg7: memref<1x1x2x128xf32, #tpu.memory_space<vmem>>, %arg8: memref<64x128xf32, #tpu.memory_space<vmem>>) attributes {dimension_semantics = [#tpu.dimension_semantics<parallel>, #tpu.dimension_semantics<parallel>, #tpu.dimension_semantics<arbitrary>], iteration_bounds = array<i64: 2, 8, 3>, scalar_prefetch = 0 : i64, scratch_operands = 1 : i64, tpu.core_type = #tpu.core_type<tc>, window_params = [{transform_indices = @transform_0, window_bounds = array<i64: 1, 1, 10, 10, 128>}, {transform_indices = @transform_1, window_bounds = array<i64: 1, 1152, 128>}, {pipeline_mode = #tpu.pipeline_mode<synchronous>, transform_indices = @transform_2, window_bounds = array<i64: 1, 128>}, {transform_indices = @transform_3, window_bounds = array<i64: 1, 1, 64, 128>}, {transform_indices = @transform_4, window_bounds = array<i64: 1, 1, 2, 128>}]} {
    %c0_i32 = arith.constant 0 : i32
    %0 = arith.cmpi eq, %arg2, %c0_i32 : i32
    %1 = arith.extui %0 : i1 to i32
    %c0_i32_0 = arith.constant 0 : i32
    %2 = arith.cmpi ne, %1, %c0_i32_0 : i32
    scf.if %2 {
      %cst = arith.constant 0.000000e+00 : f32
      %12 = vector.broadcast %cst : f32 to vector<64x128xf32>
      %c0 = arith.constant 0 : index
      %c0_3 = arith.constant 0 : index
      %13 = vector.load %arg8[%c0, %c0_3] : memref<64x128xf32, #tpu.memory_space<vmem>>, vector<64x128xf32>
      tpu.vector_store %arg8[%c0, %c0_3], %12 {strides = array<i32>} : memref<64x128xf32, #tpu.memory_space<vmem>>, vector<64x128xf32>,
    } else {
    }
    %3 = arith.addi %arg1, %arg2 : i32
    %c1_i32 = arith.constant 1 : i32
    %4 = arith.cmpi sge, %3, %c1_i32 : i32
    %c8_i32 = arith.constant 8 : i32
    %5 = arith.cmpi sle, %3, %c8_i32 : i32
    %6 = arith.andi %4, %5 : i1
    %7 = arith.extui %6 : i1 to i32
    %c0_i32_1 = arith.constant 0 : i32
    %8 = arith.cmpi ne, %7, %c0_i32_1 : i32
    scf.if %8 {
      %c0 = arith.constant 0 : index
      %c0_3 = arith.constant 0 : index
      %c0_4 = arith.constant 0 : index
      %c0_5 = arith.constant 0 : index
      %c0_6 = arith.constant 0 : index
      %12 = vector.load %arg3[%c0, %c0_3, %c0_4, %c0_5, %c0_6] : memref<1x1x10x10x128xf32, #tpu.memory_space<vmem>>, vector<1x1x10x10x128xf32>
      %13 = vector.shape_cast %12 : vector<1x1x10x10x128xf32> to vector<10x10x128xf32>
      %14 = vector.extract_strided_slice %13 {offsets = [0, 0, 0], sizes = [8, 8, 128], strides = [1, 1, 1]} : vector<10x10x128xf32> to vector<8x8x128xf32>
      %15 = vector.shape_cast %14 : vector<8x8x128xf32> to vector<64x128xf32>
      %16 = vector.extract_strided_slice %13 {offsets = [0, 1, 0], sizes = [8, 8, 128], strides = [1, 1, 1]} : vector<10x10x128xf32> to vector<8x8x128xf32>
      %17 = vector.shape_cast %16 : vector<8x8x128xf32> to vector<64x128xf32>
      %18 = vector.extract_strided_slice %13 {offsets = [0, 2, 0], sizes = [8, 8, 128], strides = [1, 1, 1]} : vector<10x10x128xf32> to vector<8x8x128xf32>
      %19 = vector.shape_cast %18 : vector<8x8x128xf32> to vector<64x128xf32>
      %20 = vector.extract_strided_slice %13 {offsets = [1, 0, 0], sizes = [8, 8, 128], strides = [1, 1, 1]} : vector<10x10x128xf32> to vector<8x8x128xf32>
      %21 = vector.shape_cast %20 : vector<8x8x128xf32> to vector<64x128xf32>
      %22 = vector.extract_strided_slice %13 {offsets = [1, 1, 0], sizes = [8, 8, 128], strides = [1, 1, 1]} : vector<10x10x128xf32> to vector<8x8x128xf32>
      %23 = vector.shape_cast %22 : vector<8x8x128xf32> to vector<64x128xf32>
      %24 = vector.extract_strided_slice %13 {offsets = [1, 2, 0], sizes = [8, 8, 128], strides = [1, 1, 1]} : vector<10x10x128xf32> to vector<8x8x128xf32>
      %25 = vector.shape_cast %24 : vector<8x8x128xf32> to vector<64x128xf32>
      %26 = vector.extract_strided_slice %13 {offsets = [2, 0, 0], sizes = [8, 8, 128], strides = [1, 1, 1]} : vector<10x10x128xf32> to vector<8x8x128xf32>
      %27 = vector.shape_cast %26 : vector<8x8x128xf32> to vector<64x128xf32>
      %28 = vector.extract_strided_slice %13 {offsets = [2, 1, 0], sizes = [8, 8, 128], strides = [1, 1, 1]} : vector<10x10x128xf32> to vector<8x8x128xf32>
      %29 = vector.shape_cast %28 : vector<8x8x128xf32> to vector<64x128xf32>
      %30 = vector.extract_strided_slice %13 {offsets = [2, 2, 0], sizes = [8, 8, 128], strides = [1, 1, 1]} : vector<10x10x128xf32> to vector<8x8x128xf32>
      %31 = vector.shape_cast %30 : vector<8x8x128xf32> to vector<64x128xf32>
      %32 = tpu.concatenate %15, %17, %19, %21, %23, %25, %27, %29, %31 in 1 : vector<64x128xf32>, vector<64x128xf32>, vector<64x128xf32>, vector<64x128xf32>, vector<64x128xf32>, vector<64x128xf32>, vector<64x128xf32>, vector<64x128xf32>, vector<64x128xf32> -> vector<64x1152xf32>
      %33 = arith.truncf %32 : vector<64x1152xf32> to vector<64x1152xbf16>
      %c0_7 = arith.constant 0 : index
      %c0_8 = arith.constant 0 : index
      %34 = vector.load %arg8[%c0_7, %c0_8] : memref<64x128xf32, #tpu.memory_space<vmem>>, vector<64x128xf32>
      %c0_9 = arith.constant 0 : index
      %c0_10 = arith.constant 0 : index
      %c0_11 = arith.constant 0 : index
      %35 = vector.load %arg4[%c0_9, %c0_10, %c0_11] : memref<1x1152x128xbf16, #tpu.memory_space<vmem>>, vector<1x1152x128xbf16>
      %36 = vector.shape_cast %35 : vector<1x1152x128xbf16> to vector<1152x128xbf16>
      %cst = arith.constant dense<0.000000e+00> : vector<64x128xf32>
      %37 = tpu.matmul %33, %36, %cst {dimension_numbers = #tpu.dot_dimension_numbers<[1], [0], [0], [1], [0, 0, 1, 1], [], []>} : vector<64x1152xbf16>, vector<1152x128xbf16>, vector<64x128xf32> -> vector<64x128xf32>
      %38 = arith.addf %34, %37 : vector<64x128xf32>
      %c0_12 = arith.constant 0 : index
      %c0_13 = arith.constant 0 : index
      %39 = vector.load %arg8[%c0_12, %c0_13] : memref<64x128xf32, #tpu.memory_space<vmem>>, vector<64x128xf32>
      tpu.vector_store %arg8[%c0_12, %c0_13], %38 {strides = array<i32>} : memref<64x128xf32, #tpu.memory_space<vmem>>, vector<64x128xf32>,
    } else {
    }
    %c2_i32 = arith.constant 2 : i32
    %9 = arith.cmpi eq, %arg2, %c2_i32 : i32
    %10 = arith.extui %9 : i1 to i32
    %c0_i32_2 = arith.constant 0 : i32
    %11 = arith.cmpi ne, %10, %c0_i32_2 : i32
    scf.if %11 {
      %c0 = arith.constant 0 : index
      %c0_3 = arith.constant 0 : index
      %12 = vector.load %arg8[%c0, %c0_3] : memref<64x128xf32, #tpu.memory_space<vmem>>, vector<64x128xf32>
      %c0_4 = arith.constant 0 : index
      %c0_5 = arith.constant 0 : index
      %13 = vector.load %arg5[%c0_4, %c0_5] : memref<1x128xf32, #tpu.memory_space<vmem>>, vector<1x128xf32>
      %14 = vector.broadcast %13 : vector<1x128xf32> to vector<64x128xf32>
      %15 = arith.addf %12, %14 : vector<64x128xf32>
      %c0_6 = arith.constant 0 : index
      %c0_7 = arith.constant 0 : index
      %c0_8 = arith.constant 0 : index
      %c0_9 = arith.constant 0 : index
      %16 = vector.load %arg6[%c0_6, %c0_7, %c0_8, %c0_9] : memref<1x1x64x128xf32, #tpu.memory_space<vmem>>, vector<1x1x64x128xf32>
      %17 = vector.shape_cast %16 : vector<1x1x64x128xf32> to vector<64x128xf32>
      %18 = vector.shape_cast %15 : vector<64x128xf32> to vector<1x1x64x128xf32>
      tpu.vector_store %arg6[%c0_6, %c0_7, %c0_8, %c0_9], %18 {strides = array<i32>} : memref<1x1x64x128xf32, #tpu.memory_space<vmem>>, vector<1x1x64x128xf32>,
      %cst = arith.constant dense<0.000000e+00> : vector<128xf32>
      %19 = vector.multi_reduction <add>, %15, %cst [0] : vector<64x128xf32> to vector<128xf32>
      %20 = vector.shape_cast %19 : vector<128xf32> to vector<1x128xf32>
      %21 = arith.mulf %15, %15 : vector<64x128xf32>
      %cst_10 = arith.constant dense<0.000000e+00> : vector<128xf32>
      %22 = vector.multi_reduction <add>, %21, %cst_10 [0] : vector<64x128xf32> to vector<128xf32>
      %23 = vector.shape_cast %22 : vector<128xf32> to vector<1x128xf32>
      %24 = tpu.concatenate %20, %23 in 0 : vector<1x128xf32>, vector<1x128xf32> -> vector<2x128xf32>
      %c0_11 = arith.constant 0 : index
      %c0_12 = arith.constant 0 : index
      %c0_13 = arith.constant 0 : index
      %c0_14 = arith.constant 0 : index
      %25 = vector.load %arg7[%c0_11, %c0_12, %c0_13, %c0_14] : memref<1x1x2x128xf32, #tpu.memory_space<vmem>>, vector<1x1x2x128xf32>
      %26 = vector.shape_cast %25 : vector<1x1x2x128xf32> to vector<2x128xf32>
      %27 = vector.shape_cast %24 : vector<2x128xf32> to vector<1x1x2x128xf32>
      tpu.vector_store %arg7[%c0_11, %c0_12, %c0_13, %c0_14], %27 {strides = array<i32>} : memref<1x1x2x128xf32, #tpu.memory_space<vmem>>, vector<1x1x2x128xf32>,
    } else {
    }
    return
  }
  func.func @transform_0(%arg0: i32, %arg1: i32, %arg2: i32) -> (i32, i32, i32, i32, i32) {
    %0 = arith.addi %arg1, %arg2 : i32
    %c0_i32 = arith.constant 0 : i32
    %c0_i32_0 = arith.constant 0 : i32
    %c0_i32_1 = arith.constant 0 : i32
    %c0_i32_2 = arith.constant 0 : i32
    return %arg0, %0, %c0_i32, %c0_i32_0, %c0_i32_1 : i32, i32, i32, i32, i32
  }
  func.func @transform_1(%arg0: i32, %arg1: i32, %arg2: i32) -> (i32, i32, i32) {
    %c0_i32 = arith.constant 0 : i32
    %c0_i32_0 = arith.constant 0 : i32
    %c0_i32_1 = arith.constant 0 : i32
    return %arg2, %c0_i32, %c0_i32_0 : i32, i32, i32
  }
  func.func @transform_2(%arg0: i32, %arg1: i32, %arg2: i32) -> (i32, i32) {
    %c0_i32 = arith.constant 0 : i32
    %c0_i32_0 = arith.constant 0 : i32
    %c0_i32_1 = arith.constant 0 : i32
    return %c0_i32, %c0_i32_0 : i32, i32
  }
  func.func @transform_3(%arg0: i32, %arg1: i32, %arg2: i32) -> (i32, i32, i32, i32) {
    %c0_i32 = arith.constant 0 : i32
    %c0_i32_0 = arith.constant 0 : i32
    %c0_i32_1 = arith.constant 0 : i32
    return %arg0, %arg1, %c0_i32, %c0_i32_0 : i32, i32, i32, i32
  }
  func.func @transform_4(%arg0: i32, %arg1: i32, %arg2: i32) -> (i32, i32, i32, i32) {
    %c0_i32 = arith.constant 0 : i32
    %c0_i32_0 = arith.constant 0 : i32
    %c0_i32_1 = arith.constant 0 : i32
    return %arg0, %arg1, %c0_i32, %c0_i32_0 : i32, i32, i32, i32
  }
}

module attributes {stable_mosaic.version = 11 : i64} {
  func.func @_conv2_kernel(%arg0: i32, %arg1: i32, %arg2: i32, %arg3: memref<1x1x10x10x128xf32, #tpu.memory_space<vmem>>, %arg4: memref<1x1152x128xbf16, #tpu.memory_space<vmem>>, %arg5: memref<1x128xf32, #tpu.memory_space<vmem>>, %arg6: memref<1x128xf32, #tpu.memory_space<vmem>>, %arg7: memref<1x128xf32, #tpu.memory_space<vmem>>, %arg8: memref<1x1x64x128xf32, #tpu.memory_space<vmem>>, %arg9: memref<1x1x2x128xf32, #tpu.memory_space<vmem>>, %arg10: memref<64x128xf32, #tpu.memory_space<vmem>>) attributes {dimension_semantics = [#tpu.dimension_semantics<parallel>, #tpu.dimension_semantics<parallel>, #tpu.dimension_semantics<arbitrary>], iteration_bounds = array<i64: 2, 8, 3>, scalar_prefetch = 0 : i64, scratch_operands = 1 : i64, tpu.core_type = #tpu.core_type<tc>, window_params = [{transform_indices = @transform_0, window_bounds = array<i64: 1, 1, 10, 10, 128>}, {transform_indices = @transform_1, window_bounds = array<i64: 1, 1152, 128>}, {pipeline_mode = #tpu.pipeline_mode<synchronous>, transform_indices = @transform_2, window_bounds = array<i64: 1, 128>}, {pipeline_mode = #tpu.pipeline_mode<synchronous>, transform_indices = @transform_3, window_bounds = array<i64: 1, 128>}, {pipeline_mode = #tpu.pipeline_mode<synchronous>, transform_indices = @transform_4, window_bounds = array<i64: 1, 128>}, {transform_indices = @transform_5, window_bounds = array<i64: 1, 1, 64, 128>}, {transform_indices = @transform_6, window_bounds = array<i64: 1, 1, 2, 128>}]} {
    %c0_i32 = arith.constant 0 : i32
    %0 = arith.cmpi eq, %arg2, %c0_i32 : i32
    %1 = arith.extui %0 : i1 to i32
    %c0_i32_0 = arith.constant 0 : i32
    %2 = arith.cmpi ne, %1, %c0_i32_0 : i32
    scf.if %2 {
      %cst = arith.constant 0.000000e+00 : f32
      %12 = vector.broadcast %cst : f32 to vector<64x128xf32>
      %c0 = arith.constant 0 : index
      %c0_3 = arith.constant 0 : index
      %13 = vector.load %arg10[%c0, %c0_3] : memref<64x128xf32, #tpu.memory_space<vmem>>, vector<64x128xf32>
      tpu.vector_store %arg10[%c0, %c0_3], %12 {strides = array<i32>} : memref<64x128xf32, #tpu.memory_space<vmem>>, vector<64x128xf32>,
    } else {
    }
    %3 = arith.addi %arg1, %arg2 : i32
    %c1_i32 = arith.constant 1 : i32
    %4 = arith.cmpi sge, %3, %c1_i32 : i32
    %c8_i32 = arith.constant 8 : i32
    %5 = arith.cmpi sle, %3, %c8_i32 : i32
    %6 = arith.andi %4, %5 : i1
    %7 = arith.extui %6 : i1 to i32
    %c0_i32_1 = arith.constant 0 : i32
    %8 = arith.cmpi ne, %7, %c0_i32_1 : i32
    scf.if %8 {
      %c0 = arith.constant 0 : index
      %c0_3 = arith.constant 0 : index
      %c0_4 = arith.constant 0 : index
      %c0_5 = arith.constant 0 : index
      %c0_6 = arith.constant 0 : index
      %12 = vector.load %arg3[%c0, %c0_3, %c0_4, %c0_5, %c0_6] : memref<1x1x10x10x128xf32, #tpu.memory_space<vmem>>, vector<1x1x10x10x128xf32>
      %13 = vector.shape_cast %12 : vector<1x1x10x10x128xf32> to vector<10x10x128xf32>
      %c0_7 = arith.constant 0 : index
      %c0_8 = arith.constant 0 : index
      %14 = vector.load %arg6[%c0_7, %c0_8] : memref<1x128xf32, #tpu.memory_space<vmem>>, vector<1x128xf32>
      %15 = vector.shape_cast %14 : vector<1x128xf32> to vector<1x1x128xf32>
      %16 = vector.broadcast %15 : vector<1x1x128xf32> to vector<10x10x128xf32>
      %17 = arith.mulf %13, %16 : vector<10x10x128xf32>
      %c0_9 = arith.constant 0 : index
      %c0_10 = arith.constant 0 : index
      %18 = vector.load %arg7[%c0_9, %c0_10] : memref<1x128xf32, #tpu.memory_space<vmem>>, vector<1x128xf32>
      %19 = vector.shape_cast %18 : vector<1x128xf32> to vector<1x1x128xf32>
      %20 = vector.broadcast %19 : vector<1x1x128xf32> to vector<10x10x128xf32>
      %21 = arith.addf %17, %20 : vector<10x10x128xf32>
      %cst = arith.constant 0.000000e+00 : f32
      %22 = vector.broadcast %cst : f32 to vector<10x10x128xf32>
      %23 = arith.maximumf %21, %22 : vector<10x10x128xf32>
      %24 = tpu.iota {dimensions = array<i32: 0>} : vector<10x10x128xi32>
      %25 = tpu.iota {dimensions = array<i32: 1>} : vector<10x10x128xi32>
      %c1_i32_11 = arith.constant 1 : i32
      %26 = vector.broadcast %c1_i32_11 : i32 to vector<10x10x128xi32>
      %27 = arith.cmpi sge, %24, %26 : vector<10x10x128xi32>
      %c8_i32_12 = arith.constant 8 : i32
      %28 = vector.broadcast %c8_i32_12 : i32 to vector<10x10x128xi32>
      %29 = arith.cmpi sle, %24, %28 : vector<10x10x128xi32>
      %30 = arith.andi %27, %29 : vector<10x10x128xi1>
      %c1_i32_13 = arith.constant 1 : i32
      %31 = vector.broadcast %c1_i32_13 : i32 to vector<10x10x128xi32>
      %32 = arith.cmpi sge, %25, %31 : vector<10x10x128xi32>
      %33 = arith.andi %30, %32 : vector<10x10x128xi1>
      %c8_i32_14 = arith.constant 8 : i32
      %34 = vector.broadcast %c8_i32_14 : i32 to vector<10x10x128xi32>
      %35 = arith.cmpi sle, %25, %34 : vector<10x10x128xi32>
      %36 = arith.andi %33, %35 : vector<10x10x128xi1>
      %cst_15 = arith.constant 0.000000e+00 : f32
      %37 = vector.broadcast %cst_15 : f32 to vector<10x10x128xf32>
      %38 = arith.select %36, %23, %37 : vector<10x10x128xi1>, vector<10x10x128xf32>
      %39 = vector.extract_strided_slice %38 {offsets = [0, 0, 0], sizes = [8, 8, 128], strides = [1, 1, 1]} : vector<10x10x128xf32> to vector<8x8x128xf32>
      %40 = vector.shape_cast %39 : vector<8x8x128xf32> to vector<64x128xf32>
      %41 = vector.extract_strided_slice %38 {offsets = [0, 1, 0], sizes = [8, 8, 128], strides = [1, 1, 1]} : vector<10x10x128xf32> to vector<8x8x128xf32>
      %42 = vector.shape_cast %41 : vector<8x8x128xf32> to vector<64x128xf32>
      %43 = vector.extract_strided_slice %38 {offsets = [0, 2, 0], sizes = [8, 8, 128], strides = [1, 1, 1]} : vector<10x10x128xf32> to vector<8x8x128xf32>
      %44 = vector.shape_cast %43 : vector<8x8x128xf32> to vector<64x128xf32>
      %45 = vector.extract_strided_slice %38 {offsets = [1, 0, 0], sizes = [8, 8, 128], strides = [1, 1, 1]} : vector<10x10x128xf32> to vector<8x8x128xf32>
      %46 = vector.shape_cast %45 : vector<8x8x128xf32> to vector<64x128xf32>
      %47 = vector.extract_strided_slice %38 {offsets = [1, 1, 0], sizes = [8, 8, 128], strides = [1, 1, 1]} : vector<10x10x128xf32> to vector<8x8x128xf32>
      %48 = vector.shape_cast %47 : vector<8x8x128xf32> to vector<64x128xf32>
      %49 = vector.extract_strided_slice %38 {offsets = [1, 2, 0], sizes = [8, 8, 128], strides = [1, 1, 1]} : vector<10x10x128xf32> to vector<8x8x128xf32>
      %50 = vector.shape_cast %49 : vector<8x8x128xf32> to vector<64x128xf32>
      %51 = vector.extract_strided_slice %38 {offsets = [2, 0, 0], sizes = [8, 8, 128], strides = [1, 1, 1]} : vector<10x10x128xf32> to vector<8x8x128xf32>
      %52 = vector.shape_cast %51 : vector<8x8x128xf32> to vector<64x128xf32>
      %53 = vector.extract_strided_slice %38 {offsets = [2, 1, 0], sizes = [8, 8, 128], strides = [1, 1, 1]} : vector<10x10x128xf32> to vector<8x8x128xf32>
      %54 = vector.shape_cast %53 : vector<8x8x128xf32> to vector<64x128xf32>
      %55 = vector.extract_strided_slice %38 {offsets = [2, 2, 0], sizes = [8, 8, 128], strides = [1, 1, 1]} : vector<10x10x128xf32> to vector<8x8x128xf32>
      %56 = vector.shape_cast %55 : vector<8x8x128xf32> to vector<64x128xf32>
      %57 = tpu.concatenate %40, %42, %44, %46, %48, %50, %52, %54, %56 in 1 : vector<64x128xf32>, vector<64x128xf32>, vector<64x128xf32>, vector<64x128xf32>, vector<64x128xf32>, vector<64x128xf32>, vector<64x128xf32>, vector<64x128xf32>, vector<64x128xf32> -> vector<64x1152xf32>
      %58 = arith.truncf %57 : vector<64x1152xf32> to vector<64x1152xbf16>
      %c0_16 = arith.constant 0 : index
      %c0_17 = arith.constant 0 : index
      %59 = vector.load %arg10[%c0_16, %c0_17] : memref<64x128xf32, #tpu.memory_space<vmem>>, vector<64x128xf32>
      %c0_18 = arith.constant 0 : index
      %c0_19 = arith.constant 0 : index
      %c0_20 = arith.constant 0 : index
      %60 = vector.load %arg4[%c0_18, %c0_19, %c0_20] : memref<1x1152x128xbf16, #tpu.memory_space<vmem>>, vector<1x1152x128xbf16>
      %61 = vector.shape_cast %60 : vector<1x1152x128xbf16> to vector<1152x128xbf16>
      %cst_21 = arith.constant dense<0.000000e+00> : vector<64x128xf32>
      %62 = tpu.matmul %58, %61, %cst_21 {dimension_numbers = #tpu.dot_dimension_numbers<[1], [0], [0], [1], [0, 0, 1, 1], [], []>} : vector<64x1152xbf16>, vector<1152x128xbf16>, vector<64x128xf32> -> vector<64x128xf32>
      %63 = arith.addf %59, %62 : vector<64x128xf32>
      %c0_22 = arith.constant 0 : index
      %c0_23 = arith.constant 0 : index
      %64 = vector.load %arg10[%c0_22, %c0_23] : memref<64x128xf32, #tpu.memory_space<vmem>>, vector<64x128xf32>
      tpu.vector_store %arg10[%c0_22, %c0_23], %63 {strides = array<i32>} : memref<64x128xf32, #tpu.memory_space<vmem>>, vector<64x128xf32>,
    } else {
    }
    %c2_i32 = arith.constant 2 : i32
    %9 = arith.cmpi eq, %arg2, %c2_i32 : i32
    %10 = arith.extui %9 : i1 to i32
    %c0_i32_2 = arith.constant 0 : i32
    %11 = arith.cmpi ne, %10, %c0_i32_2 : i32
    scf.if %11 {
      %c0 = arith.constant 0 : index
      %c0_3 = arith.constant 0 : index
      %12 = vector.load %arg10[%c0, %c0_3] : memref<64x128xf32, #tpu.memory_space<vmem>>, vector<64x128xf32>
      %c0_4 = arith.constant 0 : index
      %c0_5 = arith.constant 0 : index
      %13 = vector.load %arg5[%c0_4, %c0_5] : memref<1x128xf32, #tpu.memory_space<vmem>>, vector<1x128xf32>
      %14 = vector.broadcast %13 : vector<1x128xf32> to vector<64x128xf32>
      %15 = arith.addf %12, %14 : vector<64x128xf32>
      %c0_6 = arith.constant 0 : index
      %c0_7 = arith.constant 0 : index
      %c0_8 = arith.constant 0 : index
      %c0_9 = arith.constant 0 : index
      %16 = vector.load %arg8[%c0_6, %c0_7, %c0_8, %c0_9] : memref<1x1x64x128xf32, #tpu.memory_space<vmem>>, vector<1x1x64x128xf32>
      %17 = vector.shape_cast %16 : vector<1x1x64x128xf32> to vector<64x128xf32>
      %18 = vector.shape_cast %15 : vector<64x128xf32> to vector<1x1x64x128xf32>
      tpu.vector_store %arg8[%c0_6, %c0_7, %c0_8, %c0_9], %18 {strides = array<i32>} : memref<1x1x64x128xf32, #tpu.memory_space<vmem>>, vector<1x1x64x128xf32>,
      %cst = arith.constant dense<0.000000e+00> : vector<128xf32>
      %19 = vector.multi_reduction <add>, %15, %cst [0] : vector<64x128xf32> to vector<128xf32>
      %20 = vector.shape_cast %19 : vector<128xf32> to vector<1x128xf32>
      %21 = arith.mulf %15, %15 : vector<64x128xf32>
      %cst_10 = arith.constant dense<0.000000e+00> : vector<128xf32>
      %22 = vector.multi_reduction <add>, %21, %cst_10 [0] : vector<64x128xf32> to vector<128xf32>
      %23 = vector.shape_cast %22 : vector<128xf32> to vector<1x128xf32>
      %24 = tpu.concatenate %20, %23 in 0 : vector<1x128xf32>, vector<1x128xf32> -> vector<2x128xf32>
      %c0_11 = arith.constant 0 : index
      %c0_12 = arith.constant 0 : index
      %c0_13 = arith.constant 0 : index
      %c0_14 = arith.constant 0 : index
      %25 = vector.load %arg9[%c0_11, %c0_12, %c0_13, %c0_14] : memref<1x1x2x128xf32, #tpu.memory_space<vmem>>, vector<1x1x2x128xf32>
      %26 = vector.shape_cast %25 : vector<1x1x2x128xf32> to vector<2x128xf32>
      %27 = vector.shape_cast %24 : vector<2x128xf32> to vector<1x1x2x128xf32>
      tpu.vector_store %arg9[%c0_11, %c0_12, %c0_13, %c0_14], %27 {strides = array<i32>} : memref<1x1x2x128xf32, #tpu.memory_space<vmem>>, vector<1x1x2x128xf32>,
    } else {
    }
    return
  }
  func.func @transform_0(%arg0: i32, %arg1: i32, %arg2: i32) -> (i32, i32, i32, i32, i32) {
    %0 = arith.addi %arg1, %arg2 : i32
    %c0_i32 = arith.constant 0 : i32
    %c0_i32_0 = arith.constant 0 : i32
    %c0_i32_1 = arith.constant 0 : i32
    %c0_i32_2 = arith.constant 0 : i32
    return %arg0, %0, %c0_i32, %c0_i32_0, %c0_i32_1 : i32, i32, i32, i32, i32
  }
  func.func @transform_1(%arg0: i32, %arg1: i32, %arg2: i32) -> (i32, i32, i32) {
    %c0_i32 = arith.constant 0 : i32
    %c0_i32_0 = arith.constant 0 : i32
    %c0_i32_1 = arith.constant 0 : i32
    return %arg2, %c0_i32, %c0_i32_0 : i32, i32, i32
  }
  func.func @transform_2(%arg0: i32, %arg1: i32, %arg2: i32) -> (i32, i32) {
    %c0_i32 = arith.constant 0 : i32
    %c0_i32_0 = arith.constant 0 : i32
    %c0_i32_1 = arith.constant 0 : i32
    return %c0_i32, %c0_i32_0 : i32, i32
  }
  func.func @transform_3(%arg0: i32, %arg1: i32, %arg2: i32) -> (i32, i32) {
    %c0_i32 = arith.constant 0 : i32
    %c0_i32_0 = arith.constant 0 : i32
    %c0_i32_1 = arith.constant 0 : i32
    return %c0_i32, %c0_i32_0 : i32, i32
  }
  func.func @transform_4(%arg0: i32, %arg1: i32, %arg2: i32) -> (i32, i32) {
    %c0_i32 = arith.constant 0 : i32
    %c0_i32_0 = arith.constant 0 : i32
    %c0_i32_1 = arith.constant 0 : i32
    return %c0_i32, %c0_i32_0 : i32, i32
  }
  func.func @transform_5(%arg0: i32, %arg1: i32, %arg2: i32) -> (i32, i32, i32, i32) {
    %c0_i32 = arith.constant 0 : i32
    %c0_i32_0 = arith.constant 0 : i32
    %c0_i32_1 = arith.constant 0 : i32
    return %arg0, %arg1, %c0_i32, %c0_i32_0 : i32, i32, i32, i32
  }
  func.func @transform_6(%arg0: i32, %arg1: i32, %arg2: i32) -> (i32, i32, i32, i32) {
    %c0_i32 = arith.constant 0 : i32
    %c0_i32_0 = arith.constant 0 : i32
    %c0_i32_1 = arith.constant 0 : i32
    return %arg0, %arg1, %c0_i32, %c0_i32_0 : i32, i32, i32, i32
  }
}

module attributes {stable_mosaic.version = 11 : i64} {
  func.func @_bn_add_relu_proj_kernel(%arg0: i32, %arg1: i32, %arg2: memref<1x1x64x128xf32, #tpu.memory_space<vmem>>, %arg3: memref<1x128xf32, #tpu.memory_space<vmem>>, %arg4: memref<1x128xf32, #tpu.memory_space<vmem>>, %arg5: memref<1x1x64x128xf32, #tpu.memory_space<vmem>>, %arg6: memref<128x128xbf16, #tpu.memory_space<vmem>>, %arg7: memref<1x128xf32, #tpu.memory_space<vmem>>, %arg8: memref<1x1x64x128xf32, #tpu.memory_space<vmem>>) attributes {dimension_semantics = [#tpu.dimension_semantics<parallel>, #tpu.dimension_semantics<parallel>], iteration_bounds = array<i64: 2, 8>, scalar_prefetch = 0 : i64, scratch_operands = 0 : i64, tpu.core_type = #tpu.core_type<tc>, window_params = [{transform_indices = @transform_0, window_bounds = array<i64: 1, 1, 64, 128>}, {pipeline_mode = #tpu.pipeline_mode<synchronous>, transform_indices = @transform_1, window_bounds = array<i64: 1, 128>}, {pipeline_mode = #tpu.pipeline_mode<synchronous>, transform_indices = @transform_2, window_bounds = array<i64: 1, 128>}, {transform_indices = @transform_3, window_bounds = array<i64: 1, 1, 64, 128>}, {pipeline_mode = #tpu.pipeline_mode<synchronous>, transform_indices = @transform_4, window_bounds = array<i64: 128, 128>}, {pipeline_mode = #tpu.pipeline_mode<synchronous>, transform_indices = @transform_5, window_bounds = array<i64: 1, 128>}, {transform_indices = @transform_6, window_bounds = array<i64: 1, 1, 64, 128>}]} {
    %c0 = arith.constant 0 : index
    %c0_0 = arith.constant 0 : index
    %c0_1 = arith.constant 0 : index
    %c0_2 = arith.constant 0 : index
    %0 = vector.load %arg2[%c0, %c0_0, %c0_1, %c0_2] : memref<1x1x64x128xf32, #tpu.memory_space<vmem>>, vector<1x1x64x128xf32>
    %1 = vector.shape_cast %0 : vector<1x1x64x128xf32> to vector<64x128xf32>
    %c0_3 = arith.constant 0 : index
    %c0_4 = arith.constant 0 : index
    %2 = vector.load %arg3[%c0_3, %c0_4] : memref<1x128xf32, #tpu.memory_space<vmem>>, vector<1x128xf32>
    %3 = vector.broadcast %2 : vector<1x128xf32> to vector<64x128xf32>
    %4 = arith.mulf %1, %3 : vector<64x128xf32>
    %c0_5 = arith.constant 0 : index
    %c0_6 = arith.constant 0 : index
    %5 = vector.load %arg4[%c0_5, %c0_6] : memref<1x128xf32, #tpu.memory_space<vmem>>, vector<1x128xf32>
    %6 = vector.broadcast %5 : vector<1x128xf32> to vector<64x128xf32>
    %7 = arith.addf %4, %6 : vector<64x128xf32>
    %c0_7 = arith.constant 0 : index
    %c0_8 = arith.constant 0 : index
    %c0_9 = arith.constant 0 : index
    %c0_10 = arith.constant 0 : index
    %8 = vector.load %arg5[%c0_7, %c0_8, %c0_9, %c0_10] : memref<1x1x64x128xf32, #tpu.memory_space<vmem>>, vector<1x1x64x128xf32>
    %9 = vector.shape_cast %8 : vector<1x1x64x128xf32> to vector<64x128xf32>
    %10 = arith.truncf %9 : vector<64x128xf32> to vector<64x128xbf16>
    %c0_11 = arith.constant 0 : index
    %c0_12 = arith.constant 0 : index
    %11 = vector.load %arg6[%c0_11, %c0_12] : memref<128x128xbf16, #tpu.memory_space<vmem>>, vector<128x128xbf16>
    %cst = arith.constant dense<0.000000e+00> : vector<64x128xf32>
    %12 = tpu.matmul %10, %11, %cst {dimension_numbers = #tpu.dot_dimension_numbers<[1], [0], [0], [1], [0, 0, 1, 1], [], []>} : vector<64x128xbf16>, vector<128x128xbf16>, vector<64x128xf32> -> vector<64x128xf32>
    %c0_13 = arith.constant 0 : index
    %c0_14 = arith.constant 0 : index
    %13 = vector.load %arg7[%c0_13, %c0_14] : memref<1x128xf32, #tpu.memory_space<vmem>>, vector<1x128xf32>
    %14 = vector.broadcast %13 : vector<1x128xf32> to vector<64x128xf32>
    %15 = arith.addf %12, %14 : vector<64x128xf32>
    %16 = arith.addf %7, %15 : vector<64x128xf32>
    %cst_15 = arith.constant 0.000000e+00 : f32
    %17 = vector.broadcast %cst_15 : f32 to vector<64x128xf32>
    %18 = arith.maximumf %16, %17 : vector<64x128xf32>
    %c0_16 = arith.constant 0 : index
    %c0_17 = arith.constant 0 : index
    %c0_18 = arith.constant 0 : index
    %c0_19 = arith.constant 0 : index
    %19 = vector.load %arg8[%c0_16, %c0_17, %c0_18, %c0_19] : memref<1x1x64x128xf32, #tpu.memory_space<vmem>>, vector<1x1x64x128xf32>
    %20 = vector.shape_cast %19 : vector<1x1x64x128xf32> to vector<64x128xf32>
    %21 = vector.shape_cast %18 : vector<64x128xf32> to vector<1x1x64x128xf32>
    tpu.vector_store %arg8[%c0_16, %c0_17, %c0_18, %c0_19], %21 {strides = array<i32>} : memref<1x1x64x128xf32, #tpu.memory_space<vmem>>, vector<1x1x64x128xf32>,
    return
  }
  func.func @transform_0(%arg0: i32, %arg1: i32) -> (i32, i32, i32, i32) {
    %c0_i32 = arith.constant 0 : i32
    %c0_i32_0 = arith.constant 0 : i32
    %c0_i32_1 = arith.constant 0 : i32
    return %arg0, %arg1, %c0_i32, %c0_i32_0 : i32, i32, i32, i32
  }
  func.func @transform_1(%arg0: i32, %arg1: i32) -> (i32, i32) {
    %c0_i32 = arith.constant 0 : i32
    %c0_i32_0 = arith.constant 0 : i32
    %c0_i32_1 = arith.constant 0 : i32
    return %c0_i32, %c0_i32_0 : i32, i32
  }
  func.func @transform_2(%arg0: i32, %arg1: i32) -> (i32, i32) {
    %c0_i32 = arith.constant 0 : i32
    %c0_i32_0 = arith.constant 0 : i32
    %c0_i32_1 = arith.constant 0 : i32
    return %c0_i32, %c0_i32_0 : i32, i32
  }
  func.func @transform_3(%arg0: i32, %arg1: i32) -> (i32, i32, i32, i32) {
    %c0_i32 = arith.constant 0 : i32
    %c0_i32_0 = arith.constant 0 : i32
    %c0_i32_1 = arith.constant 0 : i32
    return %arg0, %arg1, %c0_i32, %c0_i32_0 : i32, i32, i32, i32
  }
  func.func @transform_4(%arg0: i32, %arg1: i32) -> (i32, i32) {
    %c0_i32 = arith.constant 0 : i32
    %c0_i32_0 = arith.constant 0 : i32
    %c0_i32_1 = arith.constant 0 : i32
    return %c0_i32, %c0_i32_0 : i32, i32
  }
  func.func @transform_5(%arg0: i32, %arg1: i32) -> (i32, i32) {
    %c0_i32 = arith.constant 0 : i32
    %c0_i32_0 = arith.constant 0 : i32
    %c0_i32_1 = arith.constant 0 : i32
    return %c0_i32, %c0_i32_0 : i32, i32
  }
  func.func @transform_6(%arg0: i32, %arg1: i32) -> (i32, i32, i32, i32) {
    %c0_i32 = arith.constant 0 : i32
    %c0_i32_0 = arith.constant 0 : i32
    %c0_i32_1 = arith.constant 0 : i32
    return %arg0, %arg1, %c0_i32, %c0_i32_0 : i32, i32, i32, i32
  }
}

</mosaic_0001>

<llo_original>
// kernel: residual_block_forward.3
$region0: #{residual_block_forward.3}
  #allocation0 [shape = 'u32[]', space=smem, size = 0x4, offset = 0x4, fixed_abs, tag = 'smem constant byte address 0x4 - core index']
  #allocation1 [shape = 'u32[144,128]{1,0:T(1,128)}', space=vmem, size = 0x12000, scoped, tag = 'internal scratch']
  #allocation2 [shape = 'f32[64,128]{1,0:T(8,128)}', space=vmem, size = 0x8000, scoped, tag = 'scratch operand']
  %s0 = inlined_call_operand.vmem [shape: f32[2,10,10,10,128], index: 0, kind: input, shape index: {}]
  %s1 = inlined_call_operand.vmem [shape: bf16[3,1152,128], index: 1, kind: input, shape index: {}]
  %s2 = inlined_call_operand.vmem [shape: f32[1,128], index: 2, kind: input, shape index: {}]
  %s3 = inlined_call_operand.vmem [shape: f32[2,8,64,128], index: 3, kind: output, shape index: {0}]
  %s4 = inlined_call_operand.vmem [shape: f32[2,8,2,128], index: 4, kind: output, shape index: {1}]
  %5 = xla_tuple %s3, %s4
  %s6 = sld [smem:[#allocation0]]
  $region65: #{residual_block_forward.3} parent=0
    _
  %s8 = ssub.s32 1, %s6
  %s9 = scalar_select 0, %s8, %s6
  loop: start=0, step=1, limit=50
  $region2: #{residual_block_forward.3} parent=0 // loop_pre_header
    _
  $region3: #{residual_block_forward.3} parent=0 // loop_header
    %s11 = sphi 0, %s15
    %p12 = scmp.ge.s32.totalorder %s11, 50
    %s18 = sphi 0, %s37
    %s19 = sphi 0, %s33
    %s20 = sphi 0, %s29
    %s21 = sphi 0, %s18
    %s22 = sphi 0, %s19
    %s23 = sphi 0, %s20
    %s24 = sphi 0, %s21
    %s25 = sphi 0, %s22
    %s26 = sphi 0, %s23
    %s44 = sphi 0, %s46
    %s47 = sphi 0, %s44
    %s48 = sphi 0, %s47
    %s64 = sphi 0, %s48
    %s70 = sphi 0, %s72
    %s73 = sphi 0, %s70
    %s74 = sphi 0, %s73
    %s90 = sphi 0, %s74
    %s94 = sphi 0, %s94
    %s96 = sphi 0, %s94
    %s97 = sphi 0, %s96
    %s111 = sphi 0, %s97
    %s119 = sphi 0, %s121
    %s122 = sphi 0, %s119
    %s123 = sphi 0, %s122
    %s139 = sphi 0, %s123
    %s147 = sphi 0, %s149
    %s150 = sphi 0, %s147
    %s151 = sphi 0, %s150
    %s167 = sphi 0, %s151
  $region4: #{residual_block_forward.3} parent=0 // loop_header_branch
    %14 = sbr.rel (%p12) target = $region8
  $region5: #{residual_block_forward.3} parent=0 // loop_body
    %s16 = ssub.s32 %s11, 1
    %s17 = ssub.s32 %s11, 2
    %s27 = sadd.s32 1, %s20
    %p28 = scmp.ge.s32.totalorder %s27, 3
    %s29 = scalar_select %p28, 0, %s27
    %s30 = sadd.s32 1, %s19
    %s31 = scalar_select %p28, %s30, %s19
    %p32 = scmp.ge.s32.totalorder %s31, 8
    %s33 = scalar_select %p32, 0, %s31
    %s34 = sadd.s32 1, %s18
    %s35 = scalar_select %p32, %s34, %s18
    %p36 = scmp.ge.s32.totalorder %s35, 2
    %s37 = scalar_select %p36, 0, %s35
    %s38 = sadd.s32 %s19, %s20
    %s39 = sadd.s32 %s33, %s29
    %s40 = ssub.s32 %s18, %s37
    %s41 = ssub.s32 %s38, %s39
    %s42 = sor.u32 %s40, %s41
    %p43 = scmp.eq.s32.totalorder %s42, 0
    %s45 = sadd.s32 %s44, 1
    %s46 = scalar_select %p43, %s44, %s45
    %p49 = pneg %p43
    %p50 = scmp.eq.s32.totalorder %s11, 47
    %p51 = por %p49, %p50
    %p52 = scmp.ne.s32.totalorder %s44, %s47
    %p53 = scmp.eq.s32.totalorder %s11, 0
    %p54 = por %p52, %p53
    %p55 = scmp.ne.s32.totalorder %s44, %s47
    %p56 = scmp.eq.s32.totalorder %s16, 47
    %p57 = por %p55, %p56
    %p58 = scmp.ne.s32.totalorder %s47, %s48
    %p59 = scmp.eq.s32.totalorder %s16, 0
    %p60 = por %p58, %p59
    %p61 = scmp.ne.s32.totalorder %s47, %s48
    %p62 = scmp.eq.s32.totalorder %s17, 47
    %p63 = por %p61, %p62
    %p65 = scmp.ne.s32.totalorder %s48, %s64
    %p66 = scmp.eq.s32.totalorder %s17, 0
    %p67 = por %p65, %p66
    %s68 = ssub.s32 %s20, %s29
    %p69 = scmp.eq.s32.totalorder %s68, 0
    %s71 = sadd.s32 %s70, 1
    %s72 = scalar_select %p69, %s70, %s71
    %p75 = pneg %p69
    %p76 = scmp.eq.s32.totalorder %s11, 47
    %p77 = por %p75, %p76
    %p78 = scmp.ne.s32.totalorder %s70, %s73
    %p79 = scmp.eq.s32.totalorder %s11, 0
    %p80 = por %p78, %p79
    %p81 = scmp.ne.s32.totalorder %s70, %s73
    %p82 = scmp.eq.s32.totalorder %s16, 47
    %p83 = por %p81, %p82
    %p84 = scmp.ne.s32.totalorder %s73, %s74
    %p85 = scmp.eq.s32.totalorder %s16, 0
    %p86 = por %p84, %p85
    %p87 = scmp.ne.s32.totalorder %s73, %s74
    %p88 = scmp.eq.s32.totalorder %s17, 47
    %p89 = por %p87, %p88
    %p91 = scmp.ne.s32.totalorder %s74, %s90
    %p92 = scmp.eq.s32.totalorder %s17, 0
    %p93 = por %p91, %p92
    %s95 = sadd.s32 %s94, 1
    %p98 = scmp.eq.s32.totalorder %s11, 47
    %p99 = scmp.ne.s32.totalorder %s94, %s96
    %p100 = scmp.eq.s32.totalorder %s11, 0
    %p101 = por %p99, %p100
    %p102 = scmp.ne.s32.totalorder %s94, %s96
    %p103 = scmp.eq.s32.totalorder %s16, 47
    %p104 = por %p102, %p103
    %p105 = scmp.ne.s32.totalorder %s96, %s97
    %p106 = scmp.eq.s32.totalorder %s16, 0
    %p107 = por %p105, %p106
    %p108 = scmp.ne.s32.totalorder %s96, %s97
    %p109 = scmp.eq.s32.totalorder %s17, 47
    %p110 = por %p108, %p109
    %p112 = scmp.ne.s32.totalorder %s97, %s111
    %p113 = scmp.eq.s32.totalorder %s17, 0
    %p114 = por %p112, %p113
    %s115 = ssub.s32 %s18, %s37
    %s116 = ssub.s32 %s19, %s33
    %s117 = sor.u32 %s115, %s116
    %p118 = scmp.eq.s32.totalorder %s117, 0
    %s120 = sadd.s32 %s119, 1
    %s121 = scalar_select %p118, %s119, %s120
    %p124 = pneg %p118
    %p125 = scmp.eq.s32.totalorder %s11, 47
    %p126 = por %p124, %p125
    %p127 = scmp.ne.s32.totalorder %s119, %s122
    %p128 = scmp.eq.s32.totalorder %s11, 0
    %p129 = por %p127, %p128
    %p130 = scmp.ne.s32.totalorder %s119, %s122
    %p131 = scmp.eq.s32.totalorder %s16, 47
    %p132 = por %p130, %p131
    %p133 = scmp.ne.s32.totalorder %s122, %s123
    %p134 = scmp.eq.s32.totalorder %s16, 0
    %p135 = por %p133, %p134
    %p136 = scmp.ne.s32.totalorder %s122, %s123
    %p137 = scmp.eq.s32.totalorder %s17, 47
    %p138 = por %p136, %p137
    %p140 = scmp.ne.s32.totalorder %s123, %s139
    %p141 = scmp.eq.s32.totalorder %s17, 0
    %p142 = por %p140, %p141
    %s143 = ssub.s32 %s18, %s37
    %s144 = ssub.s32 %s19, %s33
    %s145 = sor.u32 %s143, %s144
    %p146 = scmp.eq.s32.totalorder %s145, 0
    %s148 = sadd.s32 %s147, 1
    %s149 = scalar_select %p146, %s147, %s148
    %p152 = pneg %p146
    %p153 = scmp.eq.s32.totalorder %s11, 47
    %p154 = por %p152, %p153
    %p155 = scmp.ne.s32.totalorder %s147, %s150
    %p156 = scmp.eq.s32.totalorder %s11, 0
    %p157 = por %p155, %p156
    %p158 = scmp.ne.s32.totalorder %s147, %s150
    %p159 = scmp.eq.s32.totalorder %s16, 47
    %p160 = por %p158, %p159
    %p161 = scmp.ne.s32.totalorder %s150, %s151
    %p162 = scmp.eq.s32.totalorder %s16, 0
    %p163 = por %p161, %p162
    %p164 = scmp.ne.s32.totalorder %s150, %s151
    %p165 = scmp.eq.s32.totalorder %s17, 47
    %p166 = por %p164, %p165
    %p168 = scmp.ne.s32.totalorder %s151, %s167
    %p169 = scmp.eq.s32.totalorder %s17, 0
    %p170 = por %p168, %p169
    %p171 = scmp.le.s32.totalorder 1, %s11
    %p172 = scmp.lt.s32.totalorder %s11, 49
    %p173 = pnand %p171, %p172
    %p174 = pneg %p173
    // Predicated region
    $region9: #{residual_block_forward.3} parent=5 // pred_check
      _
    $region10: #{residual_block_forward.3} parent=5 // pred_check_branch
      %176 = sbr.rel (%p173) target = $region12
    $region11: #{residual_block_forward.3} parent=5 // pred_region
      %s177 = ssub.s32 %s11, 1
      // Predicated region
      $region13: #{residual_block_forward.3} parent=11 // pred_check
        %p178 = pneg %p107
      $region14: #{residual_block_forward.3} parent=11 // pred_check_branch
        %180 = sbr.rel (%p178) target = $region16
      $region15: #{residual_block_forward.3} parent=11 // pred_region
        _
      $region16: #{residual_block_forward.3} parent=11 // pred_fallthru
        _
    $region12: #{residual_block_forward.3} parent=5 // pred_fallthru
      _
    %p181 = scmp.lt.s32.totalorder %s11, 48
    // Predicated region
    $region17: #{residual_block_forward.3} parent=5 // pred_check
      %p182 = pneg %p181
    $region18: #{residual_block_forward.3} parent=5 // pred_check_branch
      %184 = sbr.rel (%p182) target = $region20
    $region19: #{residual_block_forward.3} parent=5 // pred_region
      // Predicated region
      $region21: #{residual_block_forward.3} parent=19 // pred_check
        %p185 = pneg %p54
      $region22: #{residual_block_forward.3} parent=19 // pred_check_branch
        %187 = sbr.rel (%p185) target = $region24
      $region23: #{residual_block_forward.3} parent=19 // pred_region
        %s188 = sadd.s32 %s19, %s20
        %p189 = scmp.lt.s32.totalorder %s18, 1
        %s190 = scalar_select %p189, %s18, 1
        %p191 = scmp.lt.s32.totalorder %s188, 9
        %s192 = scalar_select %p191, %s188, 9
        %s193 = smul.addr %s192, 20
        %s194 = smul.addr %s190, 200
        %s195 = sadd.s32 %s193, %s194
        %s196 = smul.addr %s195, 8
        %s197 = scalar_lea.vmem %s0, %s196
        %s198 = sadd.s32 %s19, %s20
      $region24: #{residual_block_forward.3} parent=19 // pred_fallthru
        _
      // Predicated region
      $region25: #{residual_block_forward.3} parent=19 // pred_check
        %p199 = pneg %p80
      $region26: #{residual_block_forward.3} parent=19 // pred_check_branch
        %201 = sbr.rel (%p199) target = $region28
      $region27: #{residual_block_forward.3} parent=19 // pred_region
        %p202 = scmp.lt.s32.totalorder %s20, 2
        %s203 = scalar_select %p202, %s20, 2
        %s204 = smul.addr %s203, 144
        %s205 = smul.addr %s204, 4
        %s206 = scalar_lea.vmem %s1, %s205
      $region28: #{residual_block_forward.3} parent=19 // pred_fallthru
        _
    $region20: #{residual_block_forward.3} parent=5 // pred_fallthru
      _
    %p207 = scmp.le.s32.totalorder 1, %s11
    %p208 = scmp.lt.s32.totalorder %s11, 49
    %p209 = pnand %p207, %p208
    %p210 = pneg %p209
    // Predicated region
    $region29: #{residual_block_forward.3} parent=5 // pred_check
      _
    $region30: #{residual_block_forward.3} parent=5 // pred_check_branch
      %212 = sbr.rel (%p209) target = $region32
    $region31: #{residual_block_forward.3} parent=5 // pred_region
      %s213 = ssub.s32 %s11, 1
      %s214 = sadd.s32 %s22, %s23
      %p215 = scmp.lt.s32.totalorder %s21, 1
      %s216 = scalar_select %p215, %s21, 1
      %p217 = scmp.lt.s32.totalorder %s214, 9
      %s218 = scalar_select %p217, %s214, 9
      %s219 = smul.addr %s218, 20
      %s220 = smul.addr %s216, 200
      %s221 = sadd.s32 %s219, %s220
      %s222 = smul.addr %s221, 8
      %s223 = scalar_lea.vmem %s0, %s222
      %p224 = pneg %p60
      %p225 = pneg %p57
      %p226 = scmp.lt.s32.totalorder %s23, 2
      %s227 = scalar_select %p226, %s23, 2
      %s228 = smul.addr %s227, 144
      %s229 = smul.addr %s228, 4
      %s230 = scalar_lea.vmem %s1, %s229
      %p231 = pneg %p86
      %p232 = pneg %p83
      %p233 = pneg %p107
      %p234 = pneg %p104
      %p235 = pneg %p135
      %p236 = pneg %p132
      %p237 = scmp.lt.s32.totalorder %s21, 1
      %s238 = scalar_select %p237, %s21, 1
      %p239 = scmp.lt.s32.totalorder %s22, 7
      %s240 = scalar_select %p239, %s22, 7
      %s241 = smul.addr %s240, 8
      %s242 = smul.addr %s238, 64
      %s243 = sadd.s32 %s241, %s242
      %s244 = smul.addr %s243, 8
      %s245 = scalar_lea.vmem %s3, %s244
      %p246 = pneg %p163
      %p247 = pneg %p160
      %p248 = scmp.lt.s32.totalorder %s21, 1
      %s249 = scalar_select %p248, %s21, 1
      %p250 = scmp.lt.s32.totalorder %s22, 7
      %s251 = scalar_select %p250, %s22, 7
      %s252 = smul.addr %s249, 8
      %s253 = sadd.s32 %s251, %s252
      %s254 = smul.addr %s253, 2
      %s255 = scalar_lea.vmem %s4, %s254
      %s256 = sadd.s32 %s22, %s23
      %p257 = scmp.lt.s32.totalorder %s21, 1
      %s258 = scalar_select %p257, %s21, 1
      %p259 = scmp.lt.s32.totalorder %s256, 9
      %s260 = scalar_select %p259, %s256, 9
      %s261 = smul.addr %s260, 20
      %s262 = smul.addr %s258, 200
      %s263 = sadd.s32 %s261, %s262
      %s264 = smul.addr %s263, 8
      %s265 = scalar_lea.vmem %s0, %s264
      %s266 = sadd.s32 %s22, %s23
      %p267 = scmp.lt.s32.totalorder %s23, 2
      %s268 = scalar_select %p267, %s23, 2
      %s269 = smul.addr %s268, 144
      %s270 = smul.addr %s269, 4
      %s271 = scalar_lea.vmem %s1, %s270
      %p272 = scmp.lt.s32.totalorder %s21, 1
      %s273 = scalar_select %p272, %s21, 1
      %p274 = scmp.lt.s32.totalorder %s22, 7
      %s275 = scalar_select %p274, %s22, 7
      %s276 = smul.addr %s275, 8
      %s277 = smul.addr %s273, 64
      %s278 = sadd.s32 %s276, %s277
      %s279 = smul.addr %s278, 8
      %s280 = scalar_lea.vmem %s3, %s279
      %p281 = scmp.lt.s32.totalorder %s21, 1
      %s282 = scalar_select %p281, %s21, 1
      %p283 = scmp.lt.s32.totalorder %s22, 7
      %s284 = scalar_select %p283, %s22, 7
      %s285 = smul.addr %s282, 8
      %s286 = sadd.s32 %s284, %s285
      %s287 = smul.addr %s286, 2
      %s288 = scalar_lea.vmem %s4, %s287
      %p290 = scmp.eq.s32.totalorder %s23, 0
      // Predicated region
      $region33: #{residual_block_forward.3} parent=31 // pred_check
        %p291 = pneg %p290
      $region34: #{residual_block_forward.3} parent=31 // pred_check_branch
        %293 = sbr.rel (%p291) target = $region36
      $region35: #{residual_block_forward.3} parent=31 // pred_region
        %294 = vst [vmem:[#allocation2] sm:$0xff] 0.0
        %295 = vst [vmem:[#allocation2 + $0x8] sm:$0xff] 0.0
        %296 = vst [vmem:[#allocation2 + $0x10] sm:$0xff] 0.0
        %297 = vst [vmem:[#allocation2 + $0x18] sm:$0xff] 0.0
        %298 = vst [vmem:[#allocation2 + $0x20] sm:$0xff] 0.0
        %299 = vst [vmem:[#allocation2 + $0x28] sm:$0xff] 0.0
        %300 = vst [vmem:[#allocation2 + $0x30] sm:$0xff] 0.0
        %301 = vst [vmem:[#allocation2 + $0x38] sm:$0xff] 0.0
      $region36: #{residual_block_forward.3} parent=31 // pred_fallthru
        _
      %s302 = sadd.s32 %s22, %s23
      %p303 = scmp.ge.s32.totalorder %s302, 1
      %p304 = scmp.le.s32.totalorder %s302, 8
      %p305 = pnand %p303, %p304
      %p306 = pneg %p305
      // Predicated region
      $region37: #{residual_block_forward.3} parent=31 // pred_check
        _
      $region38: #{residual_block_forward.3} parent=31 // pred_check_branch
        %308 = sbr.rel (%p305) target = $region40
      $region39: #{residual_block_forward.3} parent=31 // pred_region
        %v309 = vld [vmem:[%s265] sm:$0xff]
        %v310 = vld [vmem:[%s265 + $0x8] sm:$0x3]
        %v311 = vld [vmem:[%s265 + $0x10] sm:$0xff]
        %v312 = vld [vmem:[%s265 + $0x18] sm:$0x3]
        %v313 = vld [vmem:[%s265 + $0x20] sm:$0xff]
        %v314 = vld [vmem:[%s265 + $0x28] sm:$0x3]
        %v315 = vld [vmem:[%s265 + $0x30] sm:$0xff]
        %v316 = vld [vmem:[%s265 + $0x38] sm:$0x3]
        %v317 = vld [vmem:[%s265 + $0x40] sm:$0xff]
        %v318 = vld [vmem:[%s265 + $0x48] sm:$0x3]
        %v319 = vld [vmem:[%s265 + $0x50] sm:$0xff]
        %v320 = vld [vmem:[%s265 + $0x58] sm:$0x3]
        %v321 = vld [vmem:[%s265 + $0x60] sm:$0xff]
        %v322 = vld [vmem:[%s265 + $0x68] sm:$0x3]
        %v323 = vld [vmem:[%s265 + $0x70] sm:$0xff]
        %v324 = vld [vmem:[%s265 + $0x78] sm:$0x3]
        %v325 = vld [vmem:[%s265 + $0x80] sm:$0xff]
        %v326 = vld [vmem:[%s265 + $0x88] sm:$0x3]
        %v327 = vld [vmem:[%s265 + $0x90] sm:$0xff]
        %v328 = vld [vmem:[%s265 + $0x98] sm:$0x3]
        %vm345 = vcmask 1046528
        %v346 = vrot.slane %v309, 1
        %v347 = vrot.slane %v310, 1
        %v348 = vsel %vm345, %v346, %v347
        %v349 = vrot.slane %v311, 1
        %v350 = vrot.slane %v312, 1
        %v351 = vsel %vm345, %v349, %v350
        %v352 = vrot.slane %v313, 1
        %v353 = vrot.slane %v314, 1
        %v354 = vsel %vm345, %v352, %v353
        %v355 = vrot.slane %v315, 1
        %v356 = vrot.slane %v316, 1
        %v357 = vsel %vm345, %v355, %v356
        %v358 = vrot.slane %v317, 1
        %v359 = vrot.slane %v318, 1
        %v360 = vsel %vm345, %v358, %v359
        %v361 = vrot.slane %v319, 1
        %v362 = vrot.slane %v320, 1
        %v363 = vsel %vm345, %v361, %v362
        %v364 = vrot.slane %v321, 1
        %v365 = vrot.slane %v322, 1
        %v366 = vsel %vm345, %v364, %v365
        %v367 = vrot.slane %v323, 1
        %v368 = vrot.slane %v324, 1
        %v369 = vsel %vm345, %v367, %v368
        %vm378 = vcmask 1045504
        %v379 = vrot.slane %v309, 2
        %v380 = vrot.slane %v310, 2
        %v381 = vsel %vm378, %v379, %v380
        %v382 = vrot.slane %v311, 2
        %v383 = vrot.slane %v312, 2
        %v384 = vsel %vm378, %v382, %v383
        %v385 = vrot.slane %v313, 2
        %v386 = vrot.slane %v314, 2
        %v387 = vsel %vm378, %v385, %v386
        %v388 = vrot.slane %v315, 2
        %v389 = vrot.slane %v316, 2
        %v390 = vsel %vm378, %v388, %v389
        %v391 = vrot.slane %v317, 2
        %v392 = vrot.slane %v318, 2
        %v393 = vsel %vm378, %v391, %v392
        %v394 = vrot.slane %v319, 2
        %v395 = vrot.slane %v320, 2
        %v396 = vsel %vm378, %v394, %v395
        %v397 = vrot.slane %v321, 2
        %v398 = vrot.slane %v322, 2
        %v399 = vsel %vm378, %v397, %v398
        %v400 = vrot.slane %v323, 2
        %v401 = vrot.slane %v324, 2
        %v402 = vsel %vm378, %v400, %v401
        %v413 = vrot.slane %v325, 1
        %v414 = vrot.slane %v326, 1
        %v415 = vsel %vm345, %v413, %v414
        %v417 = vrot.slane %v325, 2
        %v418 = vrot.slane %v326, 2
        %v419 = vsel %vm378, %v417, %v418
        %v423 = vrot.slane %v327, 1
        %v424 = vrot.slane %v328, 1
        %v425 = vsel %vm345, %v423, %v424
        %v427 = vrot.slane %v327, 2
        %v428 = vrot.slane %v328, 2
        %v429 = vsel %vm378, %v427, %v428
        %v431 = vpack.c.bf16 %v311, %v309
        %v432 = vpack.c.bf16 %v351, %v348
        %v433 = vpack.c.bf16 %v384, %v381
        %v434 = vpack.c.bf16 %v313, %v311
        %v435 = vpack.c.bf16 %v354, %v351
        %v436 = vpack.c.bf16 %v387, %v384
        %v437 = vpack.c.bf16 %v315, %v313
        %v438 = vpack.c.bf16 %v357, %v354
        %v439 = vpack.c.bf16 %v390, %v387
        %v440 = vpack.c.bf16 %v317, %v315
        %v441 = vpack.c.bf16 %v360, %v357
        %v442 = vpack.c.bf16 %v393, %v390
        %v443 = vpack.c.bf16 %v319, %v317
        %v444 = vpack.c.bf16 %v363, %v360
        %v445 = vpack.c.bf16 %v396, %v393
        %v446 = vpack.c.bf16 %v321, %v319
        %v447 = vpack.c.bf16 %v366, %v363
        %v448 = vpack.c.bf16 %v399, %v396
        %v449 = vpack.c.bf16 %v323, %v321
        %v450 = vpack.c.bf16 %v369, %v366
        %v451 = vpack.c.bf16 %v402, %v399
        %v452 = vpack.c.bf16 %v325, %v323
        %v453 = vpack.c.bf16 %v415, %v369
        %v454 = vpack.c.bf16 %v419, %v402
        %v455 = vpack.c.bf16 %v327, %v325
        %v456 = vpack.c.bf16 %v425, %v415
        %v457 = vpack.c.bf16 %v429, %v419
        %v458 = vld [vmem:[#allocation2] sm:$0xff]
        %v459 = vld [vmem:[#allocation2 + $0x8] sm:$0xff]
        %v460 = vld [vmem:[#allocation2 + $0x10] sm:$0xff]
        %v461 = vld [vmem:[#allocation2 + $0x18] sm:$0xff]
        %v462 = vld [vmem:[#allocation2 + $0x20] sm:$0xff]
        %v463 = vld [vmem:[#allocation2 + $0x28] sm:$0xff]
        %v464 = vld [vmem:[#allocation2 + $0x30] sm:$0xff]
        %v465 = vld [vmem:[#allocation2 + $0x38] sm:$0xff]
        %v466 = vld [vmem:[%s271] sm:$0xf]
        %v467 = vld [vmem:[%s271 + $0x4] sm:$0xf]
        %v468 = vld [vmem:[%s271 + $0x8] sm:$0xf]
        %v469 = vld [vmem:[%s271 + $0xc] sm:$0xf]
        %v470 = vld [vmem:[%s271 + $0x10] sm:$0xf]
        %v471 = vld [vmem:[%s271 + $0x14] sm:$0xf]
        %v472 = vld [vmem:[%s271 + $0x18] sm:$0xf]
        %v473 = vld [vmem:[%s271 + $0x1c] sm:$0xf]
        %v474 = vld [vmem:[%s271 + $0x20] sm:$0xf]
        %v475 = vld [vmem:[%s271 + $0x24] sm:$0xf]
        %v476 = vld [vmem:[%s271 + $0x28] sm:$0xf]
        %v477 = vld [vmem:[%s271 + $0x2c] sm:$0xf]
        %v478 = vld [vmem:[%s271 + $0x30] sm:$0xf]
        %v479 = vld [vmem:[%s271 + $0x34] sm:$0xf]
        %v480 = vld [vmem:[%s271 + $0x38] sm:$0xf]
        %v481 = vld [vmem:[%s271 + $0x3c] sm:$0xf]
        %v482 = vld [vmem:[%s271 + $0x40] sm:$0xf]
        %v483 = vld [vmem:[%s271 + $0x44] sm:$0xf]
        %v484 = vld [vmem:[%s271 + $0x48] sm:$0xf]
        %v485 = vld [vmem:[%s271 + $0x4c] sm:$0xf]
        %v486 = vld [vmem:[%s271 + $0x50] sm:$0xf]
        %v487 = vld [vmem:[%s271 + $0x54] sm:$0xf]
        %v488 = vld [vmem:[%s271 + $0x58] sm:$0xf]
        %v489 = vld [vmem:[%s271 + $0x5c] sm:$0xf]
        %v490 = vld [vmem:[%s271 + $0x60] sm:$0xf]
        %v491 = vld [vmem:[%s271 + $0x64] sm:$0xf]
        %v492 = vld [vmem:[%s271 + $0x68] sm:$0xf]
        %v493 = vld [vmem:[%s271 + $0x6c] sm:$0xf]
        %v494 = vld [vmem:[%s271 + $0x70] sm:$0xf]
        %v495 = vld [vmem:[%s271 + $0x74] sm:$0xf]
        %v496 = vld [vmem:[%s271 + $0x78] sm:$0xf]
        %v497 = vld [vmem:[%s271 + $0x7c] sm:$0xf]
        %v498 = vld [vmem:[%s271 + $0x80] sm:$0xf]
        %v499 = vld [vmem:[%s271 + $0x84] sm:$0xf]
        %v500 = vld [vmem:[%s271 + $0x88] sm:$0xf]
        %v501 = vld [vmem:[%s271 + $0x8c] sm:$0xf]
        %v502 = vld [vmem:[%s271 + $0x90] sm:$0xf]
        %v503 = vld [vmem:[%s271 + $0x94] sm:$0xf]
        %v504 = vld [vmem:[%s271 + $0x98] sm:$0xf]
        %v505 = vld [vmem:[%s271 + $0x9c] sm:$0xf]
        %v506 = vld [vmem:[%s271 + $0xa0] sm:$0xf]
        %v507 = vld [vmem:[%s271 + $0xa4] sm:$0xf]
        %v508 = vld [vmem:[%s271 + $0xa8] sm:$0xf]
        %v509 = vld [vmem:[%s271 + $0xac] sm:$0xf]
        %v510 = vld [vmem:[%s271 + $0xb0] sm:$0xf]
        %v511 = vld [vmem:[%s271 + $0xb4] sm:$0xf]
        %v512 = vld [vmem:[%s271 + $0xb8] sm:$0xf]
        %v513 = vld [vmem:[%s271 + $0xbc] sm:$0xf]
        %v514 = vld [vmem:[%s271 + $0xc0] sm:$0xf]
        %v515 = vld [vmem:[%s271 + $0xc4] sm:$0xf]
        %v516 = vld [vmem:[%s271 + $0xc8] sm:$0xf]
        %v517 = vld [vmem:[%s271 + $0xcc] sm:$0xf]
        %v518 = vld [vmem:[%s271 + $0xd0] sm:$0xf]
        %v519 = vld [vmem:[%s271 + $0xd4] sm:$0xf]
        %v520 = vld [vmem:[%s271 + $0xd8] sm:$0xf]
        %v521 = vld [vmem:[%s271 + $0xdc] sm:$0xf]
        %v522 = vld [vmem:[%s271 + $0xe0] sm:$0xf]
        %v523 = vld [vmem:[%s271 + $0xe4] sm:$0xf]
        %v524 = vld [vmem:[%s271 + $0xe8] sm:$0xf]
        %v525 = vld [vmem:[%s271 + $0xec] sm:$0xf]
        %v526 = vld [vmem:[%s271 + $0xf0] sm:$0xf]
        %v527 = vld [vmem:[%s271 + $0xf4] sm:$0xf]
        %v528 = vld [vmem:[%s271 + $0xf8] sm:$0xf]
        %v529 = vld [vmem:[%s271 + $0xfc] sm:$0xf]
        %v530 = vld [vmem:[%s271 + $0x100] sm:$0xf]
        %v531 = vld [vmem:[%s271 + $0x104] sm:$0xf]
        %v532 = vld [vmem:[%s271 + $0x108] sm:$0xf]
        %v533 = vld [vmem:[%s271 + $0x10c] sm:$0xf]
        %v534 = vld [vmem:[%s271 + $0x110] sm:$0xf]
        %v535 = vld [vmem:[%s271 + $0x114] sm:$0xf]
        %v536 = vld [vmem:[%s271 + $0x118] sm:$0xf]
        %v537 = vld [vmem:[%s271 + $0x11c] sm:$0xf]
        %v538 = vld [vmem:[%s271 + $0x120] sm:$0xf]
        %v539 = vld [vmem:[%s271 + $0x124] sm:$0xf]
        %v540 = vld [vmem:[%s271 + $0x128] sm:$0xf]
        %v541 = vld [vmem:[%s271 + $0x12c] sm:$0xf]
        %v542 = vld [vmem:[%s271 + $0x130] sm:$0xf]
        %v543 = vld [vmem:[%s271 + $0x134] sm:$0xf]
        %v544 = vld [vmem:[%s271 + $0x138] sm:$0xf]
        %v545 = vld [vmem:[%s271 + $0x13c] sm:$0xf]
        %v546 = vld [vmem:[%s271 + $0x140] sm:$0xf]
        %v547 = vld [vmem:[%s271 + $0x144] sm:$0xf]
        %v548 = vld [vmem:[%s271 + $0x148] sm:$0xf]
        %v549 = vld [vmem:[%s271 + $0x14c] sm:$0xf]
        %v550 = vld [vmem:[%s271 + $0x150] sm:$0xf]
        %v551 = vld [vmem:[%s271 + $0x154] sm:$0xf]
        %v552 = vld [vmem:[%s271 + $0x158] sm:$0xf]
        %v553 = vld [vmem:[%s271 + $0x15c] sm:$0xf]
        %v554 = vld [vmem:[%s271 + $0x160] sm:$0xf]
        %v555 = vld [vmem:[%s271 + $0x164] sm:$0xf]
        %v556 = vld [vmem:[%s271 + $0x168] sm:$0xf]
        %v557 = vld [vmem:[%s271 + $0x16c] sm:$0xf]
        %v558 = vld [vmem:[%s271 + $0x170] sm:$0xf]
        %v559 = vld [vmem:[%s271 + $0x174] sm:$0xf]
        %v560 = vld [vmem:[%s271 + $0x178] sm:$0xf]
        %v561 = vld [vmem:[%s271 + $0x17c] sm:$0xf]
        %v562 = vld [vmem:[%s271 + $0x180] sm:$0xf]
        %v563 = vld [vmem:[%s271 + $0x184] sm:$0xf]
        %v564 = vld [vmem:[%s271 + $0x188] sm:$0xf]
        %v565 = vld [vmem:[%s271 + $0x18c] sm:$0xf]
        %v566 = vld [vmem:[%s271 + $0x190] sm:$0xf]
        %v567 = vld [vmem:[%s271 + $0x194] sm:$0xf]
        %v568 = vld [vmem:[%s271 + $0x198] sm:$0xf]
        %v569 = vld [vmem:[%s271 + $0x19c] sm:$0xf]
        %v570 = vld [vmem:[%s271 + $0x1a0] sm:$0xf]
        %v571 = vld [vmem:[%s271 + $0x1a4] sm:$0xf]
        %v572 = vld [vmem:[%s271 + $0x1a8] sm:$0xf]
        %v573 = vld [vmem:[%s271 + $0x1ac] sm:$0xf]
        %v574 = vld [vmem:[%s271 + $0x1b0] sm:$0xf]
        %v575 = vld [vmem:[%s271 + $0x1b4] sm:$0xf]
        %v576 = vld [vmem:[%s271 + $0x1b8] sm:$0xf]
        %v577 = vld [vmem:[%s271 + $0x1bc] sm:$0xf]
        %v578 = vld [vmem:[%s271 + $0x1c0] sm:$0xf]
        %v579 = vld [vmem:[%s271 + $0x1c4] sm:$0xf]
        %v580 = vld [vmem:[%s271 + $0x1c8] sm:$0xf]
        %v581 = vld [vmem:[%s271 + $0x1cc] sm:$0xf]
        %v582 = vld [vmem:[%s271 + $0x1d0] sm:$0xf]
        %v583 = vld [vmem:[%s271 + $0x1d4] sm:$0xf]
        %v584 = vld [vmem:[%s271 + $0x1d8] sm:$0xf]
        %v585 = vld [vmem:[%s271 + $0x1dc] sm:$0xf]
        %v586 = vld [vmem:[%s271 + $0x1e0] sm:$0xf]
        %v587 = vld [vmem:[%s271 + $0x1e4] sm:$0xf]
        %v588 = vld [vmem:[%s271 + $0x1e8] sm:$0xf]
        %v589 = vld [vmem:[%s271 + $0x1ec] sm:$0xf]
        %v590 = vld [vmem:[%s271 + $0x1f0] sm:$0xf]
        %v591 = vld [vmem:[%s271 + $0x1f4] sm:$0xf]
        %v592 = vld [vmem:[%s271 + $0x1f8] sm:$0xf]
        %v593 = vld [vmem:[%s271 + $0x1fc] sm:$0xf]
        %v594 = vld [vmem:[%s271 + $0x200] sm:$0xf]
        %v595 = vld [vmem:[%s271 + $0x204] sm:$0xf]
        %v596 = vld [vmem:[%s271 + $0x208] sm:$0xf]
        %v597 = vld [vmem:[%s271 + $0x20c] sm:$0xf]
        %v598 = vld [vmem:[%s271 + $0x210] sm:$0xf]
        %v599 = vld [vmem:[%s271 + $0x214] sm:$0xf]
        %v600 = vld [vmem:[%s271 + $0x218] sm:$0xf]
        %v601 = vld [vmem:[%s271 + $0x21c] sm:$0xf]
        %v602 = vld [vmem:[%s271 + $0x220] sm:$0xf]
        %v603 = vld [vmem:[%s271 + $0x224] sm:$0xf]
        %v604 = vld [vmem:[%s271 + $0x228] sm:$0xf]
        %v605 = vld [vmem:[%s271 + $0x22c] sm:$0xf]
        %v606 = vld [vmem:[%s271 + $0x230] sm:$0xf]
        %v607 = vld [vmem:[%s271 + $0x234] sm:$0xf]
        %v608 = vld [vmem:[%s271 + $0x238] sm:$0xf]
        %v609 = vld [vmem:[%s271 + $0x23c] sm:$0xf]
        %v754 = vunpack.c.l.b16 %v466
        %v755 = vunpack.c.l.b16 %v467
        %v756 = vunpack.c.l.b16 %v468
        %v757 = vunpack.c.l.b16 %v469
        %v758 = vunpack.c.l.b16 %v470
        %v759 = vunpack.c.l.b16 %v471
        %v760 = vunpack.c.l.b16 %v472
        %v761 = vunpack.c.l.b16 %v473
        %v762 = vunpack.c.l.b16 %v474
        %v763 = vunpack.c.l.b16 %v475
        %v764 = vunpack.c.l.b16 %v476
        %v765 = vunpack.c.l.b16 %v477
        %v766 = vunpack.c.l.b16 %v478
        %v767 = vunpack.c.l.b16 %v479
        %v768 = vunpack.c.l.b16 %v480
        %v769 = vunpack.c.l.b16 %v481
        %v770 = vunpack.c.l.b16 %v482
        %v771 = vunpack.c.l.b16 %v483
        %v772 = vunpack.c.l.b16 %v484
        %v773 = vunpack.c.l.b16 %v485
        %v774 = vunpack.c.l.b16 %v486
        %v775 = vunpack.c.l.b16 %v487
        %v776 = vunpack.c.l.b16 %v488
        %v777 = vunpack.c.l.b16 %v489
        %v778 = vunpack.c.l.b16 %v490
        %v779 = vunpack.c.l.b16 %v491
        %v780 = vunpack.c.l.b16 %v492
        %v781 = vunpack.c.l.b16 %v493
        %v782 = vunpack.c.l.b16 %v494
        %v783 = vunpack.c.l.b16 %v495
        %v784 = vunpack.c.l.b16 %v496
        %v785 = vunpack.c.l.b16 %v497
        %v786 = vunpack.c.l.b16 %v498
        %v787 = vunpack.c.l.b16 %v499
        %v788 = vunpack.c.l.b16 %v500
        %v789 = vunpack.c.l.b16 %v501
        %v790 = vunpack.c.l.b16 %v502
        %v791 = vunpack.c.l.b16 %v503
        %v792 = vunpack.c.l.b16 %v504
        %v793 = vunpack.c.l.b16 %v505
        %v794 = vunpack.c.l.b16 %v506
        %v795 = vunpack.c.l.b16 %v507
        %v796 = vunpack.c.l.b16 %v508
        %v797 = vunpack.c.l.b16 %v509
        %v798 = vunpack.c.l.b16 %v510
        %v799 = vunpack.c.l.b16 %v511
        %v800 = vunpack.c.l.b16 %v512
        %v801 = vunpack.c.l.b16 %v513
        %v802 = vunpack.c.l.b16 %v514
        %v803 = vunpack.c.l.b16 %v515
        %v804 = vunpack.c.l.b16 %v516
        %v805 = vunpack.c.l.b16 %v517
        %v806 = vunpack.c.l.b16 %v518
        %v807 = vunpack.c.l.b16 %v519
        %v808 = vunpack.c.l.b16 %v520
        %v809 = vunpack.c.l.b16 %v521
        %v810 = vunpack.c.l.b16 %v522
        %v811 = vunpack.c.l.b16 %v523
        %v812 = vunpack.c.l.b16 %v524
        %v813 = vunpack.c.l.b16 %v525
        %v814 = vunpack.c.l.b16 %v526
        %v815 = vunpack.c.l.b16 %v527
        %v816 = vunpack.c.l.b16 %v528
        %v817 = vunpack.c.l.b16 %v529
        %v818 = vunpack.c.l.b16 %v530
        %v819 = vunpack.c.l.b16 %v531
        %v820 = vunpack.c.l.b16 %v532
        %v821 = vunpack.c.l.b16 %v533
        %v822 = vunpack.c.l.b16 %v534
        %v823 = vunpack.c.l.b16 %v535
        %v824 = vunpack.c.l.b16 %v536
        %v825 = vunpack.c.l.b16 %v537
        %v826 = vunpack.c.l.b16 %v538
        %v827 = vunpack.c.l.b16 %v539
        %v828 = vunpack.c.l.b16 %v540
        %v829 = vunpack.c.l.b16 %v541
        %v830 = vunpack.c.l.b16 %v542
        %v831 = vunpack.c.l.b16 %v543
        %v832 = vunpack.c.l.b16 %v544
        %v833 = vunpack.c.l.b16 %v545
        %v834 = vunpack.c.l.b16 %v546
        %v835 = vunpack.c.l.b16 %v547
        %v836 = vunpack.c.l.b16 %v548
        %v837 = vunpack.c.l.b16 %v549
        %v838 = vunpack.c.l.b16 %v550
        %v839 = vunpack.c.l.b16 %v551
        %v840 = vunpack.c.l.b16 %v552
        %v841 = vunpack.c.l.b16 %v553
        %v842 = vunpack.c.l.b16 %v554
        %v843 = vunpack.c.l.b16 %v555
        %v844 = vunpack.c.l.b16 %v556
        %v845 = vunpack.c.l.b16 %v557
        %v846 = vunpack.c.l.b16 %v558
        %v847 = vunpack.c.l.b16 %v559
        %v848 = vunpack.c.l.b16 %v560
        %v849 = vunpack.c.l.b16 %v561
        %v850 = vunpack.c.l.b16 %v562
        %v851 = vunpack.c.l.b16 %v563
        %v852 = vunpack.c.l.b16 %v564
        %v853 = vunpack.c.l.b16 %v565
        %v854 = vunpack.c.l.b16 %v566
        %v855 = vunpack.c.l.b16 %v567
        %v856 = vunpack.c.l.b16 %v568
        %v857 = vunpack.c.l.b16 %v569
        %v858 = vunpack.c.l.b16 %v570
        %v859 = vunpack.c.l.b16 %v571
        %v860 = vunpack.c.l.b16 %v572
        %v861 = vunpack.c.l.b16 %v573
        %v862 = vunpack.c.l.b16 %v574
        %v863 = vunpack.c.l.b16 %v575
        %v864 = vunpack.c.l.b16 %v576
        %v865 = vunpack.c.l.b16 %v577
        %v866 = vunpack.c.l.b16 %v578
        %v867 = vunpack.c.l.b16 %v579
        %v868 = vunpack.c.l.b16 %v580
        %v869 = vunpack.c.l.b16 %v581
        %v870 = vunpack.c.l.b16 %v582
        %v871 = vunpack.c.l.b16 %v583
        %v872 = vunpack.c.l.b16 %v584
        %v873 = vunpack.c.l.b16 %v585
        %v874 = vunpack.c.l.b16 %v586
        %v875 = vunpack.c.l.b16 %v587
        %v876 = vunpack.c.l.b16 %v588
        %v877 = vunpack.c.l.b16 %v589
        %v878 = vunpack.c.l.b16 %v590
        %v879 = vunpack.c.l.b16 %v591
        %v880 = vunpack.c.l.b16 %v592
        %v881 = vunpack.c.l.b16 %v593
        %v882 = vunpack.c.l.b16 %v594
        %v883 = vunpack.c.l.b16 %v595
        %v884 = vunpack.c.l.b16 %v596
        %v885 = vunpack.c.l.b16 %v597
        %v886 = vunpack.c.l.b16 %v598
        %v887 = vunpack.c.l.b16 %v599
        %v888 = vunpack.c.l.b16 %v600
        %v889 = vunpack.c.l.b16 %v601
        %v890 = vunpack.c.l.b16 %v602
        %v891 = vunpack.c.l.b16 %v603
        %v892 = vunpack.c.l.b16 %v604
        %v893 = vunpack.c.l.b16 %v605
        %v894 = vunpack.c.l.b16 %v606
        %v895 = vunpack.c.l.b16 %v607
        %v896 = vunpack.c.l.b16 %v608
        %v897 = vunpack.c.l.b16 %v609
        %v898 = vpack.c.b16 %v755, %v754
        %v899 = vpack.c.b16 %v757, %v756
        %v900 = vpack.c.b16 %v759, %v758
        %v901 = vpack.c.b16 %v761, %v760
        %v902 = vpack.c.b16 %v763, %v762
        %v903 = vpack.c.b16 %v765, %v764
        %v904 = vpack.c.b16 %v767, %v766
        %v905 = vpack.c.b16 %v769, %v768
        %v906 = vpack.c.b16 %v771, %v770
        %v907 = vpack.c.b16 %v773, %v772
        %v908 = vpack.c.b16 %v775, %v774
        %v909 = vpack.c.b16 %v777, %v776
        %v910 = vpack.c.b16 %v779, %v778
        %v911 = vpack.c.b16 %v781, %v780
        %v912 = vpack.c.b16 %v783, %v782
        %v913 = vpack.c.b16 %v785, %v784
        %v914 = vpack.c.b16 %v787, %v786
        %v915 = vpack.c.b16 %v789, %v788
        %v916 = vpack.c.b16 %v791, %v790
        %v917 = vpack.c.b16 %v793, %v792
        %v918 = vpack.c.b16 %v795, %v794
        %v919 = vpack.c.b16 %v797, %v796
        %v920 = vpack.c.b16 %v799, %v798
        %v921 = vpack.c.b16 %v801, %v800
        %v922 = vpack.c.b16 %v803, %v802
        %v923 = vpack.c.b16 %v805, %v804
        %v924 = vpack.c.b16 %v807, %v806
        %v925 = vpack.c.b16 %v809, %v808
        %v926 = vpack.c.b16 %v811, %v810
        %v927 = vpack.c.b16 %v813, %v812
        %v928 = vpack.c.b16 %v815, %v814
        %v929 = vpack.c.b16 %v817, %v816
        %v930 = vpack.c.b16 %v819, %v818
        %v931 = vpack.c.b16 %v821, %v820
        %v932 = vpack.c.b16 %v823, %v822
        %v933 = vpack.c.b16 %v825, %v824
        %v934 = vpack.c.b16 %v827, %v826
        %v935 = vpack.c.b16 %v829, %v828
        %v936 = vpack.c.b16 %v831, %v830
        %v937 = vpack.c.b16 %v833, %v832
        %v938 = vpack.c.b16 %v835, %v834
        %v939 = vpack.c.b16 %v837, %v836
        %v940 = vpack.c.b16 %v839, %v838
        %v941 = vpack.c.b16 %v841, %v840
        %v942 = vpack.c.b16 %v843, %v842
        %v943 = vpack.c.b16 %v845, %v844
        %v944 = vpack.c.b16 %v847, %v846
        %v945 = vpack.c.b16 %v849, %v848
        %v946 = vpack.c.b16 %v851, %v850
        %v947 = vpack.c.b16 %v853, %v852
        %v948 = vpack.c.b16 %v855, %v854
        %v949 = vpack.c.b16 %v857, %v856
        %v950 = vpack.c.b16 %v859, %v858
        %v951 = vpack.c.b16 %v861, %v860
        %v952 = vpack.c.b16 %v863, %v862
        %v953 = vpack.c.b16 %v865, %v864
        %v954 = vpack.c.b16 %v867, %v866
        %v955 = vpack.c.b16 %v869, %v868
        %v956 = vpack.c.b16 %v871, %v870
        %v957 = vpack.c.b16 %v873, %v872
        %v958 = vpack.c.b16 %v875, %v874
        %v959 = vpack.c.b16 %v877, %v876
        %v960 = vpack.c.b16 %v879, %v878
        %v961 = vpack.c.b16 %v881, %v880
        %v962 = vpack.c.b16 %v883, %v882
        %v963 = vpack.c.b16 %v885, %v884
        %v964 = vpack.c.b16 %v887, %v886
        %v965 = vpack.c.b16 %v889, %v888
        %v966 = vpack.c.b16 %v891, %v890
        %v967 = vpack.c.b16 %v893, %v892
        %v968 = vpack.c.b16 %v895, %v894
        %v969 = vpack.c.b16 %v897, %v896
        %1042 = vmatprep.subr.bf16.mxu0 0
        %1043 = vmatpush1.bf16.msra.mxu0 %v898
        %1044 = vmatprep.subr.bf16.mxu0 0
        %1045 = vmatpush1.bf16.msra.mxu0 %v899
        %1046 = vmatprep.subr.bf16.mxu0 0
        %1047 = vmatpush1.bf16.msra.mxu0 %v900
        %1048 = vmatprep.subr.bf16.mxu0 0
        %1049 = vmatpush1.bf16.msra.mxu0 %v901
        %1050 = vmatprep.subr.bf16.mxu0 0
        %1051 = vmatpush1.bf16.msra.mxu0 %v902
        %1052 = vmatprep.subr.bf16.mxu0 0
        %1053 = vmatpush1.bf16.msra.mxu0 %v903
        %1054 = vmatprep.subr.bf16.mxu0 0
        %1055 = vmatpush1.bf16.msra.mxu0 %v904
        %1056 = vmatprep.subr.bf16.mxu0 0
        %1057 = vmatpush1.bf16.msra.mxu0 %v905
        %1058 = vmatprep.subr.bf16.mxu0 0
        %1059 = vmatpush1.bf16.msra.mxu0 %v906
        %1060 = vmatprep.subr.bf16.mxu0 0
        %1061 = vmatpush1.bf16.msra.mxu0 %v907
        %1062 = vmatprep.subr.bf16.mxu0 0
        %1063 = vmatpush1.bf16.msra.mxu0 %v908
        %1064 = vmatprep.subr.bf16.mxu0 0
        %1065 = vmatpush1.bf16.msra.mxu0 %v909
        %1066 = vmatprep.subr.bf16.mxu0 0
        %1067 = vmatpush1.bf16.msra.mxu0 %v910
        %1068 = vmatprep.subr.bf16.mxu0 0
        %1069 = vmatpush1.bf16.msra.mxu0 %v911
        %1070 = vmatprep.subr.bf16.mxu0 0
        %1071 = vmatpush1.bf16.msra.mxu0 %v912
        %1072 = vmatprep.subr.bf16.mxu0 0
        %1073 = vmatpush1.bf16.msra.mxu0 %v913
        %1074 = vmatprep.mubr.bf16.mxu0 %v432
        %1075 = vmatmul.mubr.bf16.gmra.mrb[0].mxu0 %v431
        %v1076 = vpop.f32.mrb[0].mxu0
        %v1077 = vadd.f32 0.0, %v1076
        %v1078 = vpop.f32.mrb[0].mxu0
        %v1079 = vpop.f32.mrb[0].mxu0
        %v1080 = vadd.f32 0.0, %v1079
        %v1081 = vpop.f32.mrb[0].mxu0
        %1082 = vmatprep.mubr.bf16.mxu0 %v438
        %1083 = vmatmul.mubr.bf16.gmra.mrb[0].mxu0 %v437
        %v1084 = vpop.f32.mrb[0].mxu0
        %v1085 = vadd.f32 0.0, %v1084
        %v1086 = vpop.f32.mrb[0].mxu0
        %v1087 = vpop.f32.mrb[0].mxu0
        %v1088 = vadd.f32 0.0, %v1087
        %v1089 = vpop.f32.mrb[0].mxu0
        %1090 = vmatprep.mubr.bf16.mxu0 %v444
        %1091 = vmatmul.mubr.bf16.gmra.mrb[0].mxu0 %v443
        %v1092 = vpop.f32.mrb[0].mxu0
        %v1093 = vadd.f32 0.0, %v1092
        %v1094 = vpop.f32.mrb[0].mxu0
        %v1095 = vpop.f32.mrb[0].mxu0
        %v1096 = vadd.f32 0.0, %v1095
        %v1097 = vpop.f32.mrb[0].mxu0
        %1098 = vmatprep.mubr.bf16.mxu0 %v450
        %1099 = vmatmul.mubr.bf16.gmra.mrb[0].mxu0 %v449
        %v1100 = vpop.f32.mrb[0].mxu0
        %v1101 = vadd.f32 0.0, %v1100
        %v1102 = vpop.f32.mrb[0].mxu0
        %v1103 = vpop.f32.mrb[0].mxu0
        %v1104 = vadd.f32 0.0, %v1103
        %v1105 = vpop.f32.mrb[0].mxu0
        %1106 = vdwg.mxu0
        %1107 = vmatprep.subr.bf16.mxu0 0
        %1108 = vmatpush1.bf16.msra.mxu0 %v914
        %1109 = vmatprep.subr.bf16.mxu0 0
        %1110 = vmatpush1.bf16.msra.mxu0 %v915
        %1111 = vmatprep.subr.bf16.mxu0 0
        %1112 = vmatpush1.bf16.msra.mxu0 %v916
        %1113 = vmatprep.subr.bf16.mxu0 0
        %1114 = vmatpush1.bf16.msra.mxu0 %v917
        %1115 = vmatprep.subr.bf16.mxu0 0
        %1116 = vmatpush1.bf16.msra.mxu0 %v918
        %1117 = vmatprep.subr.bf16.mxu0 0
        %1118 = vmatpush1.bf16.msra.mxu0 %v919
        %1119 = vmatprep.subr.bf16.mxu0 0
        %1120 = vmatpush1.bf16.msra.mxu0 %v920
        %1121 = vmatprep.subr.bf16.mxu0 0
        %1122 = vmatpush1.bf16.msra.mxu0 %v921
        %1123 = vmatprep.subr.bf16.mxu0 0
        %1124 = vmatpush1.bf16.msra.mxu0 %v922
        %1125 = vmatprep.subr.bf16.mxu0 0
        %1126 = vmatpush1.bf16.msra.mxu0 %v923
        %1127 = vmatprep.subr.bf16.mxu0 0
        %1128 = vmatpush1.bf16.msra.mxu0 %v924
        %1129 = vmatprep.subr.bf16.mxu0 0
        %1130 = vmatpush1.bf16.msra.mxu0 %v925
        %1131 = vmatprep.subr.bf16.mxu0 0
        %1132 = vmatpush1.bf16.msra.mxu0 %v926
        %1133 = vmatprep.subr.bf16.mxu0 0
        %1134 = vmatpush1.bf16.msra.mxu0 %v927
        %1135 = vmatprep.subr.bf16.mxu0 0
        %1136 = vmatpush1.bf16.msra.mxu0 %v928
        %1137 = vmatprep.subr.bf16.mxu0 0
        %1138 = vmatpush1.bf16.msra.mxu0 %v929
        %1139 = vmatprep.mubr.bf16.mxu0 %v434
        %1140 = vmatmul.mubr.bf16.gmra.mrb[0].mxu0 %v433
        %v1141 = vpop.f32.mrb[0].mxu0
        %v1142 = vadd.f32 %v1077, %v1141
        %v1143 = vpop.f32.mrb[0].mxu0
        %v1144 = vpop.f32.mrb[0].mxu0
        %v1145 = vadd.f32 %v1080, %v1144
        %v1146 = vpop.f32.mrb[0].mxu0
        %1147 = vmatprep.mubr.bf16.mxu0 %v440
        %1148 = vmatmul.mubr.bf16.gmra.mrb[0].mxu0 %v439
        %v1149 = vpop.f32.mrb[0].mxu0
        %v1150 = vadd.f32 %v1085, %v1149
        %v1151 = vpop.f32.mrb[0].mxu0
        %v1152 = vpop.f32.mrb[0].mxu0
        %v1153 = vadd.f32 %v1088, %v1152
        %v1154 = vpop.f32.mrb[0].mxu0
        %1155 = vmatprep.mubr.bf16.mxu0 %v446
        %1156 = vmatmul.mubr.bf16.gmra.mrb[0].mxu0 %v445
        %v1157 = vpop.f32.mrb[0].mxu0
        %v1158 = vadd.f32 %v1093, %v1157
        %v1159 = vpop.f32.mrb[0].mxu0
        %v1160 = vpop.f32.mrb[0].mxu0
        %v1161 = vadd.f32 %v1096, %v1160
        %v1162 = vpop.f32.mrb[0].mxu0
        %1163 = vmatprep.mubr.bf16.mxu0 %v452
        %1164 = vmatmul.mubr.bf16.gmra.mrb[0].mxu0 %v451
        %v1165 = vpop.f32.mrb[0].mxu0
        %v1166 = vadd.f32 %v1101, %v1165
        %v1167 = vpop.f32.mrb[0].mxu0
        %v1168 = vpop.f32.mrb[0].mxu0
        %v1169 = vadd.f32 %v1104, %v1168
        %v1170 = vpop.f32.mrb[0].mxu0
        %1171 = vdwg.mxu0
        %1172 = vmatprep.subr.bf16.mxu0 0
        %1173 = vmatpush1.bf16.msra.mxu0 %v930
        %1174 = vmatprep.subr.bf16.mxu0 0
        %1175 = vmatpush1.bf16.msra.mxu0 %v931
        %1176 = vmatprep.subr.bf16.mxu0 0
        %1177 = vmatpush1.bf16.msra.mxu0 %v932
        %1178 = vmatprep.subr.bf16.mxu0 0
        %1179 = vmatpush1.bf16.msra.mxu0 %v933
        %1180 = vmatprep.subr.bf16.mxu0 0
        %1181 = vmatpush1.bf16.msra.mxu0 %v934
        %1182 = vmatprep.subr.bf16.mxu0 0
        %1183 = vmatpush1.bf16.msra.mxu0 %v935
        %1184 = vmatprep.subr.bf16.mxu0 0
        %1185 = vmatpush1.bf16.msra.mxu0 %v936
        %1186 = vmatprep.subr.bf16.mxu0 0
        %1187 = vmatpush1.bf16.msra.mxu0 %v937
        %1188 = vmatprep.subr.bf16.mxu0 0
        %1189 = vmatpush1.bf16.msra.mxu0 %v938
        %1190 = vmatprep.subr.bf16.mxu0 0
        %1191 = vmatpush1.bf16.msra.mxu0 %v939
        %1192 = vmatprep.subr.bf16.mxu0 0
        %1193 = vmatpush1.bf16.msra.mxu0 %v940
        %1194 = vmatprep.subr.bf16.mxu0 0
        %1195 = vmatpush1.bf16.msra.mxu0 %v941
        %1196 = vmatprep.subr.bf16.mxu0 0
        %1197 = vmatpush1.bf16.msra.mxu0 %v942
        %1198 = vmatprep.subr.bf16.mxu0 0
        %1199 = vmatpush1.bf16.msra.mxu0 %v943
        %1200 = vmatprep.subr.bf16.mxu0 0
        %1201 = vmatpush1.bf16.msra.mxu0 %v944
        %1202 = vmatprep.subr.bf16.mxu0 0
        %1203 = vmatpush1.bf16.msra.mxu0 %v945
        %1204 = vmatprep.mubr.bf16.mxu0 %v436
        %1205 = vmatmul.mubr.bf16.gmra.mrb[0].mxu0 %v435
        %v1206 = vpop.f32.mrb[0].mxu0
        %v1207 = vadd.f32 %v1142, %v1206
        %v1208 = vpop.f32.mrb[0].mxu0
        %v1209 = vpop.f32.mrb[0].mxu0
        %v1210 = vadd.f32 %v1145, %v1209
        %v1211 = vpop.f32.mrb[0].mxu0
        %1212 = vmatprep.mubr.bf16.mxu0 %v442
        %1213 = vmatmul.mubr.bf16.gmra.mrb[0].mxu0 %v441
        %v1214 = vpop.f32.mrb[0].mxu0
        %v1215 = vadd.f32 %v1150, %v1214
        %v1216 = vpop.f32.mrb[0].mxu0
        %v1217 = vpop.f32.mrb[0].mxu0
        %v1218 = vadd.f32 %v1153, %v1217
        %v1219 = vpop.f32.mrb[0].mxu0
        %1220 = vmatprep.mubr.bf16.mxu0 %v448
        %1221 = vmatmul.mubr.bf16.gmra.mrb[0].mxu0 %v447
        %v1222 = vpop.f32.mrb[0].mxu0
        %v1223 = vadd.f32 %v1158, %v1222
        %v1224 = vpop.f32.mrb[0].mxu0
        %v1225 = vpop.f32.mrb[0].mxu0
        %v1226 = vadd.f32 %v1161, %v1225
        %v1227 = vpop.f32.mrb[0].mxu0
        %1228 = vmatprep.mubr.bf16.mxu0 %v454
        %1229 = vmatmul.mubr.bf16.gmra.mrb[0].mxu0 %v453
        %v1230 = vpop.f32.mrb[0].mxu0
        %v1231 = vadd.f32 %v1166, %v1230
        %v1232 = vpop.f32.mrb[0].mxu0
        %v1233 = vpop.f32.mrb[0].mxu0
        %v1234 = vadd.f32 %v1169, %v1233
        %v1235 = vpop.f32.mrb[0].mxu0
        %1236 = vdwg.mxu0
        %1237 = vmatprep.subr.bf16.mxu0 0
        %1238 = vmatpush1.bf16.msra.mxu0 %v946
        %1239 = vmatprep.subr.bf16.mxu0 0
        %1240 = vmatpush1.bf16.msra.mxu0 %v947
        %1241 = vmatprep.subr.bf16.mxu0 0
        %1242 = vmatpush1.bf16.msra.mxu0 %v948
        %1243 = vmatprep.subr.bf16.mxu0 0
        %1244 = vmatpush1.bf16.msra.mxu0 %v949
        %1245 = vmatprep.subr.bf16.mxu0 0
        %1246 = vmatpush1.bf16.msra.mxu0 %v950
        %1247 = vmatprep.subr.bf16.mxu0 0
        %1248 = vmatpush1.bf16.msra.mxu0 %v951
        %1249 = vmatprep.subr.bf16.mxu0 0
        %1250 = vmatpush1.bf16.msra.mxu0 %v952
        %1251 = vmatprep.subr.bf16.mxu0 0
        %1252 = vmatpush1.bf16.msra.mxu0 %v953
        %1253 = vmatprep.subr.bf16.mxu0 0
        %1254 = vmatpush1.bf16.msra.mxu0 %v954
        %1255 = vmatprep.subr.bf16.mxu0 0
        %1256 = vmatpush1.bf16.msra.mxu0 %v955
        %1257 = vmatprep.subr.bf16.mxu0 0
        %1258 = vmatpush1.bf16.msra.mxu0 %v956
        %1259 = vmatprep.subr.bf16.mxu0 0
        %1260 = vmatpush1.bf16.msra.mxu0 %v957
        %1261 = vmatprep.subr.bf16.mxu0 0
        %1262 = vmatpush1.bf16.msra.mxu0 %v958
        %1263 = vmatprep.subr.bf16.mxu0 0
        %1264 = vmatpush1.bf16.msra.mxu0 %v959
        %1265 = vmatprep.subr.bf16.mxu0 0
        %1266 = vmatpush1.bf16.msra.mxu0 %v960
        %1267 = vmatprep.subr.bf16.mxu0 0
        %1268 = vmatpush1.bf16.msra.mxu0 %v961
        %1269 = vmatprep.mubr.bf16.mxu0 %v438
        %1270 = vmatmul.mubr.bf16.gmra.mrb[0].mxu0 %v437
        %v1271 = vpop.f32.mrb[0].mxu0
        %v1272 = vadd.f32 %v1207, %v1271
        %v1273 = vpop.f32.mrb[0].mxu0
        %v1274 = vpop.f32.mrb[0].mxu0
        %v1275 = vadd.f32 %v1210, %v1274
        %v1276 = vpop.f32.mrb[0].mxu0
        %1277 = vmatprep.mubr.bf16.mxu0 %v444
        %1278 = vmatmul.mubr.bf16.gmra.mrb[0].mxu0 %v443
        %v1279 = vpop.f32.mrb[0].mxu0
        %v1280 = vadd.f32 %v1215, %v1279
        %v1281 = vpop.f32.mrb[0].mxu0
        %v1282 = vpop.f32.mrb[0].mxu0
        %v1283 = vadd.f32 %v1218, %v1282
        %v1284 = vpop.f32.mrb[0].mxu0
        %1285 = vmatprep.mubr.bf16.mxu0 %v450
        %1286 = vmatmul.mubr.bf16.gmra.mrb[0].mxu0 %v449
        %v1287 = vpop.f32.mrb[0].mxu0
        %v1288 = vadd.f32 %v1223, %v1287
        %v1289 = vpop.f32.mrb[0].mxu0
        %v1290 = vpop.f32.mrb[0].mxu0
        %v1291 = vadd.f32 %v1226, %v1290
        %v1292 = vpop.f32.mrb[0].mxu0
        %1293 = vmatprep.mubr.bf16.mxu0 %v456
        %1294 = vmatmul.mubr.bf16.gmra.mrb[0].mxu0 %v455
        %v1295 = vpop.f32.mrb[0].mxu0
        %v1296 = vadd.f32 %v1231, %v1295
        %v1297 = vpop.f32.mrb[0].mxu0
        %v1298 = vpop.f32.mrb[0].mxu0
        %v1299 = vadd.f32 %v1234, %v1298
        %v1300 = vpop.f32.mrb[0].mxu0
        %1301 = vdwg.mxu0
        %1302 = vmatprep.subr.bf16.mxu0 0
        %1303 = vmatpush1.bf16.msra.mxu0 %v962
        %1304 = vmatprep.subr.bf16.mxu0 0
        %1305 = vmatpush1.bf16.msra.mxu0 %v963
        %1306 = vmatprep.subr.bf16.mxu0 0
        %1307 = vmatpush1.bf16.msra.mxu0 %v964
        %1308 = vmatprep.subr.bf16.mxu0 0
        %1309 = vmatpush1.bf16.msra.mxu0 %v965
        %1310 = vmatprep.subr.bf16.mxu0 0
        %1311 = vmatpush1.bf16.msra.mxu0 %v966
        %1312 = vmatprep.subr.bf16.mxu0 0
        %1313 = vmatpush1.bf16.msra.mxu0 %v967
        %1314 = vmatprep.subr.bf16.mxu0 0
        %1315 = vmatpush1.bf16.msra.mxu0 %v968
        %1316 = vmatprep.subr.bf16.mxu0 0
        %1317 = vmatpush1.bf16.msra.mxu0 %v969
        %1318 = vmatprep.subr.bf16.mxu0 0
        %1319 = vmatpush1.bf16.msra.mxu0 0
        %1320 = vmatprep.subr.bf16.mxu0 0
        %1321 = vmatpush1.bf16.msra.mxu0 0
        %1322 = vmatprep.subr.bf16.mxu0 0
        %1323 = vmatpush1.bf16.msra.mxu0 0
        %1324 = vmatprep.subr.bf16.mxu0 0
        %1325 = vmatpush1.bf16.msra.mxu0 0
        %1326 = vmatprep.subr.bf16.mxu0 0
        %1327 = vmatpush1.bf16.msra.mxu0 0
        %1328 = vmatprep.subr.bf16.mxu0 0
        %1329 = vmatpush1.bf16.msra.mxu0 0
        %1330 = vmatprep.subr.bf16.mxu0 0
        %1331 = vmatpush1.bf16.msra.mxu0 0
        %1332 = vmatprep.subr.bf16.mxu0 0
        %1333 = vmatpush1.bf16.msra.mxu0 0
        %1334 = vmatprep.mubr.bf16.mxu0 0
        %1335 = vmatmul.mubr.bf16.gmra.mrb[0].mxu0 %v439
        %v1336 = vpop.f32.mrb[0].mxu0
        %v1337 = vadd.f32 %v1272, %v1336
        %v1338 = vpop.f32.mrb[0].mxu0
        %v1339 = vpop.f32.mrb[0].mxu0
        %v1340 = vadd.f32 %v1275, %v1339
        %v1341 = vpop.f32.mrb[0].mxu0
        %1342 = vmatprep.mubr.bf16.mxu0 0
        %1343 = vmatmul.mubr.bf16.gmra.mrb[0].mxu0 %v445
        %v1344 = vpop.f32.mrb[0].mxu0
        %v1345 = vadd.f32 %v1280, %v1344
        %v1346 = vpop.f32.mrb[0].mxu0
        %v1347 = vpop.f32.mrb[0].mxu0
        %v1348 = vadd.f32 %v1283, %v1347
        %v1349 = vpop.f32.mrb[0].mxu0
        %1350 = vmatprep.mubr.bf16.mxu0 0
        %1351 = vmatmul.mubr.bf16.gmra.mrb[0].mxu0 %v451
        %v1352 = vpop.f32.mrb[0].mxu0
        %v1353 = vadd.f32 %v1288, %v1352
        %v1354 = vpop.f32.mrb[0].mxu0
        %v1355 = vpop.f32.mrb[0].mxu0
        %v1356 = vadd.f32 %v1291, %v1355
        %v1357 = vpop.f32.mrb[0].mxu0
        %1358 = vmatprep.mubr.bf16.mxu0 0
        %1359 = vmatmul.mubr.bf16.gmra.mrb[0].mxu0 %v457
        %v1360 = vpop.f32.mrb[0].mxu0
        %v1361 = vadd.f32 %v1296, %v1360
        %v1362 = vpop.f32.mrb[0].mxu0
        %v1363 = vpop.f32.mrb[0].mxu0
        %v1364 = vadd.f32 %v1299, %v1363
        %v1365 = vpop.f32.mrb[0].mxu0
        %1366 = vdwg.mxu0
        %v1367 = vadd.f32 %v458, %v1337
        %v1368 = vadd.f32 %v459, %v1340
        %v1369 = vadd.f32 %v460, %v1345
        %v1370 = vadd.f32 %v461, %v1348
        %v1371 = vadd.f32 %v462, %v1353
        %v1372 = vadd.f32 %v463, %v1356
        %v1373 = vadd.f32 %v464, %v1361
        %v1374 = vadd.f32 %v465, %v1364
        %1375 = vst [vmem:[#allocation2] sm:$0xff] %v1367
        %1376 = vst [vmem:[#allocation2 + $0x8] sm:$0xff] %v1368
        %1377 = vst [vmem:[#allocation2 + $0x10] sm:$0xff] %v1369
        %1378 = vst [vmem:[#allocation2 + $0x18] sm:$0xff] %v1370
        %1379 = vst [vmem:[#allocation2 + $0x20] sm:$0xff] %v1371
        %1380 = vst [vmem:[#allocation2 + $0x28] sm:$0xff] %v1372
        %1381 = vst [vmem:[#allocation2 + $0x30] sm:$0xff] %v1373
        %1382 = vst [vmem:[#allocation2 + $0x38] sm:$0xff] %v1374
      $region40: #{residual_block_forward.3} parent=31 // pred_fallthru
        _
      %p1383 = scmp.eq.s32.totalorder %s23, 2
      // Predicated region
      $region41: #{residual_block_forward.3} parent=31 // pred_check
        %p1384 = pneg %p1383
      $region42: #{residual_block_forward.3} parent=31 // pred_check_branch
        %1386 = sbr.rel (%p1384) target = $region44
      $region43: #{residual_block_forward.3} parent=31 // pred_region
        %v1387 = vld [vmem:[#allocation2] sm:$0xff]
        %v1388 = vld [vmem:[#allocation2 + $0x8] sm:$0xff]
        %v1389 = vld [vmem:[#allocation2 + $0x10] sm:$0xff]
        %v1390 = vld [vmem:[#allocation2 + $0x18] sm:$0xff]
        %v1391 = vld [vmem:[#allocation2 + $0x20] sm:$0xff]
        %v1392 = vld [vmem:[#allocation2 + $0x28] sm:$0xff]
        %v1393 = vld [vmem:[#allocation2 + $0x30] sm:$0xff]
        %v1394 = vld [vmem:[#allocation2 + $0x38] sm:$0xff]
        %v1395 = vld [vmem:[%s2] sm:$0x1]
        %v1397 = vlaneseq
        %v1398 = vshrl.u32 %v1397, 7
        %v1399 = vsub.s32 0, %v1398
        %v1400 = vrot.slane %v1395, %v1399
        %v1402 = vadd.f32 %v1387, %v1400
        %v1403 = vadd.f32 %v1388, %v1400
        %v1404 = vadd.f32 %v1389, %v1400
        %v1405 = vadd.f32 %v1390, %v1400
        %v1406 = vadd.f32 %v1391, %v1400
        %v1407 = vadd.f32 %v1392, %v1400
        %v1408 = vadd.f32 %v1393, %v1400
        %v1409 = vadd.f32 %v1394, %v1400
        %1410 = vst [vmem:[%s280] sm:$0xff] %v1402
        %1411 = vst [vmem:[%s280 + $0x8] sm:$0xff] %v1403
        %1412 = vst [vmem:[%s280 + $0x10] sm:$0xff] %v1404
        %1413 = vst [vmem:[%s280 + $0x18] sm:$0xff] %v1405
        %1414 = vst [vmem:[%s280 + $0x20] sm:$0xff] %v1406
        %1415 = vst [vmem:[%s280 + $0x28] sm:$0xff] %v1407
        %1416 = vst [vmem:[%s280 + $0x30] sm:$0xff] %v1408
        %1417 = vst [vmem:[%s280 + $0x38] sm:$0xff] %v1409
        %v1418 = vadd.f32 %v1402, %v1403
        %v1419 = vadd.f32 %v1418, %v1404
        %v1420 = vadd.f32 %v1419, %v1405
        %v1421 = vadd.f32 %v1420, %v1406
        %v1422 = vadd.f32 %v1421, %v1407
        %v1423 = vadd.f32 %v1422, %v1408
        %v1424 = vadd.f32 %v1423, %v1409
        %v1425 = vrot.slane %v1424, 4
        %v1426 = vadd.f32 %v1424, %v1425
        %v1427 = vrot.slane %v1426, 2
        %v1428 = vadd.f32 %v1426, %v1427
        %v1429 = vrot.slane %v1428, 1
        %v1430 = vadd.f32 %v1428, %v1429
        %v1431 = vmul.f32 %v1402, %v1402
        %v1432 = vmul.f32 %v1403, %v1403
        %v1433 = vmul.f32 %v1404, %v1404
        %v1434 = vmul.f32 %v1405, %v1405
        %v1435 = vmul.f32 %v1406, %v1406
        %v1436 = vmul.f32 %v1407, %v1407
        %v1437 = vmul.f32 %v1408, %v1408
        %v1438 = vmul.f32 %v1409, %v1409
        %v1439 = vadd.f32 %v1431, %v1432
        %v1440 = vadd.f32 %v1439, %v1433
        %v1441 = vadd.f32 %v1440, %v1434
        %v1442 = vadd.f32 %v1441, %v1435
        %v1443 = vadd.f32 %v1442, %v1436
        %v1444 = vadd.f32 %v1443, %v1437
        %v1445 = vadd.f32 %v1444, %v1438
        %v1446 = vrot.slane %v1445, 4
        %v1447 = vadd.f32 %v1445, %v1446
        %v1448 = vrot.slane %v1447, 2
        %v1449 = vadd.f32 %v1447, %v1448
        %v1450 = vrot.slane %v1449, 1
        %v1451 = vadd.f32 %v1449, %v1450
        %vm1452 = vcmask 1040384
        %v1453 = vsel %vm1452, %v1430, %v1451
        %1454 = vst [vmem:[%s288] sm:$0x3] %v1453
      $region44: #{residual_block_forward.3} parent=31 // pred_fallthru
        _
      %p1455 = scmp.lt.s32.totalorder %s21, 1
      %s1456 = scalar_select %p1455, %s21, 1
      %p1457 = scmp.lt.s32.totalorder %s22, 7
      %s1458 = scalar_select %p1457, %s22, 7
      %s1459 = smul.addr %s1458, 8
      %s1460 = smul.addr %s1456, 64
      %s1461 = sadd.s32 %s1459, %s1460
      %s1462 = smul.addr %s1461, 8
      %s1463 = scalar_lea.vmem %s3, %s1462
      %p1464 = scmp.lt.s32.totalorder %s21, 1
      %s1465 = scalar_select %p1464, %s21, 1
      %p1466 = scmp.lt.s32.totalorder %s22, 7
      %s1467 = scalar_select %p1466, %s22, 7
      %s1468 = smul.addr %s1465, 8
      %s1469 = sadd.s32 %s1467, %s1468
      %s1470 = smul.addr %s1469, 2
      %s1471 = scalar_lea.vmem %s4, %s1470
      // Predicated region
      $region45: #{residual_block_forward.3} parent=31 // pred_check
        %p1472 = pneg %p132
      $region46: #{residual_block_forward.3} parent=31 // pred_check_branch
        %1474 = sbr.rel (%p1472) target = $region48
      $region47: #{residual_block_forward.3} parent=31 // pred_region
        _
      $region48: #{residual_block_forward.3} parent=31 // pred_fallthru
        _
      // Predicated region
      $region49: #{residual_block_forward.3} parent=31 // pred_check
        %p1475 = pneg %p160
      $region50: #{residual_block_forward.3} parent=31 // pred_check_branch
        %1477 = sbr.rel (%p1475) target = $region52
      $region51: #{residual_block_forward.3} parent=31 // pred_region
        _
      $region52: #{residual_block_forward.3} parent=31 // pred_fallthru
        _
    $region32: #{residual_block_forward.3} parent=5 // pred_fallthru
      _
    %p1478 = scmp.le.s32.totalorder 2, %s11
    // Predicated region
    $region53: #{residual_block_forward.3} parent=5 // pred_check
      %p1479 = pneg %p1478
    $region54: #{residual_block_forward.3} parent=5 // pred_check_branch
      %1481 = sbr.rel (%p1479) target = $region56
    $region55: #{residual_block_forward.3} parent=5 // pred_region
      %s1482 = ssub.s32 %s11, 2
      // Predicated region
      $region57: #{residual_block_forward.3} parent=55 // pred_check
        %p1483 = pneg %p138
      $region58: #{residual_block_forward.3} parent=55 // pred_check_branch
        %1485 = sbr.rel (%p1483) target = $region60
      $region59: #{residual_block_forward.3} parent=55 // pred_region
        %p1486 = scmp.lt.s32.totalorder %s24, 1
        %s1487 = scalar_select %p1486, %s24, 1
        %p1488 = scmp.lt.s32.totalorder %s25, 7
        %s1489 = scalar_select %p1488, %s25, 7
        %s1490 = smul.addr %s1489, 8
        %s1491 = smul.addr %s1487, 64
        %s1492 = sadd.s32 %s1490, %s1491
        %s1493 = smul.addr %s1492, 8
        %s1494 = scalar_lea.vmem %s3, %s1493
      $region60: #{residual_block_forward.3} parent=55 // pred_fallthru
        _
      // Predicated region
      $region61: #{residual_block_forward.3} parent=55 // pred_check
        %p1495 = pneg %p166
      $region62: #{residual_block_forward.3} parent=55 // pred_check_branch
        %1497 = sbr.rel (%p1495) target = $region64
      $region63: #{residual_block_forward.3} parent=55 // pred_region
        %p1498 = scmp.lt.s32.totalorder %s24, 1
        %s1499 = scalar_select %p1498, %s24, 1
        %p1500 = scmp.lt.s32.totalorder %s25, 7
        %s1501 = scalar_select %p1500, %s25, 7
        %s1502 = smul.addr %s1499, 8
        %s1503 = sadd.s32 %s1501, %s1502
        %s1504 = smul.addr %s1503, 2
        %s1505 = scalar_lea.vmem %s4, %s1504
      $region64: #{residual_block_forward.3} parent=55 // pred_fallthru
        _
    $region56: #{residual_block_forward.3} parent=5 // pred_fallthru
      _
  $region6: #{residual_block_forward.3} parent=0 // loop_footer
    %s15 = sadd.s32 1, %s11
  $region7: #{residual_block_forward.3} parent=0 // loop_footer_branch
    %10 = sbr.rel target = $region3
  $region8: #{residual_block_forward.3} parent=0 // loop_exit
    _

// kernel: residual_block_forward.5
$region0: #{residual_block_forward.5}
  #allocation0 [shape = 'u32[]', space=smem, size = 0x4, offset = 0x4, fixed_abs, tag = 'smem constant byte address 0x4 - core index']
  #allocation1 [shape = 'u32[144,128]{1,0:T(1,128)}', space=vmem, size = 0x12000, scoped, tag = 'internal scratch']
  %s0 = inlined_call_operand.vmem [shape: f32[2,8,64,128], index: 0, kind: input, shape index: {}]
  %s1 = inlined_call_operand.vmem [shape: f32[1,128], index: 1, kind: input, shape index: {}]
  %s2 = inlined_call_operand.vmem [shape: f32[1,128], index: 2, kind: input, shape index: {}]
  %s3 = inlined_call_operand.vmem [shape: f32[2,8,64,128], index: 3, kind: input, shape index: {}]
  %s4 = inlined_call_operand.vmem [shape: bf16[128,128], index: 4, kind: input, shape index: {}]
  %s5 = inlined_call_operand.vmem [shape: f32[1,128], index: 5, kind: input, shape index: {}]
  %s6 = inlined_call_operand.vmem [shape: f32[2,8,64,128], index: 6, kind: output, shape index: {}]
  %s7 = sld [smem:[#allocation0]]
  $region57: #{residual_block_forward.5} parent=0
    _
  %s9 = ssub.s32 1, %s7
  %s10 = scalar_select 0, %s9, %s7
  loop: start=0, step=1, limit=18
  $region2: #{residual_block_forward.5} parent=0 // loop_pre_header
    _
  $region3: #{residual_block_forward.5} parent=0 // loop_header
    %s12 = sphi 0, %s16
    %p13 = scmp.ge.s32.totalorder %s12, 18
    %s19 = sphi 0, %s31
    %s20 = sphi 0, %s27
    %s21 = sphi 0, %s19
    %s22 = sphi 0, %s20
    %s23 = sphi 0, %s21
    %s24 = sphi 0, %s22
    %s36 = sphi 0, %s38
    %s39 = sphi 0, %s36
    %s40 = sphi 0, %s39
    %s56 = sphi 0, %s40
    %s60 = sphi 0, %s60
    %s62 = sphi 0, %s60
    %s63 = sphi 0, %s62
    %s77 = sphi 0, %s63
    %s81 = sphi 0, %s81
    %s83 = sphi 0, %s81
    %s84 = sphi 0, %s83
    %s98 = sphi 0, %s84
    %s106 = sphi 0, %s108
    %s109 = sphi 0, %s106
    %s110 = sphi 0, %s109
    %s126 = sphi 0, %s110
    %s130 = sphi 0, %s130
    %s132 = sphi 0, %s130
    %s133 = sphi 0, %s132
    %s147 = sphi 0, %s133
    %s151 = sphi 0, %s151
    %s153 = sphi 0, %s151
    %s154 = sphi 0, %s153
    %s168 = sphi 0, %s154
    %s176 = sphi 0, %s178
    %s179 = sphi 0, %s176
    %s180 = sphi 0, %s179
    %s196 = sphi 0, %s180
  $region4: #{residual_block_forward.5} parent=0 // loop_header_branch
    %15 = sbr.rel (%p13) target = $region8
  $region5: #{residual_block_forward.5} parent=0 // loop_body
    %s17 = ssub.s32 %s12, 1
    %s18 = ssub.s32 %s12, 2
    %s25 = sadd.s32 1, %s20
    %p26 = scmp.ge.s32.totalorder %s25, 8
    %s27 = scalar_select %p26, 0, %s25
    %s28 = sadd.s32 1, %s19
    %s29 = scalar_select %p26, %s28, %s19
    %p30 = scmp.ge.s32.totalorder %s29, 2
    %s31 = scalar_select %p30, 0, %s29
    %s32 = ssub.s32 %s19, %s31
    %s33 = ssub.s32 %s20, %s27
    %s34 = sor.u32 %s32, %s33
    %p35 = scmp.eq.s32.totalorder %s34, 0
    %s37 = sadd.s32 %s36, 1
    %s38 = scalar_select %p35, %s36, %s37
    %p41 = pneg %p35
    %p42 = scmp.eq.s32.totalorder %s12, 15
    %p43 = por %p41, %p42
    %p44 = scmp.ne.s32.totalorder %s36, %s39
    %p45 = scmp.eq.s32.totalorder %s12, 0
    %p46 = por %p44, %p45
    %p47 = scmp.ne.s32.totalorder %s36, %s39
    %p48 = scmp.eq.s32.totalorder %s17, 15
    %p49 = por %p47, %p48
    %p50 = scmp.ne.s32.totalorder %s39, %s40
    %p51 = scmp.eq.s32.totalorder %s17, 0
    %p52 = por %p50, %p51
    %p53 = scmp.ne.s32.totalorder %s39, %s40
    %p54 = scmp.eq.s32.totalorder %s18, 15
    %p55 = por %p53, %p54
    %p57 = scmp.ne.s32.totalorder %s40, %s56
    %p58 = scmp.eq.s32.totalorder %s18, 0
    %p59 = por %p57, %p58
    %s61 = sadd.s32 %s60, 1
    %p64 = scmp.eq.s32.totalorder %s12, 15
    %p65 = scmp.ne.s32.totalorder %s60, %s62
    %p66 = scmp.eq.s32.totalorder %s12, 0
    %p67 = por %p65, %p66
    %p68 = scmp.ne.s32.totalorder %s60, %s62
    %p69 = scmp.eq.s32.totalorder %s17, 15
    %p70 = por %p68, %p69
    %p71 = scmp.ne.s32.totalorder %s62, %s63
    %p72 = scmp.eq.s32.totalorder %s17, 0
    %p73 = por %p71, %p72
    %p74 = scmp.ne.s32.totalorder %s62, %s63
    %p75 = scmp.eq.s32.totalorder %s18, 15
    %p76 = por %p74, %p75
    %p78 = scmp.ne.s32.totalorder %s63, %s77
    %p79 = scmp.eq.s32.totalorder %s18, 0
    %p80 = por %p78, %p79
    %s82 = sadd.s32 %s81, 1
    %p85 = scmp.eq.s32.totalorder %s12, 15
    %p86 = scmp.ne.s32.totalorder %s81, %s83
    %p87 = scmp.eq.s32.totalorder %s12, 0
    %p88 = por %p86, %p87
    %p89 = scmp.ne.s32.totalorder %s81, %s83
    %p90 = scmp.eq.s32.totalorder %s17, 15
    %p91 = por %p89, %p90
    %p92 = scmp.ne.s32.totalorder %s83, %s84
    %p93 = scmp.eq.s32.totalorder %s17, 0
    %p94 = por %p92, %p93
    %p95 = scmp.ne.s32.totalorder %s83, %s84
    %p96 = scmp.eq.s32.totalorder %s18, 15
    %p97 = por %p95, %p96
    %p99 = scmp.ne.s32.totalorder %s84, %s98
    %p100 = scmp.eq.s32.totalorder %s18, 0
    %p101 = por %p99, %p100
    %s102 = ssub.s32 %s19, %s31
    %s103 = ssub.s32 %s20, %s27
    %s104 = sor.u32 %s102, %s103
    %p105 = scmp.eq.s32.totalorder %s104, 0
    %s107 = sadd.s32 %s106, 1
    %s108 = scalar_select %p105, %s106, %s107
    %p111 = pneg %p105
    %p112 = scmp.eq.s32.totalorder %s12, 15
    %p113 = por %p111, %p112
    %p114 = scmp.ne.s32.totalorder %s106, %s109
    %p115 = scmp.eq.s32.totalorder %s12, 0
    %p116 = por %p114, %p115
    %p117 = scmp.ne.s32.totalorder %s106, %s109
    %p118 = scmp.eq.s32.totalorder %s17, 15
    %p119 = por %p117, %p118
    %p120 = scmp.ne.s32.totalorder %s109, %s110
    %p121 = scmp.eq.s32.totalorder %s17, 0
    %p122 = por %p120, %p121
    %p123 = scmp.ne.s32.totalorder %s109, %s110
    %p124 = scmp.eq.s32.totalorder %s18, 15
    %p125 = por %p123, %p124
    %p127 = scmp.ne.s32.totalorder %s110, %s126
    %p128 = scmp.eq.s32.totalorder %s18, 0
    %p129 = por %p127, %p128
    %s131 = sadd.s32 %s130, 1
    %p134 = scmp.eq.s32.totalorder %s12, 15
    %p135 = scmp.ne.s32.totalorder %s130, %s132
    %p136 = scmp.eq.s32.totalorder %s12, 0
    %p137 = por %p135, %p136
    %p138 = scmp.ne.s32.totalorder %s130, %s132
    %p139 = scmp.eq.s32.totalorder %s17, 15
    %p140 = por %p138, %p139
    %p141 = scmp.ne.s32.totalorder %s132, %s133
    %p142 = scmp.eq.s32.totalorder %s17, 0
    %p143 = por %p141, %p142
    %p144 = scmp.ne.s32.totalorder %s132, %s133
    %p145 = scmp.eq.s32.totalorder %s18, 15
    %p146 = por %p144, %p145
    %p148 = scmp.ne.s32.totalorder %s133, %s147
    %p149 = scmp.eq.s32.totalorder %s18, 0
    %p150 = por %p148, %p149
    %s152 = sadd.s32 %s151, 1
    %p155 = scmp.eq.s32.totalorder %s12, 15
    %p156 = scmp.ne.s32.totalorder %s151, %s153
    %p157 = scmp.eq.s32.totalorder %s12, 0
    %p158 = por %p156, %p157
    %p159 = scmp.ne.s32.totalorder %s151, %s153
    %p160 = scmp.eq.s32.totalorder %s17, 15
    %p161 = por %p159, %p160
    %p162 = scmp.ne.s32.totalorder %s153, %s154
    %p163 = scmp.eq.s32.totalorder %s17, 0
    %p164 = por %p162, %p163
    %p165 = scmp.ne.s32.totalorder %s153, %s154
    %p166 = scmp.eq.s32.totalorder %s18, 15
    %p167 = por %p165, %p166
    %p169 = scmp.ne.s32.totalorder %s154, %s168
    %p170 = scmp.eq.s32.totalorder %s18, 0
    %p171 = por %p169, %p170
    %s172 = ssub.s32 %s19, %s31
    %s173 = ssub.s32 %s20, %s27
    %s174 = sor.u32 %s172, %s173
    %p175 = scmp.eq.s32.totalorder %s174, 0
    %s177 = sadd.s32 %s176, 1
    %s178 = scalar_select %p175, %s176, %s177
    %p181 = pneg %p175
    %p182 = scmp.eq.s32.totalorder %s12, 15
    %p183 = por %p181, %p182
    %p184 = scmp.ne.s32.totalorder %s176, %s179
    %p185 = scmp.eq.s32.totalorder %s12, 0
    %p186 = por %p184, %p185
    %p187 = scmp.ne.s32.totalorder %s176, %s179
    %p188 = scmp.eq.s32.totalorder %s17, 15
    %p189 = por %p187, %p188
    %p190 = scmp.ne.s32.totalorder %s179, %s180
    %p191 = scmp.eq.s32.totalorder %s17, 0
    %p192 = por %p190, %p191
    %p193 = scmp.ne.s32.totalorder %s179, %s180
    %p194 = scmp.eq.s32.totalorder %s18, 15
    %p195 = por %p193, %p194
    %p197 = scmp.ne.s32.totalorder %s180, %s196
    %p198 = scmp.eq.s32.totalorder %s18, 0
    %p199 = por %p197, %p198
    %p200 = scmp.le.s32.totalorder 1, %s12
    %p201 = scmp.lt.s32.totalorder %s12, 17
    %p202 = pnand %p200, %p201
    %p203 = pneg %p202
    // Predicated region
    $region9: #{residual_block_forward.5} parent=5 // pred_check
      _
    $region10: #{residual_block_forward.5} parent=5 // pred_check_branch
      %205 = sbr.rel (%p202) target = $region12
    $region11: #{residual_block_forward.5} parent=5 // pred_region
      %s206 = ssub.s32 %s12, 1
      // Predicated region
      $region13: #{residual_block_forward.5} parent=11 // pred_check
        %p207 = pneg %p73
      $region14: #{residual_block_forward.5} parent=11 // pred_check_branch
        %209 = sbr.rel (%p207) target = $region16
      $region15: #{residual_block_forward.5} parent=11 // pred_region
        _
      $region16: #{residual_block_forward.5} parent=11 // pred_fallthru
        _
      // Predicated region
      $region17: #{residual_block_forward.5} parent=11 // pred_check
        %p210 = pneg %p94
      $region18: #{residual_block_forward.5} parent=11 // pred_check_branch
        %212 = sbr.rel (%p210) target = $region20
      $region19: #{residual_block_forward.5} parent=11 // pred_region
        _
      $region20: #{residual_block_forward.5} parent=11 // pred_fallthru
        _
      // Predicated region
      $region21: #{residual_block_forward.5} parent=11 // pred_check
        %p213 = pneg %p143
      $region22: #{residual_block_forward.5} parent=11 // pred_check_branch
        %215 = sbr.rel (%p213) target = $region24
      $region23: #{residual_block_forward.5} parent=11 // pred_region
        _
      $region24: #{residual_block_forward.5} parent=11 // pred_fallthru
        _
      // Predicated region
      $region25: #{residual_block_forward.5} parent=11 // pred_check
        %p216 = pneg %p164
      $region26: #{residual_block_forward.5} parent=11 // pred_check_branch
        %218 = sbr.rel (%p216) target = $region28
      $region27: #{residual_block_forward.5} parent=11 // pred_region
        _
      $region28: #{residual_block_forward.5} parent=11 // pred_fallthru
        _
    $region12: #{residual_block_forward.5} parent=5 // pred_fallthru
      _
    %p219 = scmp.lt.s32.totalorder %s12, 16
    // Predicated region
    $region29: #{residual_block_forward.5} parent=5 // pred_check
      %p220 = pneg %p219
    $region30: #{residual_block_forward.5} parent=5 // pred_check_branch
      %222 = sbr.rel (%p220) target = $region32
    $region31: #{residual_block_forward.5} parent=5 // pred_region
      // Predicated region
      $region33: #{residual_block_forward.5} parent=31 // pred_check
        %p223 = pneg %p46
      $region34: #{residual_block_forward.5} parent=31 // pred_check_branch
        %225 = sbr.rel (%p223) target = $region36
      $region35: #{residual_block_forward.5} parent=31 // pred_region
        %p226 = scmp.lt.s32.totalorder %s19, 1
        %s227 = scalar_select %p226, %s19, 1
        %p228 = scmp.lt.s32.totalorder %s20, 7
        %s229 = scalar_select %p228, %s20, 7
        %s230 = smul.addr %s229, 8
        %s231 = smul.addr %s227, 64
        %s232 = sadd.s32 %s230, %s231
        %s233 = smul.addr %s232, 8
        %s234 = scalar_lea.vmem %s0, %s233
      $region36: #{residual_block_forward.5} parent=31 // pred_fallthru
        _
      // Predicated region
      $region37: #{residual_block_forward.5} parent=31 // pred_check
        %p235 = pneg %p116
      $region38: #{residual_block_forward.5} parent=31 // pred_check_branch
        %237 = sbr.rel (%p235) target = $region40
      $region39: #{residual_block_forward.5} parent=31 // pred_region
        %p238 = scmp.lt.s32.totalorder %s19, 1
        %s239 = scalar_select %p238, %s19, 1
        %p240 = scmp.lt.s32.totalorder %s20, 7
        %s241 = scalar_select %p240, %s20, 7
        %s242 = smul.addr %s241, 8
        %s243 = smul.addr %s239, 64
        %s244 = sadd.s32 %s242, %s243
        %s245 = smul.addr %s244, 8
        %s246 = scalar_lea.vmem %s3, %s245
      $region40: #{residual_block_forward.5} parent=31 // pred_fallthru
        _
    $region32: #{residual_block_forward.5} parent=5 // pred_fallthru
      _
    %p247 = scmp.le.s32.totalorder 1, %s12
    %p248 = scmp.lt.s32.totalorder %s12, 17
    %p249 = pnand %p247, %p248
    %p250 = pneg %p249
    // Predicated region
    $region41: #{residual_block_forward.5} parent=5 // pred_check
      _
    $region42: #{residual_block_forward.5} parent=5 // pred_check_branch
      %252 = sbr.rel (%p249) target = $region44
    $region43: #{residual_block_forward.5} parent=5 // pred_region
      %s253 = ssub.s32 %s12, 1
      %p254 = scmp.lt.s32.totalorder %s21, 1
      %s255 = scalar_select %p254, %s21, 1
      %p256 = scmp.lt.s32.totalorder %s22, 7
      %s257 = scalar_select %p256, %s22, 7
      %s258 = smul.addr %s257, 8
      %s259 = smul.addr %s255, 64
      %s260 = sadd.s32 %s258, %s259
      %s261 = smul.addr %s260, 8
      %s262 = scalar_lea.vmem %s0, %s261
      %p263 = pneg %p52
      %p264 = pneg %p49
      %p265 = pneg %p73
      %p266 = pneg %p70
      %p267 = pneg %p94
      %p268 = pneg %p91
      %p269 = scmp.lt.s32.totalorder %s21, 1
      %s270 = scalar_select %p269, %s21, 1
      %p271 = scmp.lt.s32.totalorder %s22, 7
      %s272 = scalar_select %p271, %s22, 7
      %s273 = smul.addr %s272, 8
      %s274 = smul.addr %s270, 64
      %s275 = sadd.s32 %s273, %s274
      %s276 = smul.addr %s275, 8
      %s277 = scalar_lea.vmem %s3, %s276
      %p278 = pneg %p122
      %p279 = pneg %p119
      %p280 = pneg %p143
      %p281 = pneg %p140
      %p282 = pneg %p164
      %p283 = pneg %p161
      %p284 = pneg %p192
      %p285 = pneg %p189
      %p286 = scmp.lt.s32.totalorder %s21, 1
      %s287 = scalar_select %p286, %s21, 1
      %p288 = scmp.lt.s32.totalorder %s22, 7
      %s289 = scalar_select %p288, %s22, 7
      %s290 = smul.addr %s289, 8
      %s291 = smul.addr %s287, 64
      %s292 = sadd.s32 %s290, %s291
      %s293 = smul.addr %s292, 8
      %s294 = scalar_lea.vmem %s6, %s293
      %p295 = scmp.lt.s32.totalorder %s21, 1
      %s296 = scalar_select %p295, %s21, 1
      %p297 = scmp.lt.s32.totalorder %s22, 7
      %s298 = scalar_select %p297, %s22, 7
      %s299 = smul.addr %s298, 8
      %s300 = smul.addr %s296, 64
      %s301 = sadd.s32 %s299, %s300
      %s302 = smul.addr %s301, 8
      %s303 = scalar_lea.vmem %s0, %s302
      %p304 = scmp.lt.s32.totalorder %s21, 1
      %s305 = scalar_select %p304, %s21, 1
      %p306 = scmp.lt.s32.totalorder %s22, 7
      %s307 = scalar_select %p306, %s22, 7
      %s308 = smul.addr %s307, 8
      %s309 = smul.addr %s305, 64
      %s310 = sadd.s32 %s308, %s309
      %s311 = smul.addr %s310, 8
      %s312 = scalar_lea.vmem %s3, %s311
      %p313 = scmp.lt.s32.totalorder %s21, 1
      %s314 = scalar_select %p313, %s21, 1
      %p315 = scmp.lt.s32.totalorder %s22, 7
      %s316 = scalar_select %p315, %s22, 7
      %s317 = smul.addr %s316, 8
      %s318 = smul.addr %s314, 64
      %s319 = sadd.s32 %s317, %s318
      %s320 = smul.addr %s319, 8
      %s321 = scalar_lea.vmem %s6, %s320
      %v323 = vld [vmem:[%s303] sm:$0xff]
      %v324 = vld [vmem:[%s303 + $0x8] sm:$0xff]
      %v325 = vld [vmem:[%s303 + $0x10] sm:$0xff]
      %v326 = vld [vmem:[%s303 + $0x18] sm:$0xff]
      %v327 = vld [vmem:[%s303 + $0x20] sm:$0xff]
      %v328 = vld [vmem:[%s303 + $0x28] sm:$0xff]
      %v329 = vld [vmem:[%s303 + $0x30] sm:$0xff]
      %v330 = vld [vmem:[%s303 + $0x38] sm:$0xff]
      %v331 = vld [vmem:[%s1] sm:$0x1]
      %v333 = vlaneseq
      %v334 = vshrl.u32 %v333, 7
      %v335 = vsub.s32 0, %v334
      %v336 = vrot.slane %v331, %v335
      %v338 = vmul.f32 %v323, %v336
      %v339 = vmul.f32 %v324, %v336
      %v340 = vmul.f32 %v325, %v336
      %v341 = vmul.f32 %v326, %v336
      %v342 = vmul.f32 %v327, %v336
      %v343 = vmul.f32 %v328, %v336
      %v344 = vmul.f32 %v329, %v336
      %v345 = vmul.f32 %v330, %v336
      %v346 = vld [vmem:[%s2] sm:$0x1]
      %v348 = vlaneseq
      %v349 = vshrl.u32 %v348, 7
      %v350 = vsub.s32 0, %v349
      %v351 = vrot.slane %v346, %v350
      %v353 = vadd.f32 %v338, %v351
      %v354 = vadd.f32 %v339, %v351
      %v355 = vadd.f32 %v340, %v351
      %v356 = vadd.f32 %v341, %v351
      %v357 = vadd.f32 %v342, %v351
      %v358 = vadd.f32 %v343, %v351
      %v359 = vadd.f32 %v344, %v351
      %v360 = vadd.f32 %v345, %v351
      %v361 = vld [vmem:[%s312] sm:$0xff]
      %v362 = vld [vmem:[%s312 + $0x8] sm:$0xff]
      %v363 = vld [vmem:[%s312 + $0x10] sm:$0xff]
      %v364 = vld [vmem:[%s312 + $0x18] sm:$0xff]
      %v365 = vld [vmem:[%s312 + $0x20] sm:$0xff]
      %v366 = vld [vmem:[%s312 + $0x28] sm:$0xff]
      %v367 = vld [vmem:[%s312 + $0x30] sm:$0xff]
      %v368 = vld [vmem:[%s312 + $0x38] sm:$0xff]
      %v369 = vpack.c.bf16 %v362, %v361
      %v370 = vpack.c.bf16 %v364, %v363
      %v371 = vpack.c.bf16 %v366, %v365
      %v372 = vpack.c.bf16 %v368, %v367
      %v373 = vld [vmem:[%s4] sm:$0xf]
      %v374 = vld [vmem:[%s4 + $0x4] sm:$0xf]
      %v375 = vld [vmem:[%s4 + $0x8] sm:$0xf]
      %v376 = vld [vmem:[%s4 + $0xc] sm:$0xf]
      %v377 = vld [vmem:[%s4 + $0x10] sm:$0xf]
      %v378 = vld [vmem:[%s4 + $0x14] sm:$0xf]
      %v379 = vld [vmem:[%s4 + $0x18] sm:$0xf]
      %v380 = vld [vmem:[%s4 + $0x1c] sm:$0xf]
      %v381 = vld [vmem:[%s4 + $0x20] sm:$0xf]
      %v382 = vld [vmem:[%s4 + $0x24] sm:$0xf]
      %v383 = vld [vmem:[%s4 + $0x28] sm:$0xf]
      %v384 = vld [vmem:[%s4 + $0x2c] sm:$0xf]
      %v385 = vld [vmem:[%s4 + $0x30] sm:$0xf]
      %v386 = vld [vmem:[%s4 + $0x34] sm:$0xf]
      %v387 = vld [vmem:[%s4 + $0x38] sm:$0xf]
      %v388 = vld [vmem:[%s4 + $0x3c] sm:$0xf]
      %v389 = vld [vmem:[%s5] sm:$0x1]
      %v391 = vlaneseq
      %v392 = vshrl.u32 %v391, 7
      %v393 = vsub.s32 0, %v392
      %v394 = vrot.slane %v389, %v393
      %v412 = vunpack.c.l.b16 %v373
      %v413 = vunpack.c.l.b16 %v374
      %v414 = vunpack.c.l.b16 %v375
      %v415 = vunpack.c.l.b16 %v376
      %v416 = vunpack.c.l.b16 %v377
      %v417 = vunpack.c.l.b16 %v378
      %v418 = vunpack.c.l.b16 %v379
      %v419 = vunpack.c.l.b16 %v380
      %v420 = vunpack.c.l.b16 %v381
      %v421 = vunpack.c.l.b16 %v382
      %v422 = vunpack.c.l.b16 %v383
      %v423 = vunpack.c.l.b16 %v384
      %v424 = vunpack.c.l.b16 %v385
      %v425 = vunpack.c.l.b16 %v386
      %v426 = vunpack.c.l.b16 %v387
      %v427 = vunpack.c.l.b16 %v388
      %v428 = vpack.c.b16 %v413, %v412
      %v429 = vpack.c.b16 %v415, %v414
      %v430 = vpack.c.b16 %v417, %v416
      %v431 = vpack.c.b16 %v419, %v418
      %v432 = vpack.c.b16 %v421, %v420
      %v433 = vpack.c.b16 %v423, %v422
      %v434 = vpack.c.b16 %v425, %v424
      %v435 = vpack.c.b16 %v427, %v426
      %444 = vmatprep.subr.bf16.mxu0 0
      %445 = vmatpush1.bf16.msra.mxu0 %v428
      %446 = vmatprep.subr.bf16.mxu0 0
      %447 = vmatpush1.bf16.msra.mxu0 %v429
      %448 = vmatprep.subr.bf16.mxu0 0
      %449 = vmatpush1.bf16.msra.mxu0 %v430
      %450 = vmatprep.subr.bf16.mxu0 0
      %451 = vmatpush1.bf16.msra.mxu0 %v431
      %452 = vmatprep.subr.bf16.mxu0 0
      %453 = vmatpush1.bf16.msra.mxu0 %v432
      %454 = vmatprep.subr.bf16.mxu0 0
      %455 = vmatpush1.bf16.msra.mxu0 %v433
      %456 = vmatprep.subr.bf16.mxu0 0
      %457 = vmatpush1.bf16.msra.mxu0 %v434
      %458 = vmatprep.subr.bf16.mxu0 0
      %459 = vmatpush1.bf16.msra.mxu0 %v435
      %460 = vmatprep.subr.bf16.mxu0 0
      %461 = vmatpush1.bf16.msra.mxu0 0
      %462 = vmatprep.subr.bf16.mxu0 0
      %463 = vmatpush1.bf16.msra.mxu0 0
      %464 = vmatprep.subr.bf16.mxu0 0
      %465 = vmatpush1.bf16.msra.mxu0 0
      %466 = vmatprep.subr.bf16.mxu0 0
      %467 = vmatpush1.bf16.msra.mxu0 0
      %468 = vmatprep.subr.bf16.mxu0 0
      %469 = vmatpush1.bf16.msra.mxu0 0
      %470 = vmatprep.subr.bf16.mxu0 0
      %471 = vmatpush1.bf16.msra.mxu0 0
      %472 = vmatprep.subr.bf16.mxu0 0
      %473 = vmatpush1.bf16.msra.mxu0 0
      %474 = vmatprep.subr.bf16.mxu0 0
      %475 = vmatpush1.bf16.msra.mxu0 0
      %476 = vmatprep.mubr.bf16.mxu0 0
      %477 = vmatmul.mubr.bf16.gmra.mrb[0].mxu0 %v369
      %v478 = vpop.f32.mrb[0].mxu0
      %v479 = vadd.f32 %v394, %v478
      %v480 = vpop.f32.mrb[0].mxu0
      %v481 = vpop.f32.mrb[0].mxu0
      %v482 = vadd.f32 %v394, %v481
      %v483 = vpop.f32.mrb[0].mxu0
      %484 = vmatprep.mubr.bf16.mxu0 0
      %485 = vmatmul.mubr.bf16.gmra.mrb[0].mxu0 %v370
      %v486 = vpop.f32.mrb[0].mxu0
      %v487 = vadd.f32 %v394, %v486
      %v488 = vpop.f32.mrb[0].mxu0
      %v489 = vpop.f32.mrb[0].mxu0
      %v490 = vadd.f32 %v394, %v489
      %v491 = vpop.f32.mrb[0].mxu0
      %492 = vmatprep.mubr.bf16.mxu0 0
      %493 = vmatmul.mubr.bf16.gmra.mrb[0].mxu0 %v371
      %v494 = vpop.f32.mrb[0].mxu0
      %v495 = vadd.f32 %v394, %v494
      %v496 = vpop.f32.mrb[0].mxu0
      %v497 = vpop.f32.mrb[0].mxu0
      %v498 = vadd.f32 %v394, %v497
      %v499 = vpop.f32.mrb[0].mxu0
      %500 = vmatprep.mubr.bf16.mxu0 0
      %501 = vmatmul.mubr.bf16.gmra.mrb[0].mxu0 %v372
      %v502 = vpop.f32.mrb[0].mxu0
      %v503 = vadd.f32 %v394, %v502
      %v504 = vpop.f32.mrb[0].mxu0
      %v505 = vpop.f32.mrb[0].mxu0
      %v506 = vadd.f32 %v394, %v505
      %v507 = vpop.f32.mrb[0].mxu0
      %508 = vdwg.mxu0
      %v509 = vadd.f32 %v353, %v479
      %v510 = vadd.f32 %v354, %v482
      %v511 = vadd.f32 %v355, %v487
      %v512 = vadd.f32 %v356, %v490
      %v513 = vadd.f32 %v357, %v495
      %v514 = vadd.f32 %v358, %v498
      %v515 = vadd.f32 %v359, %v503
      %v516 = vadd.f32 %v360, %v506
      %v517 = vmax.f32 %v509, 0.0
      %v518 = vmax.f32 %v510, 0.0
      %v519 = vmax.f32 %v511, 0.0
      %v520 = vmax.f32 %v512, 0.0
      %v521 = vmax.f32 %v513, 0.0
      %v522 = vmax.f32 %v514, 0.0
      %v523 = vmax.f32 %v515, 0.0
      %v524 = vmax.f32 %v516, 0.0
      %525 = vst [vmem:[%s321] sm:$0xff] %v517
      %526 = vst [vmem:[%s321 + $0x8] sm:$0xff] %v518
      %527 = vst [vmem:[%s321 + $0x10] sm:$0xff] %v519
      %528 = vst [vmem:[%s321 + $0x18] sm:$0xff] %v520
      %529 = vst [vmem:[%s321 + $0x20] sm:$0xff] %v521
      %530 = vst [vmem:[%s321 + $0x28] sm:$0xff] %v522
      %531 = vst [vmem:[%s321 + $0x30] sm:$0xff] %v523
      %532 = vst [vmem:[%s321 + $0x38] sm:$0xff] %v524
      %p533 = scmp.lt.s32.totalorder %s21, 1
      %s534 = scalar_select %p533, %s21, 1
      %p535 = scmp.lt.s32.totalorder %s22, 7
      %s536 = scalar_select %p535, %s22, 7
      %s537 = smul.addr %s536, 8
      %s538 = smul.addr %s534, 64
      %s539 = sadd.s32 %s537, %s538
      %s540 = smul.addr %s539, 8
      %s541 = scalar_lea.vmem %s6, %s540
      // Predicated region
      $region45: #{residual_block_forward.5} parent=43 // pred_check
        %p542 = pneg %p189
      $region46: #{residual_block_forward.5} parent=43 // pred_check_branch
        %544 = sbr.rel (%p542) target = $region48
      $region47: #{residual_block_forward.5} parent=43 // pred_region
        _
      $region48: #{residual_block_forward.5} parent=43 // pred_fallthru
        _
    $region44: #{residual_block_forward.5} parent=5 // pred_fallthru
      _
    %p545 = scmp.le.s32.totalorder 2, %s12
    // Predicated region
    $region49: #{residual_block_forward.5} parent=5 // pred_check
      %p546 = pneg %p545
    $region50: #{residual_block_forward.5} parent=5 // pred_check_branch
      %548 = sbr.rel (%p546) target = $region52
    $region51: #{residual_block_forward.5} parent=5 // pred_region
      %s549 = ssub.s32 %s12, 2
      // Predicated region
      $region53: #{residual_block_forward.5} parent=51 // pred_check
        %p550 = pneg %p195
      $region54: #{residual_block_forward.5} parent=51 // pred_check_branch
        %552 = sbr.rel (%p550) target = $region56
      $region55: #{residual_block_forward.5} parent=51 // pred_region
        %p553 = scmp.lt.s32.totalorder %s23, 1
        %s554 = scalar_select %p553, %s23, 1
        %p555 = scmp.lt.s32.totalorder %s24, 7
        %s556 = scalar_select %p555, %s24, 7
        %s557 = smul.addr %s556, 8
        %s558 = smul.addr %s554, 64
        %s559 = sadd.s32 %s557, %s558
        %s560 = smul.addr %s559, 8
        %s561 = scalar_lea.vmem %s6, %s560
      $region56: #{residual_block_forward.5} parent=51 // pred_fallthru
        _
    $region52: #{residual_block_forward.5} parent=5 // pred_fallthru
      _
  $region6: #{residual_block_forward.5} parent=0 // loop_footer
    %s16 = sadd.s32 1, %s12
  $region7: #{residual_block_forward.5} parent=0 // loop_footer_branch
    %11 = sbr.rel target = $region3
  $region8: #{residual_block_forward.5} parent=0 // loop_exit
    _

// kernel: residual_block_forward.4
$region0: #{residual_block_forward.4}
  #allocation0 [shape = 'u32[]', space=smem, size = 0x4, offset = 0x4, fixed_abs, tag = 'smem constant byte address 0x4 - core index']
  #allocation1 [shape = 'u32[144,128]{1,0:T(1,128)}', space=vmem, size = 0x12000, scoped, tag = 'internal scratch']
  #allocation2 [shape = 'f32[64,128]{1,0:T(8,128)}', space=vmem, size = 0x8000, scoped, tag = 'scratch operand']
  %s0 = inlined_call_operand.vmem [shape: f32[2,10,10,10,128], index: 0, kind: input, shape index: {}]
  %s1 = inlined_call_operand.vmem [shape: bf16[3,1152,128], index: 1, kind: input, shape index: {}]
  %s2 = inlined_call_operand.vmem [shape: f32[1,128], index: 2, kind: input, shape index: {}]
  %s3 = inlined_call_operand.vmem [shape: f32[1,128], index: 3, kind: input, shape index: {}]
  %s4 = inlined_call_operand.vmem [shape: f32[1,128], index: 4, kind: input, shape index: {}]
  %s5 = inlined_call_operand.vmem [shape: f32[2,8,64,128], index: 5, kind: output, shape index: {0}]
  %s6 = inlined_call_operand.vmem [shape: f32[2,8,2,128], index: 6, kind: output, shape index: {1}]
  %7 = xla_tuple %s5, %s6
  %s8 = sld [smem:[#allocation0]]
  $region73: #{residual_block_forward.4} parent=0
    _
  %s10 = ssub.s32 1, %s8
  %s11 = scalar_select 0, %s10, %s8
  loop: start=0, step=1, limit=50
  $region2: #{residual_block_forward.4} parent=0 // loop_pre_header
    _
  $region3: #{residual_block_forward.4} parent=0 // loop_header
    %s13 = sphi 0, %s17
    %p14 = scmp.ge.s32.totalorder %s13, 50
    %s20 = sphi 0, %s39
    %s21 = sphi 0, %s35
    %s22 = sphi 0, %s31
    %s23 = sphi 0, %s20
    %s24 = sphi 0, %s21
    %s25 = sphi 0, %s22
    %s26 = sphi 0, %s23
    %s27 = sphi 0, %s24
    %s28 = sphi 0, %s25
    %s46 = sphi 0, %s48
    %s49 = sphi 0, %s46
    %s50 = sphi 0, %s49
    %s66 = sphi 0, %s50
    %s72 = sphi 0, %s74
    %s75 = sphi 0, %s72
    %s76 = sphi 0, %s75
    %s92 = sphi 0, %s76
    %s96 = sphi 0, %s96
    %s98 = sphi 0, %s96
    %s99 = sphi 0, %s98
    %s113 = sphi 0, %s99
    %s117 = sphi 0, %s117
    %s119 = sphi 0, %s117
    %s120 = sphi 0, %s119
    %s134 = sphi 0, %s120
    %s138 = sphi 0, %s138
    %s140 = sphi 0, %s138
    %s141 = sphi 0, %s140
    %s155 = sphi 0, %s141
    %s163 = sphi 0, %s165
    %s166 = sphi 0, %s163
    %s167 = sphi 0, %s166
    %s183 = sphi 0, %s167
    %s191 = sphi 0, %s193
    %s194 = sphi 0, %s191
    %s195 = sphi 0, %s194
    %s211 = sphi 0, %s195
  $region4: #{residual_block_forward.4} parent=0 // loop_header_branch
    %16 = sbr.rel (%p14) target = $region8
  $region5: #{residual_block_forward.4} parent=0 // loop_body
    %s18 = ssub.s32 %s13, 1
    %s19 = ssub.s32 %s13, 2
    %s29 = sadd.s32 1, %s22
    %p30 = scmp.ge.s32.totalorder %s29, 3
    %s31 = scalar_select %p30, 0, %s29
    %s32 = sadd.s32 1, %s21
    %s33 = scalar_select %p30, %s32, %s21
    %p34 = scmp.ge.s32.totalorder %s33, 8
    %s35 = scalar_select %p34, 0, %s33
    %s36 = sadd.s32 1, %s20
    %s37 = scalar_select %p34, %s36, %s20
    %p38 = scmp.ge.s32.totalorder %s37, 2
    %s39 = scalar_select %p38, 0, %s37
    %s40 = sadd.s32 %s21, %s22
    %s41 = sadd.s32 %s35, %s31
    %s42 = ssub.s32 %s20, %s39
    %s43 = ssub.s32 %s40, %s41
    %s44 = sor.u32 %s42, %s43
    %p45 = scmp.eq.s32.totalorder %s44, 0
    %s47 = sadd.s32 %s46, 1
    %s48 = scalar_select %p45, %s46, %s47
    %p51 = pneg %p45
    %p52 = scmp.eq.s32.totalorder %s13, 47
    %p53 = por %p51, %p52
    %p54 = scmp.ne.s32.totalorder %s46, %s49
    %p55 = scmp.eq.s32.totalorder %s13, 0
    %p56 = por %p54, %p55
    %p57 = scmp.ne.s32.totalorder %s46, %s49
    %p58 = scmp.eq.s32.totalorder %s18, 47
    %p59 = por %p57, %p58
    %p60 = scmp.ne.s32.totalorder %s49, %s50
    %p61 = scmp.eq.s32.totalorder %s18, 0
    %p62 = por %p60, %p61
    %p63 = scmp.ne.s32.totalorder %s49, %s50
    %p64 = scmp.eq.s32.totalorder %s19, 47
    %p65 = por %p63, %p64
    %p67 = scmp.ne.s32.totalorder %s50, %s66
    %p68 = scmp.eq.s32.totalorder %s19, 0
    %p69 = por %p67, %p68
    %s70 = ssub.s32 %s22, %s31
    %p71 = scmp.eq.s32.totalorder %s70, 0
    %s73 = sadd.s32 %s72, 1
    %s74 = scalar_select %p71, %s72, %s73
    %p77 = pneg %p71
    %p78 = scmp.eq.s32.totalorder %s13, 47
    %p79 = por %p77, %p78
    %p80 = scmp.ne.s32.totalorder %s72, %s75
    %p81 = scmp.eq.s32.totalorder %s13, 0
    %p82 = por %p80, %p81
    %p83 = scmp.ne.s32.totalorder %s72, %s75
    %p84 = scmp.eq.s32.totalorder %s18, 47
    %p85 = por %p83, %p84
    %p86 = scmp.ne.s32.totalorder %s75, %s76
    %p87 = scmp.eq.s32.totalorder %s18, 0
    %p88 = por %p86, %p87
    %p89 = scmp.ne.s32.totalorder %s75, %s76
    %p90 = scmp.eq.s32.totalorder %s19, 47
    %p91 = por %p89, %p90
    %p93 = scmp.ne.s32.totalorder %s76, %s92
    %p94 = scmp.eq.s32.totalorder %s19, 0
    %p95 = por %p93, %p94
    %s97 = sadd.s32 %s96, 1
    %p100 = scmp.eq.s32.totalorder %s13, 47
    %p101 = scmp.ne.s32.totalorder %s96, %s98
    %p102 = scmp.eq.s32.totalorder %s13, 0
    %p103 = por %p101, %p102
    %p104 = scmp.ne.s32.totalorder %s96, %s98
    %p105 = scmp.eq.s32.totalorder %s18, 47
    %p106 = por %p104, %p105
    %p107 = scmp.ne.s32.totalorder %s98, %s99
    %p108 = scmp.eq.s32.totalorder %s18, 0
    %p109 = por %p107, %p108
    %p110 = scmp.ne.s32.totalorder %s98, %s99
    %p111 = scmp.eq.s32.totalorder %s19, 47
    %p112 = por %p110, %p111
    %p114 = scmp.ne.s32.totalorder %s99, %s113
    %p115 = scmp.eq.s32.totalorder %s19, 0
    %p116 = por %p114, %p115
    %s118 = sadd.s32 %s117, 1
    %p121 = scmp.eq.s32.totalorder %s13, 47
    %p122 = scmp.ne.s32.totalorder %s117, %s119
    %p123 = scmp.eq.s32.totalorder %s13, 0
    %p124 = por %p122, %p123
    %p125 = scmp.ne.s32.totalorder %s117, %s119
    %p126 = scmp.eq.s32.totalorder %s18, 47
    %p127 = por %p125, %p126
    %p128 = scmp.ne.s32.totalorder %s119, %s120
    %p129 = scmp.eq.s32.totalorder %s18, 0
    %p130 = por %p128, %p129
    %p131 = scmp.ne.s32.totalorder %s119, %s120
    %p132 = scmp.eq.s32.totalorder %s19, 47
    %p133 = por %p131, %p132
    %p135 = scmp.ne.s32.totalorder %s120, %s134
    %p136 = scmp.eq.s32.totalorder %s19, 0
    %p137 = por %p135, %p136
    %s139 = sadd.s32 %s138, 1
    %p142 = scmp.eq.s32.totalorder %s13, 47
    %p143 = scmp.ne.s32.totalorder %s138, %s140
    %p144 = scmp.eq.s32.totalorder %s13, 0
    %p145 = por %p143, %p144
    %p146 = scmp.ne.s32.totalorder %s138, %s140
    %p147 = scmp.eq.s32.totalorder %s18, 47
    %p148 = por %p146, %p147
    %p149 = scmp.ne.s32.totalorder %s140, %s141
    %p150 = scmp.eq.s32.totalorder %s18, 0
    %p151 = por %p149, %p150
    %p152 = scmp.ne.s32.totalorder %s140, %s141
    %p153 = scmp.eq.s32.totalorder %s19, 47
    %p154 = por %p152, %p153
    %p156 = scmp.ne.s32.totalorder %s141, %s155
    %p157 = scmp.eq.s32.totalorder %s19, 0
    %p158 = por %p156, %p157
    %s159 = ssub.s32 %s20, %s39
    %s160 = ssub.s32 %s21, %s35
    %s161 = sor.u32 %s159, %s160
    %p162 = scmp.eq.s32.totalorder %s161, 0
    %s164 = sadd.s32 %s163, 1
    %s165 = scalar_select %p162, %s163, %s164
    %p168 = pneg %p162
    %p169 = scmp.eq.s32.totalorder %s13, 47
    %p170 = por %p168, %p169
    %p171 = scmp.ne.s32.totalorder %s163, %s166
    %p172 = scmp.eq.s32.totalorder %s13, 0
    %p173 = por %p171, %p172
    %p174 = scmp.ne.s32.totalorder %s163, %s166
    %p175 = scmp.eq.s32.totalorder %s18, 47
    %p176 = por %p174, %p175
    %p177 = scmp.ne.s32.totalorder %s166, %s167
    %p178 = scmp.eq.s32.totalorder %s18, 0
    %p179 = por %p177, %p178
    %p180 = scmp.ne.s32.totalorder %s166, %s167
    %p181 = scmp.eq.s32.totalorder %s19, 47
    %p182 = por %p180, %p181
    %p184 = scmp.ne.s32.totalorder %s167, %s183
    %p185 = scmp.eq.s32.totalorder %s19, 0
    %p186 = por %p184, %p185
    %s187 = ssub.s32 %s20, %s39
    %s188 = ssub.s32 %s21, %s35
    %s189 = sor.u32 %s187, %s188
    %p190 = scmp.eq.s32.totalorder %s189, 0
    %s192 = sadd.s32 %s191, 1
    %s193 = scalar_select %p190, %s191, %s192
    %p196 = pneg %p190
    %p197 = scmp.eq.s32.totalorder %s13, 47
    %p198 = por %p196, %p197
    %p199 = scmp.ne.s32.totalorder %s191, %s194
    %p200 = scmp.eq.s32.totalorder %s13, 0
    %p201 = por %p199, %p200
    %p202 = scmp.ne.s32.totalorder %s191, %s194
    %p203 = scmp.eq.s32.totalorder %s18, 47
    %p204 = por %p202, %p203
    %p205 = scmp.ne.s32.totalorder %s194, %s195
    %p206 = scmp.eq.s32.totalorder %s18, 0
    %p207 = por %p205, %p206
    %p208 = scmp.ne.s32.totalorder %s194, %s195
    %p209 = scmp.eq.s32.totalorder %s19, 47
    %p210 = por %p208, %p209
    %p212 = scmp.ne.s32.totalorder %s195, %s211
    %p213 = scmp.eq.s32.totalorder %s19, 0
    %p214 = por %p212, %p213
    %p215 = scmp.le.s32.totalorder 1, %s13
    %p216 = scmp.lt.s32.totalorder %s13, 49
    %p217 = pnand %p215, %p216
    %p218 = pneg %p217
    // Predicated region
    $region9: #{residual_block_forward.4} parent=5 // pred_check
      _
    $region10: #{residual_block_forward.4} parent=5 // pred_check_branch
      %220 = sbr.rel (%p217) target = $region12
    $region11: #{residual_block_forward.4} parent=5 // pred_region
      %s221 = ssub.s32 %s13, 1
      // Predicated region
      $region13: #{residual_block_forward.4} parent=11 // pred_check
        %p222 = pneg %p109
      $region14: #{residual_block_forward.4} parent=11 // pred_check_branch
        %224 = sbr.rel (%p222) target = $region16
      $region15: #{residual_block_forward.4} parent=11 // pred_region
        _
      $region16: #{residual_block_forward.4} parent=11 // pred_fallthru
        _
      // Predicated region
      $region17: #{residual_block_forward.4} parent=11 // pred_check
        %p225 = pneg %p130
      $region18: #{residual_block_forward.4} parent=11 // pred_check_branch
        %227 = sbr.rel (%p225) target = $region20
      $region19: #{residual_block_forward.4} parent=11 // pred_region
        _
      $region20: #{residual_block_forward.4} parent=11 // pred_fallthru
        _
      // Predicated region
      $region21: #{residual_block_forward.4} parent=11 // pred_check
        %p228 = pneg %p151
      $region22: #{residual_block_forward.4} parent=11 // pred_check_branch
        %230 = sbr.rel (%p228) target = $region24
      $region23: #{residual_block_forward.4} parent=11 // pred_region
        _
      $region24: #{residual_block_forward.4} parent=11 // pred_fallthru
        _
    $region12: #{residual_block_forward.4} parent=5 // pred_fallthru
      _
    %p231 = scmp.lt.s32.totalorder %s13, 48
    // Predicated region
    $region25: #{residual_block_forward.4} parent=5 // pred_check
      %p232 = pneg %p231
    $region26: #{residual_block_forward.4} parent=5 // pred_check_branch
      %234 = sbr.rel (%p232) target = $region28
    $region27: #{residual_block_forward.4} parent=5 // pred_region
      // Predicated region
      $region29: #{residual_block_forward.4} parent=27 // pred_check
        %p235 = pneg %p56
      $region30: #{residual_block_forward.4} parent=27 // pred_check_branch
        %237 = sbr.rel (%p235) target = $region32
      $region31: #{residual_block_forward.4} parent=27 // pred_region
        %s238 = sadd.s32 %s21, %s22
        %p239 = scmp.lt.s32.totalorder %s20, 1
        %s240 = scalar_select %p239, %s20, 1
        %p241 = scmp.lt.s32.totalorder %s238, 9
        %s242 = scalar_select %p241, %s238, 9
        %s243 = smul.addr %s242, 20
        %s244 = smul.addr %s240, 200
        %s245 = sadd.s32 %s243, %s244
        %s246 = smul.addr %s245, 8
        %s247 = scalar_lea.vmem %s0, %s246
        %s248 = sadd.s32 %s21, %s22
      $region32: #{residual_block_forward.4} parent=27 // pred_fallthru
        _
      // Predicated region
      $region33: #{residual_block_forward.4} parent=27 // pred_check
        %p249 = pneg %p82
      $region34: #{residual_block_forward.4} parent=27 // pred_check_branch
        %251 = sbr.rel (%p249) target = $region36
      $region35: #{residual_block_forward.4} parent=27 // pred_region
        %p252 = scmp.lt.s32.totalorder %s22, 2
        %s253 = scalar_select %p252, %s22, 2
        %s254 = smul.addr %s253, 144
        %s255 = smul.addr %s254, 4
        %s256 = scalar_lea.vmem %s1, %s255
      $region36: #{residual_block_forward.4} parent=27 // pred_fallthru
        _
    $region28: #{residual_block_forward.4} parent=5 // pred_fallthru
      _
    %p257 = scmp.le.s32.totalorder 1, %s13
    %p258 = scmp.lt.s32.totalorder %s13, 49
    %p259 = pnand %p257, %p258
    %p260 = pneg %p259
    // Predicated region
    $region37: #{residual_block_forward.4} parent=5 // pred_check
      _
    $region38: #{residual_block_forward.4} parent=5 // pred_check_branch
      %262 = sbr.rel (%p259) target = $region40
    $region39: #{residual_block_forward.4} parent=5 // pred_region
      %s263 = ssub.s32 %s13, 1
      %s264 = sadd.s32 %s24, %s25
      %p265 = scmp.lt.s32.totalorder %s23, 1
      %s266 = scalar_select %p265, %s23, 1
      %p267 = scmp.lt.s32.totalorder %s264, 9
      %s268 = scalar_select %p267, %s264, 9
      %s269 = smul.addr %s268, 20
      %s270 = smul.addr %s266, 200
      %s271 = sadd.s32 %s269, %s270
      %s272 = smul.addr %s271, 8
      %s273 = scalar_lea.vmem %s0, %s272
      %p274 = pneg %p62
      %p275 = pneg %p59
      %p276 = scmp.lt.s32.totalorder %s25, 2
      %s277 = scalar_select %p276, %s25, 2
      %s278 = smul.addr %s277, 144
      %s279 = smul.addr %s278, 4
      %s280 = scalar_lea.vmem %s1, %s279
      %p281 = pneg %p88
      %p282 = pneg %p85
      %p283 = pneg %p109
      %p284 = pneg %p106
      %p285 = pneg %p130
      %p286 = pneg %p127
      %p287 = pneg %p151
      %p288 = pneg %p148
      %p289 = pneg %p179
      %p290 = pneg %p176
      %p291 = scmp.lt.s32.totalorder %s23, 1
      %s292 = scalar_select %p291, %s23, 1
      %p293 = scmp.lt.s32.totalorder %s24, 7
      %s294 = scalar_select %p293, %s24, 7
      %s295 = smul.addr %s294, 8
      %s296 = smul.addr %s292, 64
      %s297 = sadd.s32 %s295, %s296
      %s298 = smul.addr %s297, 8
      %s299 = scalar_lea.vmem %s5, %s298
      %p300 = pneg %p207
      %p301 = pneg %p204
      %p302 = scmp.lt.s32.totalorder %s23, 1
      %s303 = scalar_select %p302, %s23, 1
      %p304 = scmp.lt.s32.totalorder %s24, 7
      %s305 = scalar_select %p304, %s24, 7
      %s306 = smul.addr %s303, 8
      %s307 = sadd.s32 %s305, %s306
      %s308 = smul.addr %s307, 2
      %s309 = scalar_lea.vmem %s6, %s308
      %s310 = sadd.s32 %s24, %s25
      %p311 = scmp.lt.s32.totalorder %s23, 1
      %s312 = scalar_select %p311, %s23, 1
      %p313 = scmp.lt.s32.totalorder %s310, 9
      %s314 = scalar_select %p313, %s310, 9
      %s315 = smul.addr %s314, 20
      %s316 = smul.addr %s312, 200
      %s317 = sadd.s32 %s315, %s316
      %s318 = smul.addr %s317, 8
      %s319 = scalar_lea.vmem %s0, %s318
      %s320 = sadd.s32 %s24, %s25
      %p321 = scmp.lt.s32.totalorder %s25, 2
      %s322 = scalar_select %p321, %s25, 2
      %s323 = smul.addr %s322, 144
      %s324 = smul.addr %s323, 4
      %s325 = scalar_lea.vmem %s1, %s324
      %p326 = scmp.lt.s32.totalorder %s23, 1
      %s327 = scalar_select %p326, %s23, 1
      %p328 = scmp.lt.s32.totalorder %s24, 7
      %s329 = scalar_select %p328, %s24, 7
      %s330 = smul.addr %s329, 8
      %s331 = smul.addr %s327, 64
      %s332 = sadd.s32 %s330, %s331
      %s333 = smul.addr %s332, 8
      %s334 = scalar_lea.vmem %s5, %s333
      %p335 = scmp.lt.s32.totalorder %s23, 1
      %s336 = scalar_select %p335, %s23, 1
      %p337 = scmp.lt.s32.totalorder %s24, 7
      %s338 = scalar_select %p337, %s24, 7
      %s339 = smul.addr %s336, 8
      %s340 = sadd.s32 %s338, %s339
      %s341 = smul.addr %s340, 2
      %s342 = scalar_lea.vmem %s6, %s341
      %p344 = scmp.eq.s32.totalorder %s25, 0
      // Predicated region
      $region41: #{residual_block_forward.4} parent=39 // pred_check
        %p345 = pneg %p344
      $region42: #{residual_block_forward.4} parent=39 // pred_check_branch
        %347 = sbr.rel (%p345) target = $region44
      $region43: #{residual_block_forward.4} parent=39 // pred_region
        %348 = vst [vmem:[#allocation2] sm:$0xff] 0.0
        %349 = vst [vmem:[#allocation2 + $0x8] sm:$0xff] 0.0
        %350 = vst [vmem:[#allocation2 + $0x10] sm:$0xff] 0.0
        %351 = vst [vmem:[#allocation2 + $0x18] sm:$0xff] 0.0
        %352 = vst [vmem:[#allocation2 + $0x20] sm:$0xff] 0.0
        %353 = vst [vmem:[#allocation2 + $0x28] sm:$0xff] 0.0
        %354 = vst [vmem:[#allocation2 + $0x30] sm:$0xff] 0.0
        %355 = vst [vmem:[#allocation2 + $0x38] sm:$0xff] 0.0
      $region44: #{residual_block_forward.4} parent=39 // pred_fallthru
        _
      %s356 = sadd.s32 %s24, %s25
      %p357 = scmp.ge.s32.totalorder %s356, 1
      %p358 = scmp.le.s32.totalorder %s356, 8
      %p359 = pnand %p357, %p358
      %p360 = pneg %p359
      // Predicated region
      $region45: #{residual_block_forward.4} parent=39 // pred_check
        _
      $region46: #{residual_block_forward.4} parent=39 // pred_check_branch
        %362 = sbr.rel (%p359) target = $region48
      $region47: #{residual_block_forward.4} parent=39 // pred_region
        %v363 = vld [vmem:[%s319] sm:$0xff]
        %v364 = vld [vmem:[%s319 + $0x8] sm:$0x3]
        %v365 = vld [vmem:[%s319 + $0x10] sm:$0xff]
        %v366 = vld [vmem:[%s319 + $0x18] sm:$0x3]
        %v367 = vld [vmem:[%s319 + $0x20] sm:$0xff]
        %v368 = vld [vmem:[%s319 + $0x28] sm:$0x3]
        %v369 = vld [vmem:[%s319 + $0x30] sm:$0xff]
        %v370 = vld [vmem:[%s319 + $0x38] sm:$0x3]
        %v371 = vld [vmem:[%s319 + $0x40] sm:$0xff]
        %v372 = vld [vmem:[%s319 + $0x48] sm:$0x3]
        %v373 = vld [vmem:[%s319 + $0x50] sm:$0xff]
        %v374 = vld [vmem:[%s319 + $0x58] sm:$0x3]
        %v375 = vld [vmem:[%s319 + $0x60] sm:$0xff]
        %v376 = vld [vmem:[%s319 + $0x68] sm:$0x3]
        %v377 = vld [vmem:[%s319 + $0x70] sm:$0xff]
        %v378 = vld [vmem:[%s319 + $0x78] sm:$0x3]
        %v379 = vld [vmem:[%s319 + $0x80] sm:$0xff]
        %v380 = vld [vmem:[%s319 + $0x88] sm:$0x3]
        %v381 = vld [vmem:[%s319 + $0x90] sm:$0xff]
        %v382 = vld [vmem:[%s319 + $0x98] sm:$0x3]
        %v383 = vld [vmem:[%s3] sm:$0x1]
        %v385 = vlaneseq
        %v386 = vshrl.u32 %v385, 7
        %v387 = vsub.s32 0, %v386
        %v388 = vrot.slane %v383, %v387
        %v390 = vmul.f32 %v363, %v388
        %v391 = vmul.f32 %v364, %v388
        %v392 = vmul.f32 %v365, %v388
        %v393 = vmul.f32 %v366, %v388
        %v394 = vmul.f32 %v367, %v388
        %v395 = vmul.f32 %v368, %v388
        %v396 = vmul.f32 %v369, %v388
        %v397 = vmul.f32 %v370, %v388
        %v398 = vmul.f32 %v371, %v388
        %v399 = vmul.f32 %v372, %v388
        %v400 = vmul.f32 %v373, %v388
        %v401 = vmul.f32 %v374, %v388
        %v402 = vmul.f32 %v375, %v388
        %v403 = vmul.f32 %v376, %v388
        %v404 = vmul.f32 %v377, %v388
        %v405 = vmul.f32 %v378, %v388
        %v406 = vmul.f32 %v379, %v388
        %v407 = vmul.f32 %v380, %v388
        %v408 = vmul.f32 %v381, %v388
        %v409 = vmul.f32 %v382, %v388
        %v410 = vld [vmem:[%s4] sm:$0x1]
        %v412 = vlaneseq
        %v413 = vshrl.u32 %v412, 7
        %v414 = vsub.s32 0, %v413
        %v415 = vrot.slane %v410, %v414
        %v417 = vadd.f32 %v390, %v415
        %v418 = vadd.f32 %v391, %v415
        %v419 = vadd.f32 %v392, %v415
        %v420 = vadd.f32 %v393, %v415
        %v421 = vadd.f32 %v394, %v415
        %v422 = vadd.f32 %v395, %v415
        %v423 = vadd.f32 %v396, %v415
        %v424 = vadd.f32 %v397, %v415
        %v425 = vadd.f32 %v398, %v415
        %v426 = vadd.f32 %v399, %v415
        %v427 = vadd.f32 %v400, %v415
        %v428 = vadd.f32 %v401, %v415
        %v429 = vadd.f32 %v402, %v415
        %v430 = vadd.f32 %v403, %v415
        %v431 = vadd.f32 %v404, %v415
        %v432 = vadd.f32 %v405, %v415
        %v433 = vadd.f32 %v406, %v415
        %v434 = vadd.f32 %v407, %v415
        %v435 = vadd.f32 %v408, %v415
        %v436 = vadd.f32 %v409, %v415
        %v437 = vmax.f32 %v417, 0.0
        %v438 = vmax.f32 %v418, 0.0
        %v439 = vmax.f32 %v419, 0.0
        %v440 = vmax.f32 %v420, 0.0
        %v441 = vmax.f32 %v421, 0.0
        %v442 = vmax.f32 %v422, 0.0
        %v443 = vmax.f32 %v423, 0.0
        %v444 = vmax.f32 %v424, 0.0
        %v445 = vmax.f32 %v425, 0.0
        %v446 = vmax.f32 %v426, 0.0
        %v447 = vmax.f32 %v427, 0.0
        %v448 = vmax.f32 %v428, 0.0
        %v449 = vmax.f32 %v429, 0.0
        %v450 = vmax.f32 %v430, 0.0
        %v451 = vmax.f32 %v431, 0.0
        %v452 = vmax.f32 %v432, 0.0
        %v453 = vmax.f32 %v433, 0.0
        %v454 = vmax.f32 %v434, 0.0
        %v455 = vmax.f32 %v435, 0.0
        %v456 = vmax.f32 %v436, 0.0
        %v457 = vlaneseq
        %v458 = vshrl.u32 %v457, 7
        %v459 = vadd.s32 %v458, 8
        %vm460 = vcmp.ge.s32.totalorder %v458, 1
        %vm461 = vcmp.ge.s32.totalorder %v459, 1
        %vm462 = vmand 0, %vm460
        %vm463 = vmand 0, %vm461
        %vm464 = vmand 1, %vm460
        %vm465 = vmand 1, %vm461
        %vm466 = vcmp.le.s32.totalorder %v458, 8
        %vm467 = vcmp.le.s32.totalorder %v459, 8
        %vm468 = vmand %vm462, %vm466
        %vm469 = vmand %vm463, %vm467
        %vm470 = vmand %vm464, %vm466
        %vm471 = vmand %vm465, %vm467
        %v472 = vsel %vm468, %v437, 0.0
        %v473 = vsel %vm469, %v438, 0.0
        %v474 = vsel %vm470, %v439, 0.0
        %v475 = vsel %vm471, %v440, 0.0
        %v476 = vsel %vm470, %v441, 0.0
        %v477 = vsel %vm471, %v442, 0.0
        %v478 = vsel %vm470, %v443, 0.0
        %v479 = vsel %vm471, %v444, 0.0
        %v480 = vsel %vm470, %v445, 0.0
        %v481 = vsel %vm471, %v446, 0.0
        %v482 = vsel %vm470, %v447, 0.0
        %v483 = vsel %vm471, %v448, 0.0
        %v484 = vsel %vm470, %v449, 0.0
        %v485 = vsel %vm471, %v450, 0.0
        %v486 = vsel %vm470, %v451, 0.0
        %v487 = vsel %vm471, %v452, 0.0
        %v488 = vsel %vm470, %v453, 0.0
        %v489 = vsel %vm471, %v454, 0.0
        %v490 = vsel %vm468, %v455, 0.0
        %v491 = vsel %vm469, %v456, 0.0
        %vm508 = vcmask 1046528
        %v509 = vrot.slane %v472, 1
        %v510 = vrot.slane %v473, 1
        %v511 = vsel %vm508, %v509, %v510
        %v512 = vrot.slane %v474, 1
        %v513 = vrot.slane %v475, 1
        %v514 = vsel %vm508, %v512, %v513
        %v515 = vrot.slane %v476, 1
        %v516 = vrot.slane %v477, 1
        %v517 = vsel %vm508, %v515, %v516
        %v518 = vrot.slane %v478, 1
        %v519 = vrot.slane %v479, 1
        %v520 = vsel %vm508, %v518, %v519
        %v521 = vrot.slane %v480, 1
        %v522 = vrot.slane %v481, 1
        %v523 = vsel %vm508, %v521, %v522
        %v524 = vrot.slane %v482, 1
        %v525 = vrot.slane %v483, 1
        %v526 = vsel %vm508, %v524, %v525
        %v527 = vrot.slane %v484, 1
        %v528 = vrot.slane %v485, 1
        %v529 = vsel %vm508, %v527, %v528
        %v530 = vrot.slane %v486, 1
        %v531 = vrot.slane %v487, 1
        %v532 = vsel %vm508, %v530, %v531
        %vm541 = vcmask 1045504
        %v542 = vrot.slane %v472, 2
        %v543 = vrot.slane %v473, 2
        %v544 = vsel %vm541, %v542, %v543
        %v545 = vrot.slane %v474, 2
        %v546 = vrot.slane %v475, 2
        %v547 = vsel %vm541, %v545, %v546
        %v548 = vrot.slane %v476, 2
        %v549 = vrot.slane %v477, 2
        %v550 = vsel %vm541, %v548, %v549
        %v551 = vrot.slane %v478, 2
        %v552 = vrot.slane %v479, 2
        %v553 = vsel %vm541, %v551, %v552
        %v554 = vrot.slane %v480, 2
        %v555 = vrot.slane %v481, 2
        %v556 = vsel %vm541, %v554, %v555
        %v557 = vrot.slane %v482, 2
        %v558 = vrot.slane %v483, 2
        %v559 = vsel %vm541, %v557, %v558
        %v560 = vrot.slane %v484, 2
        %v561 = vrot.slane %v485, 2
        %v562 = vsel %vm541, %v560, %v561
        %v563 = vrot.slane %v486, 2
        %v564 = vrot.slane %v487, 2
        %v565 = vsel %vm541, %v563, %v564
        %v576 = vrot.slane %v488, 1
        %v577 = vrot.slane %v489, 1
        %v578 = vsel %vm508, %v576, %v577
        %v580 = vrot.slane %v488, 2
        %v581 = vrot.slane %v489, 2
        %v582 = vsel %vm541, %v580, %v581
        %v586 = vrot.slane %v490, 1
        %v587 = vrot.slane %v491, 1
        %v588 = vsel %vm508, %v586, %v587
        %v590 = vrot.slane %v490, 2
        %v591 = vrot.slane %v491, 2
        %v592 = vsel %vm541, %v590, %v591
        %v594 = vpack.c.bf16 %v474, %v472
        %v595 = vpack.c.bf16 %v514, %v511
        %v596 = vpack.c.bf16 %v547, %v544
        %v597 = vpack.c.bf16 %v476, %v474
        %v598 = vpack.c.bf16 %v517, %v514
        %v599 = vpack.c.bf16 %v550, %v547
        %v600 = vpack.c.bf16 %v478, %v476
        %v601 = vpack.c.bf16 %v520, %v517
        %v602 = vpack.c.bf16 %v553, %v550
        %v603 = vpack.c.bf16 %v480, %v478
        %v604 = vpack.c.bf16 %v523, %v520
        %v605 = vpack.c.bf16 %v556, %v553
        %v606 = vpack.c.bf16 %v482, %v480
        %v607 = vpack.c.bf16 %v526, %v523
        %v608 = vpack.c.bf16 %v559, %v556
        %v609 = vpack.c.bf16 %v484, %v482
        %v610 = vpack.c.bf16 %v529, %v526
        %v611 = vpack.c.bf16 %v562, %v559
        %v612 = vpack.c.bf16 %v486, %v484
        %v613 = vpack.c.bf16 %v532, %v529
        %v614 = vpack.c.bf16 %v565, %v562
        %v615 = vpack.c.bf16 %v488, %v486
        %v616 = vpack.c.bf16 %v578, %v532
        %v617 = vpack.c.bf16 %v582, %v565
        %v618 = vpack.c.bf16 %v490, %v488
        %v619 = vpack.c.bf16 %v588, %v578
        %v620 = vpack.c.bf16 %v592, %v582
        %v621 = vld [vmem:[#allocation2] sm:$0xff]
        %v622 = vld [vmem:[#allocation2 + $0x8] sm:$0xff]
        %v623 = vld [vmem:[#allocation2 + $0x10] sm:$0xff]
        %v624 = vld [vmem:[#allocation2 + $0x18] sm:$0xff]
        %v625 = vld [vmem:[#allocation2 + $0x20] sm:$0xff]
        %v626 = vld [vmem:[#allocation2 + $0x28] sm:$0xff]
        %v627 = vld [vmem:[#allocation2 + $0x30] sm:$0xff]
        %v628 = vld [vmem:[#allocation2 + $0x38] sm:$0xff]
        %v629 = vld [vmem:[%s325] sm:$0xf]
        %v630 = vld [vmem:[%s325 + $0x4] sm:$0xf]
        %v631 = vld [vmem:[%s325 + $0x8] sm:$0xf]
        %v632 = vld [vmem:[%s325 + $0xc] sm:$0xf]
        %v633 = vld [vmem:[%s325 + $0x10] sm:$0xf]
        %v634 = vld [vmem:[%s325 + $0x14] sm:$0xf]
        %v635 = vld [vmem:[%s325 + $0x18] sm:$0xf]
        %v636 = vld [vmem:[%s325 + $0x1c] sm:$0xf]
        %v637 = vld [vmem:[%s325 + $0x20] sm:$0xf]
        %v638 = vld [vmem:[%s325 + $0x24] sm:$0xf]
        %v639 = vld [vmem:[%s325 + $0x28] sm:$0xf]
        %v640 = vld [vmem:[%s325 + $0x2c] sm:$0xf]
        %v641 = vld [vmem:[%s325 + $0x30] sm:$0xf]
        %v642 = vld [vmem:[%s325 + $0x34] sm:$0xf]
        %v643 = vld [vmem:[%s325 + $0x38] sm:$0xf]
        %v644 = vld [vmem:[%s325 + $0x3c] sm:$0xf]
        %v645 = vld [vmem:[%s325 + $0x40] sm:$0xf]
        %v646 = vld [vmem:[%s325 + $0x44] sm:$0xf]
        %v647 = vld [vmem:[%s325 + $0x48] sm:$0xf]
        %v648 = vld [vmem:[%s325 + $0x4c] sm:$0xf]
        %v649 = vld [vmem:[%s325 + $0x50] sm:$0xf]
        %v650 = vld [vmem:[%s325 + $0x54] sm:$0xf]
        %v651 = vld [vmem:[%s325 + $0x58] sm:$0xf]
        %v652 = vld [vmem:[%s325 + $0x5c] sm:$0xf]
        %v653 = vld [vmem:[%s325 + $0x60] sm:$0xf]
        %v654 = vld [vmem:[%s325 + $0x64] sm:$0xf]
        %v655 = vld [vmem:[%s325 + $0x68] sm:$0xf]
        %v656 = vld [vmem:[%s325 + $0x6c] sm:$0xf]
        %v657 = vld [vmem:[%s325 + $0x70] sm:$0xf]
        %v658 = vld [vmem:[%s325 + $0x74] sm:$0xf]
        %v659 = vld [vmem:[%s325 + $0x78] sm:$0xf]
        %v660 = vld [vmem:[%s325 + $0x7c] sm:$0xf]
        %v661 = vld [vmem:[%s325 + $0x80] sm:$0xf]
        %v662 = vld [vmem:[%s325 + $0x84] sm:$0xf]
        %v663 = vld [vmem:[%s325 + $0x88] sm:$0xf]
        %v664 = vld [vmem:[%s325 + $0x8c] sm:$0xf]
        %v665 = vld [vmem:[%s325 + $0x90] sm:$0xf]
        %v666 = vld [vmem:[%s325 + $0x94] sm:$0xf]
        %v667 = vld [vmem:[%s325 + $0x98] sm:$0xf]
        %v668 = vld [vmem:[%s325 + $0x9c] sm:$0xf]
        %v669 = vld [vmem:[%s325 + $0xa0] sm:$0xf]
        %v670 = vld [vmem:[%s325 + $0xa4] sm:$0xf]
        %v671 = vld [vmem:[%s325 + $0xa8] sm:$0xf]
        %v672 = vld [vmem:[%s325 + $0xac] sm:$0xf]
        %v673 = vld [vmem:[%s325 + $0xb0] sm:$0xf]
        %v674 = vld [vmem:[%s325 + $0xb4] sm:$0xf]
        %v675 = vld [vmem:[%s325 + $0xb8] sm:$0xf]
        %v676 = vld [vmem:[%s325 + $0xbc] sm:$0xf]
        %v677 = vld [vmem:[%s325 + $0xc0] sm:$0xf]
        %v678 = vld [vmem:[%s325 + $0xc4] sm:$0xf]
        %v679 = vld [vmem:[%s325 + $0xc8] sm:$0xf]
        %v680 = vld [vmem:[%s325 + $0xcc] sm:$0xf]
        %v681 = vld [vmem:[%s325 + $0xd0] sm:$0xf]
        %v682 = vld [vmem:[%s325 + $0xd4] sm:$0xf]
        %v683 = vld [vmem:[%s325 + $0xd8] sm:$0xf]
        %v684 = vld [vmem:[%s325 + $0xdc] sm:$0xf]
        %v685 = vld [vmem:[%s325 + $0xe0] sm:$0xf]
        %v686 = vld [vmem:[%s325 + $0xe4] sm:$0xf]
        %v687 = vld [vmem:[%s325 + $0xe8] sm:$0xf]
        %v688 = vld [vmem:[%s325 + $0xec] sm:$0xf]
        %v689 = vld [vmem:[%s325 + $0xf0] sm:$0xf]
        %v690 = vld [vmem:[%s325 + $0xf4] sm:$0xf]
        %v691 = vld [vmem:[%s325 + $0xf8] sm:$0xf]
        %v692 = vld [vmem:[%s325 + $0xfc] sm:$0xf]
        %v693 = vld [vmem:[%s325 + $0x100] sm:$0xf]
        %v694 = vld [vmem:[%s325 + $0x104] sm:$0xf]
        %v695 = vld [vmem:[%s325 + $0x108] sm:$0xf]
        %v696 = vld [vmem:[%s325 + $0x10c] sm:$0xf]
        %v697 = vld [vmem:[%s325 + $0x110] sm:$0xf]
        %v698 = vld [vmem:[%s325 + $0x114] sm:$0xf]
        %v699 = vld [vmem:[%s325 + $0x118] sm:$0xf]
        %v700 = vld [vmem:[%s325 + $0x11c] sm:$0xf]
        %v701 = vld [vmem:[%s325 + $0x120] sm:$0xf]
        %v702 = vld [vmem:[%s325 + $0x124] sm:$0xf]
        %v703 = vld [vmem:[%s325 + $0x128] sm:$0xf]
        %v704 = vld [vmem:[%s325 + $0x12c] sm:$0xf]
        %v705 = vld [vmem:[%s325 + $0x130] sm:$0xf]
        %v706 = vld [vmem:[%s325 + $0x134] sm:$0xf]
        %v707 = vld [vmem:[%s325 + $0x138] sm:$0xf]
        %v708 = vld [vmem:[%s325 + $0x13c] sm:$0xf]
        %v709 = vld [vmem:[%s325 + $0x140] sm:$0xf]
        %v710 = vld [vmem:[%s325 + $0x144] sm:$0xf]
        %v711 = vld [vmem:[%s325 + $0x148] sm:$0xf]
        %v712 = vld [vmem:[%s325 + $0x14c] sm:$0xf]
        %v713 = vld [vmem:[%s325 + $0x150] sm:$0xf]
        %v714 = vld [vmem:[%s325 + $0x154] sm:$0xf]
        %v715 = vld [vmem:[%s325 + $0x158] sm:$0xf]
        %v716 = vld [vmem:[%s325 + $0x15c] sm:$0xf]
        %v717 = vld [vmem:[%s325 + $0x160] sm:$0xf]
        %v718 = vld [vmem:[%s325 + $0x164] sm:$0xf]
        %v719 = vld [vmem:[%s325 + $0x168] sm:$0xf]
        %v720 = vld [vmem:[%s325 + $0x16c] sm:$0xf]
        %v721 = vld [vmem:[%s325 + $0x170] sm:$0xf]
        %v722 = vld [vmem:[%s325 + $0x174] sm:$0xf]
        %v723 = vld [vmem:[%s325 + $0x178] sm:$0xf]
        %v724 = vld [vmem:[%s325 + $0x17c] sm:$0xf]
        %v725 = vld [vmem:[%s325 + $0x180] sm:$0xf]
        %v726 = vld [vmem:[%s325 + $0x184] sm:$0xf]
        %v727 = vld [vmem:[%s325 + $0x188] sm:$0xf]
        %v728 = vld [vmem:[%s325 + $0x18c] sm:$0xf]
        %v729 = vld [vmem:[%s325 + $0x190] sm:$0xf]
        %v730 = vld [vmem:[%s325 + $0x194] sm:$0xf]
        %v731 = vld [vmem:[%s325 + $0x198] sm:$0xf]
        %v732 = vld [vmem:[%s325 + $0x19c] sm:$0xf]
        %v733 = vld [vmem:[%s325 + $0x1a0] sm:$0xf]
        %v734 = vld [vmem:[%s325 + $0x1a4] sm:$0xf]
        %v735 = vld [vmem:[%s325 + $0x1a8] sm:$0xf]
        %v736 = vld [vmem:[%s325 + $0x1ac] sm:$0xf]
        %v737 = vld [vmem:[%s325 + $0x1b0] sm:$0xf]
        %v738 = vld [vmem:[%s325 + $0x1b4] sm:$0xf]
        %v739 = vld [vmem:[%s325 + $0x1b8] sm:$0xf]
        %v740 = vld [vmem:[%s325 + $0x1bc] sm:$0xf]
        %v741 = vld [vmem:[%s325 + $0x1c0] sm:$0xf]
        %v742 = vld [vmem:[%s325 + $0x1c4] sm:$0xf]
        %v743 = vld [vmem:[%s325 + $0x1c8] sm:$0xf]
        %v744 = vld [vmem:[%s325 + $0x1cc] sm:$0xf]
        %v745 = vld [vmem:[%s325 + $0x1d0] sm:$0xf]
        %v746 = vld [vmem:[%s325 + $0x1d4] sm:$0xf]
        %v747 = vld [vmem:[%s325 + $0x1d8] sm:$0xf]
        %v748 = vld [vmem:[%s325 + $0x1dc] sm:$0xf]
        %v749 = vld [vmem:[%s325 + $0x1e0] sm:$0xf]
        %v750 = vld [vmem:[%s325 + $0x1e4] sm:$0xf]
        %v751 = vld [vmem:[%s325 + $0x1e8] sm:$0xf]
        %v752 = vld [vmem:[%s325 + $0x1ec] sm:$0xf]
        %v753 = vld [vmem:[%s325 + $0x1f0] sm:$0xf]
        %v754 = vld [vmem:[%s325 + $0x1f4] sm:$0xf]
        %v755 = vld [vmem:[%s325 + $0x1f8] sm:$0xf]
        %v756 = vld [vmem:[%s325 + $0x1fc] sm:$0xf]
        %v757 = vld [vmem:[%s325 + $0x200] sm:$0xf]
        %v758 = vld [vmem:[%s325 + $0x204] sm:$0xf]
        %v759 = vld [vmem:[%s325 + $0x208] sm:$0xf]
        %v760 = vld [vmem:[%s325 + $0x20c] sm:$0xf]
        %v761 = vld [vmem:[%s325 + $0x210] sm:$0xf]
        %v762 = vld [vmem:[%s325 + $0x214] sm:$0xf]
        %v763 = vld [vmem:[%s325 + $0x218] sm:$0xf]
        %v764 = vld [vmem:[%s325 + $0x21c] sm:$0xf]
        %v765 = vld [vmem:[%s325 + $0x220] sm:$0xf]
        %v766 = vld [vmem:[%s325 + $0x224] sm:$0xf]
        %v767 = vld [vmem:[%s325 + $0x228] sm:$0xf]
        %v768 = vld [vmem:[%s325 + $0x22c] sm:$0xf]
        %v769 = vld [vmem:[%s325 + $0x230] sm:$0xf]
        %v770 = vld [vmem:[%s325 + $0x234] sm:$0xf]
        %v771 = vld [vmem:[%s325 + $0x238] sm:$0xf]
        %v772 = vld [vmem:[%s325 + $0x23c] sm:$0xf]
        %v917 = vunpack.c.l.b16 %v629
        %v918 = vunpack.c.l.b16 %v630
        %v919 = vunpack.c.l.b16 %v631
        %v920 = vunpack.c.l.b16 %v632
        %v921 = vunpack.c.l.b16 %v633
        %v922 = vunpack.c.l.b16 %v634
        %v923 = vunpack.c.l.b16 %v635
        %v924 = vunpack.c.l.b16 %v636
        %v925 = vunpack.c.l.b16 %v637
        %v926 = vunpack.c.l.b16 %v638
        %v927 = vunpack.c.l.b16 %v639
        %v928 = vunpack.c.l.b16 %v640
        %v929 = vunpack.c.l.b16 %v641
        %v930 = vunpack.c.l.b16 %v642
        %v931 = vunpack.c.l.b16 %v643
        %v932 = vunpack.c.l.b16 %v644
        %v933 = vunpack.c.l.b16 %v645
        %v934 = vunpack.c.l.b16 %v646
        %v935 = vunpack.c.l.b16 %v647
        %v936 = vunpack.c.l.b16 %v648
        %v937 = vunpack.c.l.b16 %v649
        %v938 = vunpack.c.l.b16 %v650
        %v939 = vunpack.c.l.b16 %v651
        %v940 = vunpack.c.l.b16 %v652
        %v941 = vunpack.c.l.b16 %v653
        %v942 = vunpack.c.l.b16 %v654
        %v943 = vunpack.c.l.b16 %v655
        %v944 = vunpack.c.l.b16 %v656
        %v945 = vunpack.c.l.b16 %v657
        %v946 = vunpack.c.l.b16 %v658
        %v947 = vunpack.c.l.b16 %v659
        %v948 = vunpack.c.l.b16 %v660
        %v949 = vunpack.c.l.b16 %v661
        %v950 = vunpack.c.l.b16 %v662
        %v951 = vunpack.c.l.b16 %v663
        %v952 = vunpack.c.l.b16 %v664
        %v953 = vunpack.c.l.b16 %v665
        %v954 = vunpack.c.l.b16 %v666
        %v955 = vunpack.c.l.b16 %v667
        %v956 = vunpack.c.l.b16 %v668
        %v957 = vunpack.c.l.b16 %v669
        %v958 = vunpack.c.l.b16 %v670
        %v959 = vunpack.c.l.b16 %v671
        %v960 = vunpack.c.l.b16 %v672
        %v961 = vunpack.c.l.b16 %v673
        %v962 = vunpack.c.l.b16 %v674
        %v963 = vunpack.c.l.b16 %v675
        %v964 = vunpack.c.l.b16 %v676
        %v965 = vunpack.c.l.b16 %v677
        %v966 = vunpack.c.l.b16 %v678
        %v967 = vunpack.c.l.b16 %v679
        %v968 = vunpack.c.l.b16 %v680
        %v969 = vunpack.c.l.b16 %v681
        %v970 = vunpack.c.l.b16 %v682
        %v971 = vunpack.c.l.b16 %v683
        %v972 = vunpack.c.l.b16 %v684
        %v973 = vunpack.c.l.b16 %v685
        %v974 = vunpack.c.l.b16 %v686
        %v975 = vunpack.c.l.b16 %v687
        %v976 = vunpack.c.l.b16 %v688
        %v977 = vunpack.c.l.b16 %v689
        %v978 = vunpack.c.l.b16 %v690
        %v979 = vunpack.c.l.b16 %v691
        %v980 = vunpack.c.l.b16 %v692
        %v981 = vunpack.c.l.b16 %v693
        %v982 = vunpack.c.l.b16 %v694
        %v983 = vunpack.c.l.b16 %v695
        %v984 = vunpack.c.l.b16 %v696
        %v985 = vunpack.c.l.b16 %v697
        %v986 = vunpack.c.l.b16 %v698
        %v987 = vunpack.c.l.b16 %v699
        %v988 = vunpack.c.l.b16 %v700
        %v989 = vunpack.c.l.b16 %v701
        %v990 = vunpack.c.l.b16 %v702
        %v991 = vunpack.c.l.b16 %v703
        %v992 = vunpack.c.l.b16 %v704
        %v993 = vunpack.c.l.b16 %v705
        %v994 = vunpack.c.l.b16 %v706
        %v995 = vunpack.c.l.b16 %v707
        %v996 = vunpack.c.l.b16 %v708
        %v997 = vunpack.c.l.b16 %v709
        %v998 = vunpack.c.l.b16 %v710
        %v999 = vunpack.c.l.b16 %v711
        %v1000 = vunpack.c.l.b16 %v712
        %v1001 = vunpack.c.l.b16 %v713
        %v1002 = vunpack.c.l.b16 %v714
        %v1003 = vunpack.c.l.b16 %v715
        %v1004 = vunpack.c.l.b16 %v716
        %v1005 = vunpack.c.l.b16 %v717
        %v1006 = vunpack.c.l.b16 %v718
        %v1007 = vunpack.c.l.b16 %v719
        %v1008 = vunpack.c.l.b16 %v720
        %v1009 = vunpack.c.l.b16 %v721
        %v1010 = vunpack.c.l.b16 %v722
        %v1011 = vunpack.c.l.b16 %v723
        %v1012 = vunpack.c.l.b16 %v724
        %v1013 = vunpack.c.l.b16 %v725
        %v1014 = vunpack.c.l.b16 %v726
        %v1015 = vunpack.c.l.b16 %v727
        %v1016 = vunpack.c.l.b16 %v728
        %v1017 = vunpack.c.l.b16 %v729
        %v1018 = vunpack.c.l.b16 %v730
        %v1019 = vunpack.c.l.b16 %v731
        %v1020 = vunpack.c.l.b16 %v732
        %v1021 = vunpack.c.l.b16 %v733
        %v1022 = vunpack.c.l.b16 %v734
        %v1023 = vunpack.c.l.b16 %v735
        %v1024 = vunpack.c.l.b16 %v736
        %v1025 = vunpack.c.l.b16 %v737
        %v1026 = vunpack.c.l.b16 %v738
        %v1027 = vunpack.c.l.b16 %v739
        %v1028 = vunpack.c.l.b16 %v740
        %v1029 = vunpack.c.l.b16 %v741
        %v1030 = vunpack.c.l.b16 %v742
        %v1031 = vunpack.c.l.b16 %v743
        %v1032 = vunpack.c.l.b16 %v744
        %v1033 = vunpack.c.l.b16 %v745
        %v1034 = vunpack.c.l.b16 %v746
        %v1035 = vunpack.c.l.b16 %v747
        %v1036 = vunpack.c.l.b16 %v748
        %v1037 = vunpack.c.l.b16 %v749
        %v1038 = vunpack.c.l.b16 %v750
        %v1039 = vunpack.c.l.b16 %v751
        %v1040 = vunpack.c.l.b16 %v752
        %v1041 = vunpack.c.l.b16 %v753
        %v1042 = vunpack.c.l.b16 %v754
        %v1043 = vunpack.c.l.b16 %v755
        %v1044 = vunpack.c.l.b16 %v756
        %v1045 = vunpack.c.l.b16 %v757
        %v1046 = vunpack.c.l.b16 %v758
        %v1047 = vunpack.c.l.b16 %v759
        %v1048 = vunpack.c.l.b16 %v760
        %v1049 = vunpack.c.l.b16 %v761
        %v1050 = vunpack.c.l.b16 %v762
        %v1051 = vunpack.c.l.b16 %v763
        %v1052 = vunpack.c.l.b16 %v764
        %v1053 = vunpack.c.l.b16 %v765
        %v1054 = vunpack.c.l.b16 %v766
        %v1055 = vunpack.c.l.b16 %v767
        %v1056 = vunpack.c.l.b16 %v768
        %v1057 = vunpack.c.l.b16 %v769
        %v1058 = vunpack.c.l.b16 %v770
        %v1059 = vunpack.c.l.b16 %v771
        %v1060 = vunpack.c.l.b16 %v772
        %v1061 = vpack.c.b16 %v918, %v917
        %v1062 = vpack.c.b16 %v920, %v919
        %v1063 = vpack.c.b16 %v922, %v921
        %v1064 = vpack.c.b16 %v924, %v923
        %v1065 = vpack.c.b16 %v926, %v925
        %v1066 = vpack.c.b16 %v928, %v927
        %v1067 = vpack.c.b16 %v930, %v929
        %v1068 = vpack.c.b16 %v932, %v931
        %v1069 = vpack.c.b16 %v934, %v933
        %v1070 = vpack.c.b16 %v936, %v935
        %v1071 = vpack.c.b16 %v938, %v937
        %v1072 = vpack.c.b16 %v940, %v939
        %v1073 = vpack.c.b16 %v942, %v941
        %v1074 = vpack.c.b16 %v944, %v943
        %v1075 = vpack.c.b16 %v946, %v945
        %v1076 = vpack.c.b16 %v948, %v947
        %v1077 = vpack.c.b16 %v950, %v949
        %v1078 = vpack.c.b16 %v952, %v951
        %v1079 = vpack.c.b16 %v954, %v953
        %v1080 = vpack.c.b16 %v956, %v955
        %v1081 = vpack.c.b16 %v958, %v957
        %v1082 = vpack.c.b16 %v960, %v959
        %v1083 = vpack.c.b16 %v962, %v961
        %v1084 = vpack.c.b16 %v964, %v963
        %v1085 = vpack.c.b16 %v966, %v965
        %v1086 = vpack.c.b16 %v968, %v967
        %v1087 = vpack.c.b16 %v970, %v969
        %v1088 = vpack.c.b16 %v972, %v971
        %v1089 = vpack.c.b16 %v974, %v973
        %v1090 = vpack.c.b16 %v976, %v975
        %v1091 = vpack.c.b16 %v978, %v977
        %v1092 = vpack.c.b16 %v980, %v979
        %v1093 = vpack.c.b16 %v982, %v981
        %v1094 = vpack.c.b16 %v984, %v983
        %v1095 = vpack.c.b16 %v986, %v985
        %v1096 = vpack.c.b16 %v988, %v987
        %v1097 = vpack.c.b16 %v990, %v989
        %v1098 = vpack.c.b16 %v992, %v991
        %v1099 = vpack.c.b16 %v994, %v993
        %v1100 = vpack.c.b16 %v996, %v995
        %v1101 = vpack.c.b16 %v998, %v997
        %v1102 = vpack.c.b16 %v1000, %v999
        %v1103 = vpack.c.b16 %v1002, %v1001
        %v1104 = vpack.c.b16 %v1004, %v1003
        %v1105 = vpack.c.b16 %v1006, %v1005
        %v1106 = vpack.c.b16 %v1008, %v1007
        %v1107 = vpack.c.b16 %v1010, %v1009
        %v1108 = vpack.c.b16 %v1012, %v1011
        %v1109 = vpack.c.b16 %v1014, %v1013
        %v1110 = vpack.c.b16 %v1016, %v1015
        %v1111 = vpack.c.b16 %v1018, %v1017
        %v1112 = vpack.c.b16 %v1020, %v1019
        %v1113 = vpack.c.b16 %v1022, %v1021
        %v1114 = vpack.c.b16 %v1024, %v1023
        %v1115 = vpack.c.b16 %v1026, %v1025
        %v1116 = vpack.c.b16 %v1028, %v1027
        %v1117 = vpack.c.b16 %v1030, %v1029
        %v1118 = vpack.c.b16 %v1032, %v1031
        %v1119 = vpack.c.b16 %v1034, %v1033
        %v1120 = vpack.c.b16 %v1036, %v1035
        %v1121 = vpack.c.b16 %v1038, %v1037
        %v1122 = vpack.c.b16 %v1040, %v1039
        %v1123 = vpack.c.b16 %v1042, %v1041
        %v1124 = vpack.c.b16 %v1044, %v1043
        %v1125 = vpack.c.b16 %v1046, %v1045
        %v1126 = vpack.c.b16 %v1048, %v1047
        %v1127 = vpack.c.b16 %v1050, %v1049
        %v1128 = vpack.c.b16 %v1052, %v1051
        %v1129 = vpack.c.b16 %v1054, %v1053
        %v1130 = vpack.c.b16 %v1056, %v1055
        %v1131 = vpack.c.b16 %v1058, %v1057
        %v1132 = vpack.c.b16 %v1060, %v1059
        %1205 = vmatprep.subr.bf16.mxu0 0
        %1206 = vmatpush1.bf16.msra.mxu0 %v1061
        %1207 = vmatprep.subr.bf16.mxu0 0
        %1208 = vmatpush1.bf16.msra.mxu0 %v1062
        %1209 = vmatprep.subr.bf16.mxu0 0
        %1210 = vmatpush1.bf16.msra.mxu0 %v1063
        %1211 = vmatprep.subr.bf16.mxu0 0
        %1212 = vmatpush1.bf16.msra.mxu0 %v1064
        %1213 = vmatprep.subr.bf16.mxu0 0
        %1214 = vmatpush1.bf16.msra.mxu0 %v1065
        %1215 = vmatprep.subr.bf16.mxu0 0
        %1216 = vmatpush1.bf16.msra.mxu0 %v1066
        %1217 = vmatprep.subr.bf16.mxu0 0
        %1218 = vmatpush1.bf16.msra.mxu0 %v1067
        %1219 = vmatprep.subr.bf16.mxu0 0
        %1220 = vmatpush1.bf16.msra.mxu0 %v1068
        %1221 = vmatprep.subr.bf16.mxu0 0
        %1222 = vmatpush1.bf16.msra.mxu0 %v1069
        %1223 = vmatprep.subr.bf16.mxu0 0
        %1224 = vmatpush1.bf16.msra.mxu0 %v1070
        %1225 = vmatprep.subr.bf16.mxu0 0
        %1226 = vmatpush1.bf16.msra.mxu0 %v1071
        %1227 = vmatprep.subr.bf16.mxu0 0
        %1228 = vmatpush1.bf16.msra.mxu0 %v1072
        %1229 = vmatprep.subr.bf16.mxu0 0
        %1230 = vmatpush1.bf16.msra.mxu0 %v1073
        %1231 = vmatprep.subr.bf16.mxu0 0
        %1232 = vmatpush1.bf16.msra.mxu0 %v1074
        %1233 = vmatprep.subr.bf16.mxu0 0
        %1234 = vmatpush1.bf16.msra.mxu0 %v1075
        %1235 = vmatprep.subr.bf16.mxu0 0
        %1236 = vmatpush1.bf16.msra.mxu0 %v1076
        %1237 = vmatprep.mubr.bf16.mxu0 %v595
        %1238 = vmatmul.mubr.bf16.gmra.mrb[0].mxu0 %v594
        %v1239 = vpop.f32.mrb[0].mxu0
        %v1240 = vadd.f32 0.0, %v1239
        %v1241 = vpop.f32.mrb[0].mxu0
        %v1242 = vpop.f32.mrb[0].mxu0
        %v1243 = vadd.f32 0.0, %v1242
        %v1244 = vpop.f32.mrb[0].mxu0
        %1245 = vmatprep.mubr.bf16.mxu0 %v601
        %1246 = vmatmul.mubr.bf16.gmra.mrb[0].mxu0 %v600
        %v1247 = vpop.f32.mrb[0].mxu0
        %v1248 = vadd.f32 0.0, %v1247
        %v1249 = vpop.f32.mrb[0].mxu0
        %v1250 = vpop.f32.mrb[0].mxu0
        %v1251 = vadd.f32 0.0, %v1250
        %v1252 = vpop.f32.mrb[0].mxu0
        %1253 = vmatprep.mubr.bf16.mxu0 %v607
        %1254 = vmatmul.mubr.bf16.gmra.mrb[0].mxu0 %v606
        %v1255 = vpop.f32.mrb[0].mxu0
        %v1256 = vadd.f32 0.0, %v1255
        %v1257 = vpop.f32.mrb[0].mxu0
        %v1258 = vpop.f32.mrb[0].mxu0
        %v1259 = vadd.f32 0.0, %v1258
        %v1260 = vpop.f32.mrb[0].mxu0
        %1261 = vmatprep.mubr.bf16.mxu0 %v613
        %1262 = vmatmul.mubr.bf16.gmra.mrb[0].mxu0 %v612
        %v1263 = vpop.f32.mrb[0].mxu0
        %v1264 = vadd.f32 0.0, %v1263
        %v1265 = vpop.f32.mrb[0].mxu0
        %v1266 = vpop.f32.mrb[0].mxu0
        %v1267 = vadd.f32 0.0, %v1266
        %v1268 = vpop.f32.mrb[0].mxu0
        %1269 = vdwg.mxu0
        %1270 = vmatprep.subr.bf16.mxu0 0
        %1271 = vmatpush1.bf16.msra.mxu0 %v1077
        %1272 = vmatprep.subr.bf16.mxu0 0
        %1273 = vmatpush1.bf16.msra.mxu0 %v1078
        %1274 = vmatprep.subr.bf16.mxu0 0
        %1275 = vmatpush1.bf16.msra.mxu0 %v1079
        %1276 = vmatprep.subr.bf16.mxu0 0
        %1277 = vmatpush1.bf16.msra.mxu0 %v1080
        %1278 = vmatprep.subr.bf16.mxu0 0
        %1279 = vmatpush1.bf16.msra.mxu0 %v1081
        %1280 = vmatprep.subr.bf16.mxu0 0
        %1281 = vmatpush1.bf16.msra.mxu0 %v1082
        %1282 = vmatprep.subr.bf16.mxu0 0
        %1283 = vmatpush1.bf16.msra.mxu0 %v1083
        %1284 = vmatprep.subr.bf16.mxu0 0
        %1285 = vmatpush1.bf16.msra.mxu0 %v1084
        %1286 = vmatprep.subr.bf16.mxu0 0
        %1287 = vmatpush1.bf16.msra.mxu0 %v1085
        %1288 = vmatprep.subr.bf16.mxu0 0
        %1289 = vmatpush1.bf16.msra.mxu0 %v1086
        %1290 = vmatprep.subr.bf16.mxu0 0
        %1291 = vmatpush1.bf16.msra.mxu0 %v1087
        %1292 = vmatprep.subr.bf16.mxu0 0
        %1293 = vmatpush1.bf16.msra.mxu0 %v1088
        %1294 = vmatprep.subr.bf16.mxu0 0
        %1295 = vmatpush1.bf16.msra.mxu0 %v1089
        %1296 = vmatprep.subr.bf16.mxu0 0
        %1297 = vmatpush1.bf16.msra.mxu0 %v1090
        %1298 = vmatprep.subr.bf16.mxu0 0
        %1299 = vmatpush1.bf16.msra.mxu0 %v1091
        %1300 = vmatprep.subr.bf16.mxu0 0
        %1301 = vmatpush1.bf16.msra.mxu0 %v1092
        %1302 = vmatprep.mubr.bf16.mxu0 %v597
        %1303 = vmatmul.mubr.bf16.gmra.mrb[0].mxu0 %v596
        %v1304 = vpop.f32.mrb[0].mxu0
        %v1305 = vadd.f32 %v1240, %v1304
        %v1306 = vpop.f32.mrb[0].mxu0
        %v1307 = vpop.f32.mrb[0].mxu0
        %v1308 = vadd.f32 %v1243, %v1307
        %v1309 = vpop.f32.mrb[0].mxu0
        %1310 = vmatprep.mubr.bf16.mxu0 %v603
        %1311 = vmatmul.mubr.bf16.gmra.mrb[0].mxu0 %v602
        %v1312 = vpop.f32.mrb[0].mxu0
        %v1313 = vadd.f32 %v1248, %v1312
        %v1314 = vpop.f32.mrb[0].mxu0
        %v1315 = vpop.f32.mrb[0].mxu0
        %v1316 = vadd.f32 %v1251, %v1315
        %v1317 = vpop.f32.mrb[0].mxu0
        %1318 = vmatprep.mubr.bf16.mxu0 %v609
        %1319 = vmatmul.mubr.bf16.gmra.mrb[0].mxu0 %v608
        %v1320 = vpop.f32.mrb[0].mxu0
        %v1321 = vadd.f32 %v1256, %v1320
        %v1322 = vpop.f32.mrb[0].mxu0
        %v1323 = vpop.f32.mrb[0].mxu0
        %v1324 = vadd.f32 %v1259, %v1323
        %v1325 = vpop.f32.mrb[0].mxu0
        %1326 = vmatprep.mubr.bf16.mxu0 %v615
        %1327 = vmatmul.mubr.bf16.gmra.mrb[0].mxu0 %v614
        %v1328 = vpop.f32.mrb[0].mxu0
        %v1329 = vadd.f32 %v1264, %v1328
        %v1330 = vpop.f32.mrb[0].mxu0
        %v1331 = vpop.f32.mrb[0].mxu0
        %v1332 = vadd.f32 %v1267, %v1331
        %v1333 = vpop.f32.mrb[0].mxu0
        %1334 = vdwg.mxu0
        %1335 = vmatprep.subr.bf16.mxu0 0
        %1336 = vmatpush1.bf16.msra.mxu0 %v1093
        %1337 = vmatprep.subr.bf16.mxu0 0
        %1338 = vmatpush1.bf16.msra.mxu0 %v1094
        %1339 = vmatprep.subr.bf16.mxu0 0
        %1340 = vmatpush1.bf16.msra.mxu0 %v1095
        %1341 = vmatprep.subr.bf16.mxu0 0
        %1342 = vmatpush1.bf16.msra.mxu0 %v1096
        %1343 = vmatprep.subr.bf16.mxu0 0
        %1344 = vmatpush1.bf16.msra.mxu0 %v1097
        %1345 = vmatprep.subr.bf16.mxu0 0
        %1346 = vmatpush1.bf16.msra.mxu0 %v1098
        %1347 = vmatprep.subr.bf16.mxu0 0
        %1348 = vmatpush1.bf16.msra.mxu0 %v1099
        %1349 = vmatprep.subr.bf16.mxu0 0
        %1350 = vmatpush1.bf16.msra.mxu0 %v1100
        %1351 = vmatprep.subr.bf16.mxu0 0
        %1352 = vmatpush1.bf16.msra.mxu0 %v1101
        %1353 = vmatprep.subr.bf16.mxu0 0
        %1354 = vmatpush1.bf16.msra.mxu0 %v1102
        %1355 = vmatprep.subr.bf16.mxu0 0
        %1356 = vmatpush1.bf16.msra.mxu0 %v1103
        %1357 = vmatprep.subr.bf16.mxu0 0
        %1358 = vmatpush1.bf16.msra.mxu0 %v1104
        %1359 = vmatprep.subr.bf16.mxu0 0
        %1360 = vmatpush1.bf16.msra.mxu0 %v1105
        %1361 = vmatprep.subr.bf16.mxu0 0
        %1362 = vmatpush1.bf16.msra.mxu0 %v1106
        %1363 = vmatprep.subr.bf16.mxu0 0
        %1364 = vmatpush1.bf16.msra.mxu0 %v1107
        %1365 = vmatprep.subr.bf16.mxu0 0
        %1366 = vmatpush1.bf16.msra.mxu0 %v1108
        %1367 = vmatprep.mubr.bf16.mxu0 %v599
        %1368 = vmatmul.mubr.bf16.gmra.mrb[0].mxu0 %v598
        %v1369 = vpop.f32.mrb[0].mxu0
        %v1370 = vadd.f32 %v1305, %v1369
        %v1371 = vpop.f32.mrb[0].mxu0
        %v1372 = vpop.f32.mrb[0].mxu0
        %v1373 = vadd.f32 %v1308, %v1372
        %v1374 = vpop.f32.mrb[0].mxu0
        %1375 = vmatprep.mubr.bf16.mxu0 %v605
        %1376 = vmatmul.mubr.bf16.gmra.mrb[0].mxu0 %v604
        %v1377 = vpop.f32.mrb[0].mxu0
        %v1378 = vadd.f32 %v1313, %v1377
        %v1379 = vpop.f32.mrb[0].mxu0
        %v1380 = vpop.f32.mrb[0].mxu0
        %v1381 = vadd.f32 %v1316, %v1380
        %v1382 = vpop.f32.mrb[0].mxu0
        %1383 = vmatprep.mubr.bf16.mxu0 %v611
        %1384 = vmatmul.mubr.bf16.gmra.mrb[0].mxu0 %v610
        %v1385 = vpop.f32.mrb[0].mxu0
        %v1386 = vadd.f32 %v1321, %v1385
        %v1387 = vpop.f32.mrb[0].mxu0
        %v1388 = vpop.f32.mrb[0].mxu0
        %v1389 = vadd.f32 %v1324, %v1388
        %v1390 = vpop.f32.mrb[0].mxu0
        %1391 = vmatprep.mubr.bf16.mxu0 %v617
        %1392 = vmatmul.mubr.bf16.gmra.mrb[0].mxu0 %v616
        %v1393 = vpop.f32.mrb[0].mxu0
        %v1394 = vadd.f32 %v1329, %v1393
        %v1395 = vpop.f32.mrb[0].mxu0
        %v1396 = vpop.f32.mrb[0].mxu0
        %v1397 = vadd.f32 %v1332, %v1396
        %v1398 = vpop.f32.mrb[0].mxu0
        %1399 = vdwg.mxu0
        %1400 = vmatprep.subr.bf16.mxu0 0
        %1401 = vmatpush1.bf16.msra.mxu0 %v1109
        %1402 = vmatprep.subr.bf16.mxu0 0
        %1403 = vmatpush1.bf16.msra.mxu0 %v1110
        %1404 = vmatprep.subr.bf16.mxu0 0
        %1405 = vmatpush1.bf16.msra.mxu0 %v1111
        %1406 = vmatprep.subr.bf16.mxu0 0
        %1407 = vmatpush1.bf16.msra.mxu0 %v1112
        %1408 = vmatprep.subr.bf16.mxu0 0
        %1409 = vmatpush1.bf16.msra.mxu0 %v1113
        %1410 = vmatprep.subr.bf16.mxu0 0
        %1411 = vmatpush1.bf16.msra.mxu0 %v1114
        %1412 = vmatprep.subr.bf16.mxu0 0
        %1413 = vmatpush1.bf16.msra.mxu0 %v1115
        %1414 = vmatprep.subr.bf16.mxu0 0
        %1415 = vmatpush1.bf16.msra.mxu0 %v1116
        %1416 = vmatprep.subr.bf16.mxu0 0
        %1417 = vmatpush1.bf16.msra.mxu0 %v1117
        %1418 = vmatprep.subr.bf16.mxu0 0
        %1419 = vmatpush1.bf16.msra.mxu0 %v1118
        %1420 = vmatprep.subr.bf16.mxu0 0
        %1421 = vmatpush1.bf16.msra.mxu0 %v1119
        %1422 = vmatprep.subr.bf16.mxu0 0
        %1423 = vmatpush1.bf16.msra.mxu0 %v1120
        %1424 = vmatprep.subr.bf16.mxu0 0
        %1425 = vmatpush1.bf16.msra.mxu0 %v1121
        %1426 = vmatprep.subr.bf16.mxu0 0
        %1427 = vmatpush1.bf16.msra.mxu0 %v1122
        %1428 = vmatprep.subr.bf16.mxu0 0
        %1429 = vmatpush1.bf16.msra.mxu0 %v1123
        %1430 = vmatprep.subr.bf16.mxu0 0
        %1431 = vmatpush1.bf16.msra.mxu0 %v1124
        %1432 = vmatprep.mubr.bf16.mxu0 %v601
        %1433 = vmatmul.mubr.bf16.gmra.mrb[0].mxu0 %v600
        %v1434 = vpop.f32.mrb[0].mxu0
        %v1435 = vadd.f32 %v1370, %v1434
        %v1436 = vpop.f32.mrb[0].mxu0
        %v1437 = vpop.f32.mrb[0].mxu0
        %v1438 = vadd.f32 %v1373, %v1437
        %v1439 = vpop.f32.mrb[0].mxu0
        %1440 = vmatprep.mubr.bf16.mxu0 %v607
        %1441 = vmatmul.mubr.bf16.gmra.mrb[0].mxu0 %v606
        %v1442 = vpop.f32.mrb[0].mxu0
        %v1443 = vadd.f32 %v1378, %v1442
        %v1444 = vpop.f32.mrb[0].mxu0
        %v1445 = vpop.f32.mrb[0].mxu0
        %v1446 = vadd.f32 %v1381, %v1445
        %v1447 = vpop.f32.mrb[0].mxu0
        %1448 = vmatprep.mubr.bf16.mxu0 %v613
        %1449 = vmatmul.mubr.bf16.gmra.mrb[0].mxu0 %v612
        %v1450 = vpop.f32.mrb[0].mxu0
        %v1451 = vadd.f32 %v1386, %v1450
        %v1452 = vpop.f32.mrb[0].mxu0
        %v1453 = vpop.f32.mrb[0].mxu0
        %v1454 = vadd.f32 %v1389, %v1453
        %v1455 = vpop.f32.mrb[0].mxu0
        %1456 = vmatprep.mubr.bf16.mxu0 %v619
        %1457 = vmatmul.mubr.bf16.gmra.mrb[0].mxu0 %v618
        %v1458 = vpop.f32.mrb[0].mxu0
        %v1459 = vadd.f32 %v1394, %v1458
        %v1460 = vpop.f32.mrb[0].mxu0
        %v1461 = vpop.f32.mrb[0].mxu0
        %v1462 = vadd.f32 %v1397, %v1461
        %v1463 = vpop.f32.mrb[0].mxu0
        %1464 = vdwg.mxu0
        %1465 = vmatprep.subr.bf16.mxu0 0
        %1466 = vmatpush1.bf16.msra.mxu0 %v1125
        %1467 = vmatprep.subr.bf16.mxu0 0
        %1468 = vmatpush1.bf16.msra.mxu0 %v1126
        %1469 = vmatprep.subr.bf16.mxu0 0
        %1470 = vmatpush1.bf16.msra.mxu0 %v1127
        %1471 = vmatprep.subr.bf16.mxu0 0
        %1472 = vmatpush1.bf16.msra.mxu0 %v1128
        %1473 = vmatprep.subr.bf16.mxu0 0
        %1474 = vmatpush1.bf16.msra.mxu0 %v1129
        %1475 = vmatprep.subr.bf16.mxu0 0
        %1476 = vmatpush1.bf16.msra.mxu0 %v1130
        %1477 = vmatprep.subr.bf16.mxu0 0
        %1478 = vmatpush1.bf16.msra.mxu0 %v1131
        %1479 = vmatprep.subr.bf16.mxu0 0
        %1480 = vmatpush1.bf16.msra.mxu0 %v1132
        %1481 = vmatprep.subr.bf16.mxu0 0
        %1482 = vmatpush1.bf16.msra.mxu0 0
        %1483 = vmatprep.subr.bf16.mxu0 0
        %1484 = vmatpush1.bf16.msra.mxu0 0
        %1485 = vmatprep.subr.bf16.mxu0 0
        %1486 = vmatpush1.bf16.msra.mxu0 0
        %1487 = vmatprep.subr.bf16.mxu0 0
        %1488 = vmatpush1.bf16.msra.mxu0 0
        %1489 = vmatprep.subr.bf16.mxu0 0
        %1490 = vmatpush1.bf16.msra.mxu0 0
        %1491 = vmatprep.subr.bf16.mxu0 0
        %1492 = vmatpush1.bf16.msra.mxu0 0
        %1493 = vmatprep.subr.bf16.mxu0 0
        %1494 = vmatpush1.bf16.msra.mxu0 0
        %1495 = vmatprep.subr.bf16.mxu0 0
        %1496 = vmatpush1.bf16.msra.mxu0 0
        %1497 = vmatprep.mubr.bf16.mxu0 0
        %1498 = vmatmul.mubr.bf16.gmra.mrb[0].mxu0 %v602
        %v1499 = vpop.f32.mrb[0].mxu0
        %v1500 = vadd.f32 %v1435, %v1499
        %v1501 = vpop.f32.mrb[0].mxu0
        %v1502 = vpop.f32.mrb[0].mxu0
        %v1503 = vadd.f32 %v1438, %v1502
        %v1504 = vpop.f32.mrb[0].mxu0
        %1505 = vmatprep.mubr.bf16.mxu0 0
        %1506 = vmatmul.mubr.bf16.gmra.mrb[0].mxu0 %v608
        %v1507 = vpop.f32.mrb[0].mxu0
        %v1508 = vadd.f32 %v1443, %v1507
        %v1509 = vpop.f32.mrb[0].mxu0
        %v1510 = vpop.f32.mrb[0].mxu0
        %v1511 = vadd.f32 %v1446, %v1510
        %v1512 = vpop.f32.mrb[0].mxu0
        %1513 = vmatprep.mubr.bf16.mxu0 0
        %1514 = vmatmul.mubr.bf16.gmra.mrb[0].mxu0 %v614
        %v1515 = vpop.f32.mrb[0].mxu0
        %v1516 = vadd.f32 %v1451, %v1515
        %v1517 = vpop.f32.mrb[0].mxu0
        %v1518 = vpop.f32.mrb[0].mxu0
        %v1519 = vadd.f32 %v1454, %v1518
        %v1520 = vpop.f32.mrb[0].mxu0
        %1521 = vmatprep.mubr.bf16.mxu0 0
        %1522 = vmatmul.mubr.bf16.gmra.mrb[0].mxu0 %v620
        %v1523 = vpop.f32.mrb[0].mxu0
        %v1524 = vadd.f32 %v1459, %v1523
        %v1525 = vpop.f32.mrb[0].mxu0
        %v1526 = vpop.f32.mrb[0].mxu0
        %v1527 = vadd.f32 %v1462, %v1526
        %v1528 = vpop.f32.mrb[0].mxu0
        %1529 = vdwg.mxu0
        %v1530 = vadd.f32 %v621, %v1500
        %v1531 = vadd.f32 %v622, %v1503
        %v1532 = vadd.f32 %v623, %v1508
        %v1533 = vadd.f32 %v624, %v1511
        %v1534 = vadd.f32 %v625, %v1516
        %v1535 = vadd.f32 %v626, %v1519
        %v1536 = vadd.f32 %v627, %v1524
        %v1537 = vadd.f32 %v628, %v1527
        %1538 = vst [vmem:[#allocation2] sm:$0xff] %v1530
        %1539 = vst [vmem:[#allocation2 + $0x8] sm:$0xff] %v1531
        %1540 = vst [vmem:[#allocation2 + $0x10] sm:$0xff] %v1532
        %1541 = vst [vmem:[#allocation2 + $0x18] sm:$0xff] %v1533
        %1542 = vst [vmem:[#allocation2 + $0x20] sm:$0xff] %v1534
        %1543 = vst [vmem:[#allocation2 + $0x28] sm:$0xff] %v1535
        %1544 = vst [vmem:[#allocation2 + $0x30] sm:$0xff] %v1536
        %1545 = vst [vmem:[#allocation2 + $0x38] sm:$0xff] %v1537
      $region48: #{residual_block_forward.4} parent=39 // pred_fallthru
        _
      %p1546 = scmp.eq.s32.totalorder %s25, 2
      // Predicated region
      $region49: #{residual_block_forward.4} parent=39 // pred_check
        %p1547 = pneg %p1546
      $region50: #{residual_block_forward.4} parent=39 // pred_check_branch
        %1549 = sbr.rel (%p1547) target = $region52
      $region51: #{residual_block_forward.4} parent=39 // pred_region
        %v1550 = vld [vmem:[#allocation2] sm:$0xff]
        %v1551 = vld [vmem:[#allocation2 + $0x8] sm:$0xff]
        %v1552 = vld [vmem:[#allocation2 + $0x10] sm:$0xff]
        %v1553 = vld [vmem:[#allocation2 + $0x18] sm:$0xff]
        %v1554 = vld [vmem:[#allocation2 + $0x20] sm:$0xff]
        %v1555 = vld [vmem:[#allocation2 + $0x28] sm:$0xff]
        %v1556 = vld [vmem:[#allocation2 + $0x30] sm:$0xff]
        %v1557 = vld [vmem:[#allocation2 + $0x38] sm:$0xff]
        %v1558 = vld [vmem:[%s2] sm:$0x1]
        %v1560 = vlaneseq
        %v1561 = vshrl.u32 %v1560, 7
        %v1562 = vsub.s32 0, %v1561
        %v1563 = vrot.slane %v1558, %v1562
        %v1565 = vadd.f32 %v1550, %v1563
        %v1566 = vadd.f32 %v1551, %v1563
        %v1567 = vadd.f32 %v1552, %v1563
        %v1568 = vadd.f32 %v1553, %v1563
        %v1569 = vadd.f32 %v1554, %v1563
        %v1570 = vadd.f32 %v1555, %v1563
        %v1571 = vadd.f32 %v1556, %v1563
        %v1572 = vadd.f32 %v1557, %v1563
        %1573 = vst [vmem:[%s334] sm:$0xff] %v1565
        %1574 = vst [vmem:[%s334 + $0x8] sm:$0xff] %v1566
        %1575 = vst [vmem:[%s334 + $0x10] sm:$0xff] %v1567
        %1576 = vst [vmem:[%s334 + $0x18] sm:$0xff] %v1568
        %1577 = vst [vmem:[%s334 + $0x20] sm:$0xff] %v1569
        %1578 = vst [vmem:[%s334 + $0x28] sm:$0xff] %v1570
        %1579 = vst [vmem:[%s334 + $0x30] sm:$0xff] %v1571
        %1580 = vst [vmem:[%s334 + $0x38] sm:$0xff] %v1572
        %v1581 = vadd.f32 %v1565, %v1566
        %v1582 = vadd.f32 %v1581, %v1567
        %v1583 = vadd.f32 %v1582, %v1568
        %v1584 = vadd.f32 %v1583, %v1569
        %v1585 = vadd.f32 %v1584, %v1570
        %v1586 = vadd.f32 %v1585, %v1571
        %v1587 = vadd.f32 %v1586, %v1572
        %v1588 = vrot.slane %v1587, 4
        %v1589 = vadd.f32 %v1587, %v1588
        %v1590 = vrot.slane %v1589, 2
        %v1591 = vadd.f32 %v1589, %v1590
        %v1592 = vrot.slane %v1591, 1
        %v1593 = vadd.f32 %v1591, %v1592
        %v1594 = vmul.f32 %v1565, %v1565
        %v1595 = vmul.f32 %v1566, %v1566
        %v1596 = vmul.f32 %v1567, %v1567
        %v1597 = vmul.f32 %v1568, %v1568
        %v1598 = vmul.f32 %v1569, %v1569
        %v1599 = vmul.f32 %v1570, %v1570
        %v1600 = vmul.f32 %v1571, %v1571
        %v1601 = vmul.f32 %v1572, %v1572
        %v1602 = vadd.f32 %v1594, %v1595
        %v1603 = vadd.f32 %v1602, %v1596
        %v1604 = vadd.f32 %v1603, %v1597
        %v1605 = vadd.f32 %v1604, %v1598
        %v1606 = vadd.f32 %v1605, %v1599
        %v1607 = vadd.f32 %v1606, %v1600
        %v1608 = vadd.f32 %v1607, %v1601
        %v1609 = vrot.slane %v1608, 4
        %v1610 = vadd.f32 %v1608, %v1609
        %v1611 = vrot.slane %v1610, 2
        %v1612 = vadd.f32 %v1610, %v1611
        %v1613 = vrot.slane %v1612, 1
        %v1614 = vadd.f32 %v1612, %v1613
        %vm1615 = vcmask 1040384
        %v1616 = vsel %vm1615, %v1593, %v1614
        %1617 = vst [vmem:[%s342] sm:$0x3] %v1616
      $region52: #{residual_block_forward.4} parent=39 // pred_fallthru
        _
      %p1618 = scmp.lt.s32.totalorder %s23, 1
      %s1619 = scalar_select %p1618, %s23, 1
      %p1620 = scmp.lt.s32.totalorder %s24, 7
      %s1621 = scalar_select %p1620, %s24, 7
      %s1622 = smul.addr %s1621, 8
      %s1623 = smul.addr %s1619, 64
      %s1624 = sadd.s32 %s1622, %s1623
      %s1625 = smul.addr %s1624, 8
      %s1626 = scalar_lea.vmem %s5, %s1625
      %p1627 = scmp.lt.s32.totalorder %s23, 1
      %s1628 = scalar_select %p1627, %s23, 1
      %p1629 = scmp.lt.s32.totalorder %s24, 7
      %s1630 = scalar_select %p1629, %s24, 7
      %s1631 = smul.addr %s1628, 8
      %s1632 = sadd.s32 %s1630, %s1631
      %s1633 = smul.addr %s1632, 2
      %s1634 = scalar_lea.vmem %s6, %s1633
      // Predicated region
      $region53: #{residual_block_forward.4} parent=39 // pred_check
        %p1635 = pneg %p176
      $region54: #{residual_block_forward.4} parent=39 // pred_check_branch
        %1637 = sbr.rel (%p1635) target = $region56
      $region55: #{residual_block_forward.4} parent=39 // pred_region
        _
      $region56: #{residual_block_forward.4} parent=39 // pred_fallthru
        _
      // Predicated region
      $region57: #{residual_block_forward.4} parent=39 // pred_check
        %p1638 = pneg %p204
      $region58: #{residual_block_forward.4} parent=39 // pred_check_branch
        %1640 = sbr.rel (%p1638) target = $region60
      $region59: #{residual_block_forward.4} parent=39 // pred_region
        _
      $region60: #{residual_block_forward.4} parent=39 // pred_fallthru
        _
    $region40: #{residual_block_forward.4} parent=5 // pred_fallthru
      _
    %p1641 = scmp.le.s32.totalorder 2, %s13
    // Predicated region
    $region61: #{residual_block_forward.4} parent=5 // pred_check
      %p1642 = pneg %p1641
    $region62: #{residual_block_forward.4} parent=5 // pred_check_branch
      %1644 = sbr.rel (%p1642) target = $region64
    $region63: #{residual_block_forward.4} parent=5 // pred_region
      %s1645 = ssub.s32 %s13, 2
      // Predicated region
      $region65: #{residual_block_forward.4} parent=63 // pred_check
        %p1646 = pneg %p182
      $region66: #{residual_block_forward.4} parent=63 // pred_check_branch
        %1648 = sbr.rel (%p1646) target = $region68
      $region67: #{residual_block_forward.4} parent=63 // pred_region
        %p1649 = scmp.lt.s32.totalorder %s26, 1
        %s1650 = scalar_select %p1649, %s26, 1
        %p1651 = scmp.lt.s32.totalorder %s27, 7
        %s1652 = scalar_select %p1651, %s27, 7
        %s1653 = smul.addr %s1652, 8
        %s1654 = smul.addr %s1650, 64
        %s1655 = sadd.s32 %s1653, %s1654
        %s1656 = smul.addr %s1655, 8
        %s1657 = scalar_lea.vmem %s5, %s1656
      $region68: #{residual_block_forward.4} parent=63 // pred_fallthru
        _
      // Predicated region
      $region69: #{residual_block_forward.4} parent=63 // pred_check
        %p1658 = pneg %p210
      $region70: #{residual_block_forward.4} parent=63 // pred_check_branch
        %1660 = sbr.rel (%p1658) target = $region72
      $region71: #{residual_block_forward.4} parent=63 // pred_region
        %p1661 = scmp.lt.s32.totalorder %s26, 1
        %s1662 = scalar_select %p1661, %s26, 1
        %p1663 = scmp.lt.s32.totalorder %s27, 7
        %s1664 = scalar_select %p1663, %s27, 7
        %s1665 = smul.addr %s1662, 8
        %s1666 = sadd.s32 %s1664, %s1665
        %s1667 = smul.addr %s1666, 2
        %s1668 = scalar_lea.vmem %s6, %s1667
      $region72: #{residual_block_forward.4} parent=63 // pred_fallthru
        _
    $region64: #{residual_block_forward.4} parent=5 // pred_fallthru
      _
  $region6: #{residual_block_forward.4} parent=0 // loop_footer
    %s17 = sadd.s32 1, %s13
  $region7: #{residual_block_forward.4} parent=0 // loop_footer_branch
    %12 = sbr.rel target = $region3
  $region8: #{residual_block_forward.4} parent=0 // loop_exit
    _

</llo_original>
